<compile_context>
chip_gen: v6e
topology: v6e:2x2x1
jax: 0.10.0
libtpu: 0.0.40
codegen_flags: <defaults>
</compile_context>

<pallas_src>
import math
import numpy as np

import jax
import jax.numpy as jnp
from jax.experimental import pallas as pl
from jax.experimental.pallas import tpu as pltpu


# ----------------------------------------------------------------------------
# Fused kernel: for every EncBlock —
#   in-VMEM zero-pad -> im2col -> single matmul + bias + ReLU
#   -> sigmoid (stored)  and  2x2 max-pool (fed to next block, VMEM-resident)
# ----------------------------------------------------------------------------
def _make_diffusion_kernel(layer_geoms):
    """layer_geoms: tuple of (H, W, Cin, Cout) per EncBlock (static)."""
    n_layers = len(layer_geoms)

    def kernel(*refs):
        x_ref = refs[0]
        wb = refs[1:1 + 2 * n_layers]                       # (w, b) per layer
        sig = refs[1 + 2 * n_layers:1 + 3 * n_layers]        # sigmoid outputs
        scr = refs[1 + 3 * n_layers:]                        # scratch

        x = x_ref[...]                                       # (H0, W0, C0)
        for l, (H, W, Cin, Cout) in enumerate(layer_geoms):
            w_ref, b_ref = wb[2 * l], wb[2 * l + 1]
            pad_sc, patch_sc = scr[2 * l], scr[2 * l + 1]
            HW = H * W

            # ---- zero halo + interior copy: padding lives only in VMEM ----
            pad_sc[...] = jnp.zeros((H + 2, W + 2, Cin), jnp.float32)
            pad_sc[pl.ds(1, H), pl.ds(1, W), :] = x

            # ---- im2col patch (HW, 9*Cin) assembled at static lane offsets -
            for kh in range(3):
                for kw in range(3):
                    c0 = (kh * 3 + kw) * Cin
                    patch_sc[:, c0:c0 + Cin] = (
                        pad_sc[pl.ds(kh, H), pl.ds(kw, W), :].reshape(HW, Cin))

            # ---- conv as ONE MXU matmul (K = 9*Cin) + bias + ReLU ----------
            # NOTE: cast operands to bf16 (f32 accum) on v6e/v7x for ~2x MXU
            # rate once tolerance is re-validated; kept f32 here.
            y = jnp.dot(patch_sc[...], w_ref[...],
                        preferred_element_type=jnp.float32)
            y = jnp.maximum(y + b_ref[...], 0.0)             # (HW, Cout)

            sig[l][...] = jax.nn.sigmoid(y)

            # ---- 2x2 / stride-2 max-pool feeding the next block ------------
            if l < n_layers - 1:
                y_sc = scr[2 * n_layers + 2 * l]             # (H, W, Cout)
                row_sc = scr[2 * n_layers + 2 * l + 1]       # (H//2, W, Cout)
                y_sc[...] = y.reshape(H, W, Cout)
                # rows: stride-2 reads along the major dim (VPU max)
                row_sc[...] = jnp.maximum(y_sc[pl.ds(0, H // 2, 2), :, :],
                                          y_sc[pl.ds(1, H // 2, 2), :, :])
                # cols: stride-2 reads along the sublane dim (VPU max)
                x = jnp.maximum(row_sc[:, pl.ds(0, W // 2, 2), :],
                                row_sc[:, pl.ds(1, W // 2, 2), :])

    return kernel


# ----------------------------------------------------------------------------
# Diffusion forward (NCHW boundary, matching the PyTorch module)
# ----------------------------------------------------------------------------
def init_diffusion_params(channels, key):
    params = []
    for i in range(len(channels) - 1):
        key, k1, k2 = jax.random.split(key, 3)
        cin, cout = channels[i], channels[i + 1]
        bound = 1.0 / math.sqrt(cin * 9)             # PyTorch Conv2d default init
        w = jax.random.uniform(k1, (3, 3, cin, cout), jnp.float32, -bound, bound)
        b = jax.random.uniform(k2, (cout,), jnp.float32, -bound, bound)
        params.append((w, b))
    return params


def diffusion_forward(p_nchw, params):
    """params: list of (w_hwio (3,3,Cin,Cout), bias (Cout,)) per EncBlock."""
    N, _, H0, W0 = p_nchw.shape
    x = jnp.transpose(p_nchw, (0, 2, 3, 1)).astype(jnp.float32)   # NCHW -> NHWC
    C0 = x.shape[-1]
    n_layers = len(params)

    geoms = []
    inputs = [x]
    in_specs = [pl.BlockSpec((None, H0, W0, C0), lambda n: (n, 0, 0, 0))]
    out_shape, out_specs = [], []
    conv_scr, pool_scr = [], []

    H, W = H0, W0
    for l, (w, b) in enumerate(params):
        cin, cout = w.shape[2], w.shape[3]
        geoms.append((H, W, cin, cout))
        inputs += [w.reshape(9 * cin, cout), b.reshape(1, cout)]
        in_specs += [pl.BlockSpec((9 * cin, cout), lambda n: (0, 0)),
                     pl.BlockSpec((1, cout), lambda n: (0, 0))]
        HW = H * W
        out_shape.append(jax.ShapeDtypeStruct((N, HW, cout), jnp.float32))
        out_specs.append(pl.BlockSpec((None, HW, cout), lambda n: (n, 0, 0)))
        conv_scr += [pltpu.VMEM((H + 2, W + 2, cin), jnp.float32),   # padded tile
                     pltpu.VMEM((HW, 9 * cin), jnp.float32)]         # im2col patch
        if l < n_layers - 1:
            pool_scr += [pltpu.VMEM((H, W, cout), jnp.float32),
                         pltpu.VMEM((H // 2, W, cout), jnp.float32)]
        H, W = H // 2, W // 2

    outs = pl.pallas_call(
        _make_diffusion_kernel(tuple(geoms)),
        out_shape=tuple(out_shape),
        grid=(N,),
        in_specs=in_specs,
        out_specs=tuple(out_specs),
        scratch_shapes=conv_scr + pool_scr,
        compiler_params=pltpu.CompilerParams(
            dimension_semantics=("parallel",)),
    )(*inputs)

    terms = []
    for (Hl, Wl, cin, cout), o in zip(geoms, outs):
        terms.append(jnp.transpose(o.reshape(N, Hl, Wl, cout), (0, 3, 1, 2)))
    return terms


# Pure-JAX reference (for verification only).
def _reference_forward(p_nchw, params):
    p = jnp.transpose(p_nchw, (0, 2, 3, 1))
    terms = []
    for w, b in params:
        y = jax.lax.conv_general_dilated(
            p, w, (1, 1), "SAME",
            dimension_numbers=("NHWC", "HWIO", "NHWC")) + b
        x = jnp.maximum(y, 0.0)
        terms.append(jnp.transpose(jax.nn.sigmoid(x), (0, 3, 1, 2)))
        p = jax.lax.reduce_window(x, -jnp.inf, jax.lax.max,
                                  (1, 2, 2, 1), (1, 2, 2, 1), "VALID")
    return terms


if __name__ == "__main__":
    channels = [4, 8, 16]                     # -> 2 EncBlocks
    key = jax.random.PRNGKey(0)
    key, kx = jax.random.split(key)
    x = jax.random.normal(kx, (2, channels[0], 16, 16), jnp.float32)  # NCHW

    params = init_diffusion_params(channels, key)

    outs = diffusion_forward(x, params)
    outs = [jax.block_until_ready(o) for o in outs]

    refs = _reference_forward(x, params)
    for o, r in zip(outs, refs):
        assert o.shape == r.shape, (o.shape, r.shape)
        np.testing.assert_allclose(np.asarray(o), np.asarray(r),
                                   rtol=1e-5, atol=1e-5)

    print("KERNEL_OK")
</pallas_src>

<mosaic_0001>
module attributes {stable_mosaic.version = 11 : i64} {
  func.func @kernel(%arg0: i32, %arg1: memref<1x16x16x4xf32, #tpu.memory_space<vmem>>, %arg2: memref<36x8xf32, #tpu.memory_space<vmem>>, %arg3: memref<1x8xf32, #tpu.memory_space<vmem>>, %arg4: memref<72x16xf32, #tpu.memory_space<vmem>>, %arg5: memref<1x16xf32, #tpu.memory_space<vmem>>, %arg6: memref<1x256x8xf32, #tpu.memory_space<vmem>>, %arg7: memref<1x64x16xf32, #tpu.memory_space<vmem>>, %arg8: memref<18x18x4xf32, #tpu.memory_space<vmem>>, %arg9: memref<256x36xf32, #tpu.memory_space<vmem>>, %arg10: memref<10x10x8xf32, #tpu.memory_space<vmem>>, %arg11: memref<64x72xf32, #tpu.memory_space<vmem>>, %arg12: memref<16x16x8xf32, #tpu.memory_space<vmem>>, %arg13: memref<8x16x8xf32, #tpu.memory_space<vmem>>) attributes {dimension_semantics = [#tpu.dimension_semantics<parallel>], iteration_bounds = array<i64: 2>, scalar_prefetch = 0 : i64, scratch_operands = 6 : i64, tpu.core_type = #tpu.core_type<tc>, window_params = [{transform_indices = @transform_0, window_bounds = array<i64: 1, 16, 16, 4>}, {pipeline_mode = #tpu.pipeline_mode<synchronous>, transform_indices = @transform_1, window_bounds = array<i64: 36, 8>}, {pipeline_mode = #tpu.pipeline_mode<synchronous>, transform_indices = @transform_2, window_bounds = array<i64: 1, 8>}, {pipeline_mode = #tpu.pipeline_mode<synchronous>, transform_indices = @transform_3, window_bounds = array<i64: 72, 16>}, {pipeline_mode = #tpu.pipeline_mode<synchronous>, transform_indices = @transform_4, window_bounds = array<i64: 1, 16>}, {transform_indices = @transform_5, window_bounds = array<i64: 1, 256, 8>}, {transform_indices = @transform_6, window_bounds = array<i64: 1, 64, 16>}]} {
    %c0 = arith.constant 0 : index
    %c0_0 = arith.constant 0 : index
    %c0_1 = arith.constant 0 : index
    %c0_2 = arith.constant 0 : index
    %0 = vector.load %arg1[%c0, %c0_0, %c0_1, %c0_2] : memref<1x16x16x4xf32, #tpu.memory_space<vmem>>, vector<1x16x16x4xf32>
    %1 = vector.shape_cast %0 : vector<1x16x16x4xf32> to vector<16x16x4xf32>
    %cst = arith.constant 0.000000e+00 : f32
    %2 = vector.broadcast %cst : f32 to vector<18x18x4xf32>
    %c0_3 = arith.constant 0 : index
    %c0_4 = arith.constant 0 : index
    %c0_5 = arith.constant 0 : index
    %3 = vector.load %arg8[%c0_3, %c0_4, %c0_5] : memref<18x18x4xf32, #tpu.memory_space<vmem>>, vector<18x18x4xf32>
    tpu.vector_store %arg8[%c0_3, %c0_4, %c0_5], %2 {strides = array<i32>} : memref<18x18x4xf32, #tpu.memory_space<vmem>>, vector<18x18x4xf32>,
    %c1 = arith.constant 1 : index
    %c1_6 = arith.constant 1 : index
    %c0_7 = arith.constant 0 : index
    %4 = vector.load %arg8[%c1, %c1_6, %c0_7] : memref<18x18x4xf32, #tpu.memory_space<vmem>>, vector<16x16x4xf32>
    tpu.vector_store %arg8[%c1, %c1_6, %c0_7], %1 {strides = array<i32>} : memref<18x18x4xf32, #tpu.memory_space<vmem>>, vector<16x16x4xf32>,
    %c0_8 = arith.constant 0 : index
    %c0_9 = arith.constant 0 : index
    %c0_10 = arith.constant 0 : index
    %5 = vector.load %arg8[%c0_8, %c0_9, %c0_10] : memref<18x18x4xf32, #tpu.memory_space<vmem>>, vector<16x16x4xf32>
    %6 = vector.shape_cast %5 : vector<16x16x4xf32> to vector<256x4xf32>
    %c0_11 = arith.constant 0 : index
    %c0_12 = arith.constant 0 : index
    %7 = vector.load %arg9[%c0_11, %c0_12] : memref<256x36xf32, #tpu.memory_space<vmem>>, vector<256x4xf32>
    tpu.vector_store %arg9[%c0_11, %c0_12], %6 {strides = array<i32>} : memref<256x36xf32, #tpu.memory_space<vmem>>, vector<256x4xf32>,
    %c0_13 = arith.constant 0 : index
    %c1_14 = arith.constant 1 : index
    %c0_15 = arith.constant 0 : index
    %8 = vector.load %arg8[%c0_13, %c1_14, %c0_15] : memref<18x18x4xf32, #tpu.memory_space<vmem>>, vector<16x16x4xf32>
    %9 = vector.shape_cast %8 : vector<16x16x4xf32> to vector<256x4xf32>
    %c0_16 = arith.constant 0 : index
    %c4 = arith.constant 4 : index
    %10 = vector.load %arg9[%c0_16, %c4] : memref<256x36xf32, #tpu.memory_space<vmem>>, vector<256x4xf32>
    tpu.vector_store %arg9[%c0_16, %c4], %9 {strides = array<i32>} : memref<256x36xf32, #tpu.memory_space<vmem>>, vector<256x4xf32>,
    %c0_17 = arith.constant 0 : index
    %c2 = arith.constant 2 : index
    %c0_18 = arith.constant 0 : index
    %11 = vector.load %arg8[%c0_17, %c2, %c0_18] : memref<18x18x4xf32, #tpu.memory_space<vmem>>, vector<16x16x4xf32>
    %12 = vector.shape_cast %11 : vector<16x16x4xf32> to vector<256x4xf32>
    %c0_19 = arith.constant 0 : index
    %c8 = arith.constant 8 : index
    %13 = vector.load %arg9[%c0_19, %c8] : memref<256x36xf32, #tpu.memory_space<vmem>>, vector<256x4xf32>
    tpu.vector_store %arg9[%c0_19, %c8], %12 {strides = array<i32>} : memref<256x36xf32, #tpu.memory_space<vmem>>, vector<256x4xf32>,
    %c1_20 = arith.constant 1 : index
    %c0_21 = arith.constant 0 : index
    %c0_22 = arith.constant 0 : index
    %14 = vector.load %arg8[%c1_20, %c0_21, %c0_22] : memref<18x18x4xf32, #tpu.memory_space<vmem>>, vector<16x16x4xf32>
    %15 = vector.shape_cast %14 : vector<16x16x4xf32> to vector<256x4xf32>
    %c0_23 = arith.constant 0 : index
    %c12 = arith.constant 12 : index
    %16 = vector.load %arg9[%c0_23, %c12] : memref<256x36xf32, #tpu.memory_space<vmem>>, vector<256x4xf32>
    tpu.vector_store %arg9[%c0_23, %c12], %15 {strides = array<i32>} : memref<256x36xf32, #tpu.memory_space<vmem>>, vector<256x4xf32>,
    %c1_24 = arith.constant 1 : index
    %c1_25 = arith.constant 1 : index
    %c0_26 = arith.constant 0 : index
    %17 = vector.load %arg8[%c1_24, %c1_25, %c0_26] : memref<18x18x4xf32, #tpu.memory_space<vmem>>, vector<16x16x4xf32>
    %18 = vector.shape_cast %17 : vector<16x16x4xf32> to vector<256x4xf32>
    %c0_27 = arith.constant 0 : index
    %c16 = arith.constant 16 : index
    %19 = vector.load %arg9[%c0_27, %c16] : memref<256x36xf32, #tpu.memory_space<vmem>>, vector<256x4xf32>
    tpu.vector_store %arg9[%c0_27, %c16], %18 {strides = array<i32>} : memref<256x36xf32, #tpu.memory_space<vmem>>, vector<256x4xf32>,
    %c1_28 = arith.constant 1 : index
    %c2_29 = arith.constant 2 : index
    %c0_30 = arith.constant 0 : index
    %20 = vector.load %arg8[%c1_28, %c2_29, %c0_30] : memref<18x18x4xf32, #tpu.memory_space<vmem>>, vector<16x16x4xf32>
    %21 = vector.shape_cast %20 : vector<16x16x4xf32> to vector<256x4xf32>
    %c0_31 = arith.constant 0 : index
    %c20 = arith.constant 20 : index
    %22 = vector.load %arg9[%c0_31, %c20] : memref<256x36xf32, #tpu.memory_space<vmem>>, vector<256x4xf32>
    tpu.vector_store %arg9[%c0_31, %c20], %21 {strides = array<i32>} : memref<256x36xf32, #tpu.memory_space<vmem>>, vector<256x4xf32>,
    %c2_32 = arith.constant 2 : index
    %c0_33 = arith.constant 0 : index
    %c0_34 = arith.constant 0 : index
    %23 = vector.load %arg8[%c2_32, %c0_33, %c0_34] : memref<18x18x4xf32, #tpu.memory_space<vmem>>, vector<16x16x4xf32>
    %24 = vector.shape_cast %23 : vector<16x16x4xf32> to vector<256x4xf32>
    %c0_35 = arith.constant 0 : index
    %c24 = arith.constant 24 : index
    %25 = vector.load %arg9[%c0_35, %c24] : memref<256x36xf32, #tpu.memory_space<vmem>>, vector<256x4xf32>
    tpu.vector_store %arg9[%c0_35, %c24], %24 {strides = array<i32>} : memref<256x36xf32, #tpu.memory_space<vmem>>, vector<256x4xf32>,
    %c2_36 = arith.constant 2 : index
    %c1_37 = arith.constant 1 : index
    %c0_38 = arith.constant 0 : index
    %26 = vector.load %arg8[%c2_36, %c1_37, %c0_38] : memref<18x18x4xf32, #tpu.memory_space<vmem>>, vector<16x16x4xf32>
    %27 = vector.shape_cast %26 : vector<16x16x4xf32> to vector<256x4xf32>
    %c0_39 = arith.constant 0 : index
    %c28 = arith.constant 28 : index
    %28 = vector.load %arg9[%c0_39, %c28] : memref<256x36xf32, #tpu.memory_space<vmem>>, vector<256x4xf32>
    tpu.vector_store %arg9[%c0_39, %c28], %27 {strides = array<i32>} : memref<256x36xf32, #tpu.memory_space<vmem>>, vector<256x4xf32>,
    %c2_40 = arith.constant 2 : index
    %c2_41 = arith.constant 2 : index
    %c0_42 = arith.constant 0 : index
    %29 = vector.load %arg8[%c2_40, %c2_41, %c0_42] : memref<18x18x4xf32, #tpu.memory_space<vmem>>, vector<16x16x4xf32>
    %30 = vector.shape_cast %29 : vector<16x16x4xf32> to vector<256x4xf32>
    %c0_43 = arith.constant 0 : index
    %c32 = arith.constant 32 : index
    %31 = vector.load %arg9[%c0_43, %c32] : memref<256x36xf32, #tpu.memory_space<vmem>>, vector<256x4xf32>
    tpu.vector_store %arg9[%c0_43, %c32], %30 {strides = array<i32>} : memref<256x36xf32, #tpu.memory_space<vmem>>, vector<256x4xf32>,
    %c0_44 = arith.constant 0 : index
    %c0_45 = arith.constant 0 : index
    %32 = vector.load %arg9[%c0_44, %c0_45] : memref<256x36xf32, #tpu.memory_space<vmem>>, vector<256x36xf32>
    %c0_46 = arith.constant 0 : index
    %c0_47 = arith.constant 0 : index
    %33 = vector.load %arg2[%c0_46, %c0_47] : memref<36x8xf32, #tpu.memory_space<vmem>>, vector<36x8xf32>
    %cst_48 = arith.constant dense<0.000000e+00> : vector<256x8xf32>
    %34 = tpu.matmul %32, %33, %cst_48 {dimension_numbers = #tpu.dot_dimension_numbers<[1], [0], [0], [1], [0, 0, 1, 1], [], []>} : vector<256x36xf32>, vector<36x8xf32>, vector<256x8xf32> -> vector<256x8xf32>
    %c0_49 = arith.constant 0 : index
    %c0_50 = arith.constant 0 : index
    %35 = vector.load %arg3[%c0_49, %c0_50] : memref<1x8xf32, #tpu.memory_space<vmem>>, vector<1x8xf32>
    %36 = vector.broadcast %35 : vector<1x8xf32> to vector<256x8xf32>
    %37 = arith.addf %34, %36 : vector<256x8xf32>
    %cst_51 = arith.constant 0.000000e+00 : f32
    %38 = vector.broadcast %cst_51 : f32 to vector<256x8xf32>
    %39 = arith.maximumf %37, %38 : vector<256x8xf32>
    %40 = arith.negf %39 : vector<256x8xf32>
    %41 = math.exp %40 : vector<256x8xf32>
    %cst_52 = arith.constant 1.000000e+00 : f32
    %42 = vector.broadcast %cst_52 : f32 to vector<256x8xf32>
    %43 = arith.addf %42, %41 : vector<256x8xf32>
    %44 = arith.divf %42, %43 : vector<256x8xf32>
    %c0_53 = arith.constant 0 : index
    %c0_54 = arith.constant 0 : index
    %c0_55 = arith.constant 0 : index
    %45 = vector.load %arg6[%c0_53, %c0_54, %c0_55] : memref<1x256x8xf32, #tpu.memory_space<vmem>>, vector<1x256x8xf32>
    %46 = vector.shape_cast %45 : vector<1x256x8xf32> to vector<256x8xf32>
    %47 = vector.shape_cast %44 : vector<256x8xf32> to vector<1x256x8xf32>
    tpu.vector_store %arg6[%c0_53, %c0_54, %c0_55], %47 {strides = array<i32>} : memref<1x256x8xf32, #tpu.memory_space<vmem>>, vector<1x256x8xf32>,
    %48 = vector.shape_cast %39 : vector<256x8xf32> to vector<16x16x8xf32>
    %c0_56 = arith.constant 0 : index
    %c0_57 = arith.constant 0 : index
    %c0_58 = arith.constant 0 : index
    %49 = vector.load %arg12[%c0_56, %c0_57, %c0_58] : memref<16x16x8xf32, #tpu.memory_space<vmem>>, vector<16x16x8xf32>
    tpu.vector_store %arg12[%c0_56, %c0_57, %c0_58], %48 {strides = array<i32>} : memref<16x16x8xf32, #tpu.memory_space<vmem>>, vector<16x16x8xf32>,
    %c0_59 = arith.constant 0 : index
    %c0_60 = arith.constant 0 : index
    %c0_61 = arith.constant 0 : index
    %50 = tpu.strided_load %arg12[%c0_59, %c0_60, %c0_61] {strides = array<i32: 2, 1, 1>} : memref<16x16x8xf32, #tpu.memory_space<vmem>>, vector<8x16x8xf32>
    %c1_62 = arith.constant 1 : index
    %c0_63 = arith.constant 0 : index
    %c0_64 = arith.constant 0 : index
    %51 = tpu.strided_load %arg12[%c1_62, %c0_63, %c0_64] {strides = array<i32: 2, 1, 1>} : memref<16x16x8xf32, #tpu.memory_space<vmem>>, vector<8x16x8xf32>
    %52 = arith.maximumf %50, %51 : vector<8x16x8xf32>
    %c0_65 = arith.constant 0 : index
    %c0_66 = arith.constant 0 : index
    %c0_67 = arith.constant 0 : index
    %53 = vector.load %arg13[%c0_65, %c0_66, %c0_67] : memref<8x16x8xf32, #tpu.memory_space<vmem>>, vector<8x16x8xf32>
    tpu.vector_store %arg13[%c0_65, %c0_66, %c0_67], %52 {strides = array<i32>} : memref<8x16x8xf32, #tpu.memory_space<vmem>>, vector<8x16x8xf32>,
    %c0_68 = arith.constant 0 : index
    %c0_69 = arith.constant 0 : index
    %c0_70 = arith.constant 0 : index
    %54 = tpu.strided_load %arg13[%c0_68, %c0_69, %c0_70] {strides = array<i32: 1, 2, 1>} : memref<8x16x8xf32, #tpu.memory_space<vmem>>, vector<8x8x8xf32>
    %c0_71 = arith.constant 0 : index
    %c1_72 = arith.constant 1 : index
    %c0_73 = arith.constant 0 : index
    %55 = tpu.strided_load %arg13[%c0_71, %c1_72, %c0_73] {strides = array<i32: 1, 2, 1>} : memref<8x16x8xf32, #tpu.memory_space<vmem>>, vector<8x8x8xf32>
    %56 = arith.maximumf %54, %55 : vector<8x8x8xf32>
    %cst_74 = arith.constant 0.000000e+00 : f32
    %57 = vector.broadcast %cst_74 : f32 to vector<10x10x8xf32>
    %c0_75 = arith.constant 0 : index
    %c0_76 = arith.constant 0 : index
    %c0_77 = arith.constant 0 : index
    %58 = vector.load %arg10[%c0_75, %c0_76, %c0_77] : memref<10x10x8xf32, #tpu.memory_space<vmem>>, vector<10x10x8xf32>
    tpu.vector_store %arg10[%c0_75, %c0_76, %c0_77], %57 {strides = array<i32>} : memref<10x10x8xf32, #tpu.memory_space<vmem>>, vector<10x10x8xf32>,
    %c1_78 = arith.constant 1 : index
    %c1_79 = arith.constant 1 : index
    %c0_80 = arith.constant 0 : index
    %59 = vector.load %arg10[%c1_78, %c1_79, %c0_80] : memref<10x10x8xf32, #tpu.memory_space<vmem>>, vector<8x8x8xf32>
    tpu.vector_store %arg10[%c1_78, %c1_79, %c0_80], %56 {strides = array<i32>} : memref<10x10x8xf32, #tpu.memory_space<vmem>>, vector<8x8x8xf32>,
    %c0_81 = arith.constant 0 : index
    %c0_82 = arith.constant 0 : index
    %c0_83 = arith.constant 0 : index
    %60 = vector.load %arg10[%c0_81, %c0_82, %c0_83] : memref<10x10x8xf32, #tpu.memory_space<vmem>>, vector<8x8x8xf32>
    %61 = vector.shape_cast %60 : vector<8x8x8xf32> to vector<64x8xf32>
    %c0_84 = arith.constant 0 : index
    %c0_85 = arith.constant 0 : index
    %62 = vector.load %arg11[%c0_84, %c0_85] : memref<64x72xf32, #tpu.memory_space<vmem>>, vector<64x8xf32>
    tpu.vector_store %arg11[%c0_84, %c0_85], %61 {strides = array<i32>} : memref<64x72xf32, #tpu.memory_space<vmem>>, vector<64x8xf32>,
    %c0_86 = arith.constant 0 : index
    %c1_87 = arith.constant 1 : index
    %c0_88 = arith.constant 0 : index
    %63 = vector.load %arg10[%c0_86, %c1_87, %c0_88] : memref<10x10x8xf32, #tpu.memory_space<vmem>>, vector<8x8x8xf32>
    %64 = vector.shape_cast %63 : vector<8x8x8xf32> to vector<64x8xf32>
    %c0_89 = arith.constant 0 : index
    %c8_90 = arith.constant 8 : index
    %65 = vector.load %arg11[%c0_89, %c8_90] : memref<64x72xf32, #tpu.memory_space<vmem>>, vector<64x8xf32>
    tpu.vector_store %arg11[%c0_89, %c8_90], %64 {strides = array<i32>} : memref<64x72xf32, #tpu.memory_space<vmem>>, vector<64x8xf32>,
    %c0_91 = arith.constant 0 : index
    %c2_92 = arith.constant 2 : index
    %c0_93 = arith.constant 0 : index
    %66 = vector.load %arg10[%c0_91, %c2_92, %c0_93] : memref<10x10x8xf32, #tpu.memory_space<vmem>>, vector<8x8x8xf32>
    %67 = vector.shape_cast %66 : vector<8x8x8xf32> to vector<64x8xf32>
    %c0_94 = arith.constant 0 : index
    %c16_95 = arith.constant 16 : index
    %68 = vector.load %arg11[%c0_94, %c16_95] : memref<64x72xf32, #tpu.memory_space<vmem>>, vector<64x8xf32>
    tpu.vector_store %arg11[%c0_94, %c16_95], %67 {strides = array<i32>} : memref<64x72xf32, #tpu.memory_space<vmem>>, vector<64x8xf32>,
    %c1_96 = arith.constant 1 : index
    %c0_97 = arith.constant 0 : index
    %c0_98 = arith.constant 0 : index
    %69 = vector.load %arg10[%c1_96, %c0_97, %c0_98] : memref<10x10x8xf32, #tpu.memory_space<vmem>>, vector<8x8x8xf32>
    %70 = vector.shape_cast %69 : vector<8x8x8xf32> to vector<64x8xf32>
    %c0_99 = arith.constant 0 : index
    %c24_100 = arith.constant 24 : index
    %71 = vector.load %arg11[%c0_99, %c24_100] : memref<64x72xf32, #tpu.memory_space<vmem>>, vector<64x8xf32>
    tpu.vector_store %arg11[%c0_99, %c24_100], %70 {strides = array<i32>} : memref<64x72xf32, #tpu.memory_space<vmem>>, vector<64x8xf32>,
    %c1_101 = arith.constant 1 : index
    %c1_102 = arith.constant 1 : index
    %c0_103 = arith.constant 0 : index
    %72 = vector.load %arg10[%c1_101, %c1_102, %c0_103] : memref<10x10x8xf32, #tpu.memory_space<vmem>>, vector<8x8x8xf32>
    %73 = vector.shape_cast %72 : vector<8x8x8xf32> to vector<64x8xf32>
    %c0_104 = arith.constant 0 : index
    %c32_105 = arith.constant 32 : index
    %74 = vector.load %arg11[%c0_104, %c32_105] : memref<64x72xf32, #tpu.memory_space<vmem>>, vector<64x8xf32>
    tpu.vector_store %arg11[%c0_104, %c32_105], %73 {strides = array<i32>} : memref<64x72xf32, #tpu.memory_space<vmem>>, vector<64x8xf32>,
    %c1_106 = arith.constant 1 : index
    %c2_107 = arith.constant 2 : index
    %c0_108 = arith.constant 0 : index
    %75 = vector.load %arg10[%c1_106, %c2_107, %c0_108] : memref<10x10x8xf32, #tpu.memory_space<vmem>>, vector<8x8x8xf32>
    %76 = vector.shape_cast %75 : vector<8x8x8xf32> to vector<64x8xf32>
    %c0_109 = arith.constant 0 : index
    %c40 = arith.constant 40 : index
    %77 = vector.load %arg11[%c0_109, %c40] : memref<64x72xf32, #tpu.memory_space<vmem>>, vector<64x8xf32>
    tpu.vector_store %arg11[%c0_109, %c40], %76 {strides = array<i32>} : memref<64x72xf32, #tpu.memory_space<vmem>>, vector<64x8xf32>,
    %c2_110 = arith.constant 2 : index
    %c0_111 = arith.constant 0 : index
    %c0_112 = arith.constant 0 : index
    %78 = vector.load %arg10[%c2_110, %c0_111, %c0_112] : memref<10x10x8xf32, #tpu.memory_space<vmem>>, vector<8x8x8xf32>
    %79 = vector.shape_cast %78 : vector<8x8x8xf32> to vector<64x8xf32>
    %c0_113 = arith.constant 0 : index
    %c48 = arith.constant 48 : index
    %80 = vector.load %arg11[%c0_113, %c48] : memref<64x72xf32, #tpu.memory_space<vmem>>, vector<64x8xf32>
    tpu.vector_store %arg11[%c0_113, %c48], %79 {strides = array<i32>} : memref<64x72xf32, #tpu.memory_space<vmem>>, vector<64x8xf32>,
    %c2_114 = arith.constant 2 : index
    %c1_115 = arith.constant 1 : index
    %c0_116 = arith.constant 0 : index
    %81 = vector.load %arg10[%c2_114, %c1_115, %c0_116] : memref<10x10x8xf32, #tpu.memory_space<vmem>>, vector<8x8x8xf32>
    %82 = vector.shape_cast %81 : vector<8x8x8xf32> to vector<64x8xf32>
    %c0_117 = arith.constant 0 : index
    %c56 = arith.constant 56 : index
    %83 = vector.load %arg11[%c0_117, %c56] : memref<64x72xf32, #tpu.memory_space<vmem>>, vector<64x8xf32>
    tpu.vector_store %arg11[%c0_117, %c56], %82 {strides = array<i32>} : memref<64x72xf32, #tpu.memory_space<vmem>>, vector<64x8xf32>,
    %c2_118 = arith.constant 2 : index
    %c2_119 = arith.constant 2 : index
    %c0_120 = arith.constant 0 : index
    %84 = vector.load %arg10[%c2_118, %c2_119, %c0_120] : memref<10x10x8xf32, #tpu.memory_space<vmem>>, vector<8x8x8xf32>
    %85 = vector.shape_cast %84 : vector<8x8x8xf32> to vector<64x8xf32>
    %c0_121 = arith.constant 0 : index
    %c64 = arith.constant 64 : index
    %86 = vector.load %arg11[%c0_121, %c64] : memref<64x72xf32, #tpu.memory_space<vmem>>, vector<64x8xf32>
    tpu.vector_store %arg11[%c0_121, %c64], %85 {strides = array<i32>} : memref<64x72xf32, #tpu.memory_space<vmem>>, vector<64x8xf32>,
    %c0_122 = arith.constant 0 : index
    %c0_123 = arith.constant 0 : index
    %87 = vector.load %arg11[%c0_122, %c0_123] : memref<64x72xf32, #tpu.memory_space<vmem>>, vector<64x72xf32>
    %c0_124 = arith.constant 0 : index
    %c0_125 = arith.constant 0 : index
    %88 = vector.load %arg4[%c0_124, %c0_125] : memref<72x16xf32, #tpu.memory_space<vmem>>, vector<72x16xf32>
    %cst_126 = arith.constant dense<0.000000e+00> : vector<64x16xf32>
    %89 = tpu.matmul %87, %88, %cst_126 {dimension_numbers = #tpu.dot_dimension_numbers<[1], [0], [0], [1], [0, 0, 1, 1], [], []>} : vector<64x72xf32>, vector<72x16xf32>, vector<64x16xf32> -> vector<64x16xf32>
    %c0_127 = arith.constant 0 : index
    %c0_128 = arith.constant 0 : index
    %90 = vector.load %arg5[%c0_127, %c0_128] : memref<1x16xf32, #tpu.memory_space<vmem>>, vector<1x16xf32>
    %91 = vector.broadcast %90 : vector<1x16xf32> to vector<64x16xf32>
    %92 = arith.addf %89, %91 : vector<64x16xf32>
    %cst_129 = arith.constant 0.000000e+00 : f32
    %93 = vector.broadcast %cst_129 : f32 to vector<64x16xf32>
    %94 = arith.maximumf %92, %93 : vector<64x16xf32>
    %95 = arith.negf %94 : vector<64x16xf32>
    %96 = math.exp %95 : vector<64x16xf32>
    %cst_130 = arith.constant 1.000000e+00 : f32
    %97 = vector.broadcast %cst_130 : f32 to vector<64x16xf32>
    %98 = arith.addf %97, %96 : vector<64x16xf32>
    %99 = arith.divf %97, %98 : vector<64x16xf32>
    %c0_131 = arith.constant 0 : index
    %c0_132 = arith.constant 0 : index
    %c0_133 = arith.constant 0 : index
    %100 = vector.load %arg7[%c0_131, %c0_132, %c0_133] : memref<1x64x16xf32, #tpu.memory_space<vmem>>, vector<1x64x16xf32>
    %101 = vector.shape_cast %100 : vector<1x64x16xf32> to vector<64x16xf32>
    %102 = vector.shape_cast %99 : vector<64x16xf32> to vector<1x64x16xf32>
    tpu.vector_store %arg7[%c0_131, %c0_132, %c0_133], %102 {strides = array<i32>} : memref<1x64x16xf32, #tpu.memory_space<vmem>>, vector<1x64x16xf32>,
    return
  }
  func.func @transform_0(%arg0: i32) -> (i32, i32, i32, i32) {
    %c0_i32 = arith.constant 0 : i32
    %c0_i32_0 = arith.constant 0 : i32
    %c0_i32_1 = arith.constant 0 : i32
    %c0_i32_2 = arith.constant 0 : i32
    return %arg0, %c0_i32, %c0_i32_0, %c0_i32_1 : i32, i32, i32, i32
  }
  func.func @transform_1(%arg0: i32) -> (i32, i32) {
    %c0_i32 = arith.constant 0 : i32
    %c0_i32_0 = arith.constant 0 : i32
    %c0_i32_1 = arith.constant 0 : i32
    return %c0_i32, %c0_i32_0 : i32, i32
  }
  func.func @transform_2(%arg0: i32) -> (i32, i32) {
    %c0_i32 = arith.constant 0 : i32
    %c0_i32_0 = arith.constant 0 : i32
    %c0_i32_1 = arith.constant 0 : i32
    return %c0_i32, %c0_i32_0 : i32, i32
  }
  func.func @transform_3(%arg0: i32) -> (i32, i32) {
    %c0_i32 = arith.constant 0 : i32
    %c0_i32_0 = arith.constant 0 : i32
    %c0_i32_1 = arith.constant 0 : i32
    return %c0_i32, %c0_i32_0 : i32, i32
  }
  func.func @transform_4(%arg0: i32) -> (i32, i32) {
    %c0_i32 = arith.constant 0 : i32
    %c0_i32_0 = arith.constant 0 : i32
    %c0_i32_1 = arith.constant 0 : i32
    return %c0_i32, %c0_i32_0 : i32, i32
  }
  func.func @transform_5(%arg0: i32) -> (i32, i32, i32) {
    %c0_i32 = arith.constant 0 : i32
    %c0_i32_0 = arith.constant 0 : i32
    %c0_i32_1 = arith.constant 0 : i32
    return %arg0, %c0_i32, %c0_i32_0 : i32, i32, i32
  }
  func.func @transform_6(%arg0: i32) -> (i32, i32, i32) {
    %c0_i32 = arith.constant 0 : i32
    %c0_i32_0 = arith.constant 0 : i32
    %c0_i32_1 = arith.constant 0 : i32
    return %arg0, %c0_i32, %c0_i32_0 : i32, i32, i32
  }
}

</mosaic_0001>

<llo_original>
// kernel: tpu_custom_call.1
$region0: #{tpu_custom_call.1}
  #allocation0 [shape = 'u32[]', space=smem, size = 0x4, offset = 0x4, fixed_abs, tag = 'smem constant byte address 0x4 - core index']
  #allocation1 [shape = 'u32[144,128]{1,0:T(1,128)}', space=vmem, size = 0x12000, scoped, tag = 'internal scratch']
  #allocation2 [shape = 'f32[18,18,4]{2,1,0:T(8,128)}', space=vmem, size = 0x36000, scoped, tag = 'scratch operand']
  #allocation3 [shape = 'f32[256,36]{1,0:T(8,128)}', space=vmem, size = 0x20000, scoped, tag = 'scratch operand']
  #allocation4 [shape = 'f32[10,10,8]{2,1,0:T(8,128)}', space=vmem, size = 0x14000, scoped, tag = 'scratch operand']
  #allocation5 [shape = 'f32[64,72]{1,0:T(8,128)}', space=vmem, size = 0x8000, scoped, tag = 'scratch operand']
  #allocation6 [shape = 'f32[16,16,8]{2,1,0:T(8,128)}', space=vmem, size = 0x20000, scoped, tag = 'scratch operand']
  #allocation7 [shape = 'f32[8,16,8]{2,1,0:T(8,128)}', space=vmem, size = 0x10000, scoped, tag = 'scratch operand']
  %s0 = inlined_call_operand.vmem [shape: f32[2,16,16,4], index: 0, kind: input, shape index: {}]
  %s1 = inlined_call_operand.vmem [shape: f32[36,8], index: 1, kind: input, shape index: {}]
  %s2 = inlined_call_operand.vmem [shape: f32[1,8], index: 2, kind: input, shape index: {}]
  %s3 = inlined_call_operand.vmem [shape: f32[72,16], index: 3, kind: input, shape index: {}]
  %s4 = inlined_call_operand.vmem [shape: f32[1,16], index: 4, kind: input, shape index: {}]
  %s5 = inlined_call_operand.vmem [shape: f32[2,256,8], index: 5, kind: output, shape index: {0}]
  %s6 = inlined_call_operand.vmem [shape: f32[2,64,16], index: 6, kind: output, shape index: {1}]
  %7 = xla_tuple %s5, %s6
  %s8 = sld [smem:[#allocation0]]
  $region61: #{tpu_custom_call.1} parent=0
    _
  %s10 = ssub.s32 1, %s8
  %s11 = scalar_select 0, %s10, %s8
  loop: start=0, step=1, limit=4
  $region2: #{tpu_custom_call.1} parent=0 // loop_pre_header
    _
  $region3: #{tpu_custom_call.1} parent=0 // loop_header
    %s13 = sphi 0, %s17
    %p14 = scmp.ge.s32.totalorder %s13, 4
    %s23 = sphi 0, %s25
    %s26 = sphi 0, %s23
    %s27 = sphi 0, %s26
    %s43 = sphi 0, %s27
    %s47 = sphi 0, %s47
    %s49 = sphi 0, %s47
    %s50 = sphi 0, %s49
    %s64 = sphi 0, %s50
    %s68 = sphi 0, %s68
    %s70 = sphi 0, %s68
    %s71 = sphi 0, %s70
    %s85 = sphi 0, %s71
    %s89 = sphi 0, %s89
    %s91 = sphi 0, %s89
    %s92 = sphi 0, %s91
    %s106 = sphi 0, %s92
    %s110 = sphi 0, %s110
    %s112 = sphi 0, %s110
    %s113 = sphi 0, %s112
    %s127 = sphi 0, %s113
    %s133 = sphi 0, %s135
    %s136 = sphi 0, %s133
    %s137 = sphi 0, %s136
    %s153 = sphi 0, %s137
    %s159 = sphi 0, %s161
    %s162 = sphi 0, %s159
    %s163 = sphi 0, %s162
    %s179 = sphi 0, %s163
  $region4: #{tpu_custom_call.1} parent=0 // loop_header_branch
    %16 = sbr.rel (%p14) target = $region8
  $region5: #{tpu_custom_call.1} parent=0 // loop_body
    %s18 = ssub.s32 %s13, 1
    %s19 = ssub.s32 %s13, 2
    %s20 = sadd.s32 %s13, 1
    %s21 = ssub.s32 %s13, %s20
    %p22 = scmp.eq.s32.totalorder %s21, 0
    %s24 = sadd.s32 %s23, 1
    %s25 = scalar_select %p22, %s23, %s24
    %p28 = pneg %p22
    %p29 = scmp.eq.s32.totalorder %s13, 1
    %p30 = por %p28, %p29
    %p31 = scmp.ne.s32.totalorder %s23, %s26
    %p32 = scmp.eq.s32.totalorder %s13, 0
    %p33 = por %p31, %p32
    %p34 = scmp.ne.s32.totalorder %s23, %s26
    %p35 = scmp.eq.s32.totalorder %s18, 1
    %p36 = por %p34, %p35
    %p37 = scmp.ne.s32.totalorder %s26, %s27
    %p38 = scmp.eq.s32.totalorder %s18, 0
    %p39 = por %p37, %p38
    %p40 = scmp.ne.s32.totalorder %s26, %s27
    %p41 = scmp.eq.s32.totalorder %s19, 1
    %p42 = por %p40, %p41
    %p44 = scmp.ne.s32.totalorder %s27, %s43
    %p45 = scmp.eq.s32.totalorder %s19, 0
    %p46 = por %p44, %p45
    %s48 = sadd.s32 %s47, 1
    %p51 = scmp.eq.s32.totalorder %s13, 1
    %p52 = scmp.ne.s32.totalorder %s47, %s49
    %p53 = scmp.eq.s32.totalorder %s13, 0
    %p54 = por %p52, %p53
    %p55 = scmp.ne.s32.totalorder %s47, %s49
    %p56 = scmp.eq.s32.totalorder %s18, 1
    %p57 = por %p55, %p56
    %p58 = scmp.ne.s32.totalorder %s49, %s50
    %p59 = scmp.eq.s32.totalorder %s18, 0
    %p60 = por %p58, %p59
    %p61 = scmp.ne.s32.totalorder %s49, %s50
    %p62 = scmp.eq.s32.totalorder %s19, 1
    %p63 = por %p61, %p62
    %p65 = scmp.ne.s32.totalorder %s50, %s64
    %p66 = scmp.eq.s32.totalorder %s19, 0
    %p67 = por %p65, %p66
    %s69 = sadd.s32 %s68, 1
    %p72 = scmp.eq.s32.totalorder %s13, 1
    %p73 = scmp.ne.s32.totalorder %s68, %s70
    %p74 = scmp.eq.s32.totalorder %s13, 0
    %p75 = por %p73, %p74
    %p76 = scmp.ne.s32.totalorder %s68, %s70
    %p77 = scmp.eq.s32.totalorder %s18, 1
    %p78 = por %p76, %p77
    %p79 = scmp.ne.s32.totalorder %s70, %s71
    %p80 = scmp.eq.s32.totalorder %s18, 0
    %p81 = por %p79, %p80
    %p82 = scmp.ne.s32.totalorder %s70, %s71
    %p83 = scmp.eq.s32.totalorder %s19, 1
    %p84 = por %p82, %p83
    %p86 = scmp.ne.s32.totalorder %s71, %s85
    %p87 = scmp.eq.s32.totalorder %s19, 0
    %p88 = por %p86, %p87
    %s90 = sadd.s32 %s89, 1
    %p93 = scmp.eq.s32.totalorder %s13, 1
    %p94 = scmp.ne.s32.totalorder %s89, %s91
    %p95 = scmp.eq.s32.totalorder %s13, 0
    %p96 = por %p94, %p95
    %p97 = scmp.ne.s32.totalorder %s89, %s91
    %p98 = scmp.eq.s32.totalorder %s18, 1
    %p99 = por %p97, %p98
    %p100 = scmp.ne.s32.totalorder %s91, %s92
    %p101 = scmp.eq.s32.totalorder %s18, 0
    %p102 = por %p100, %p101
    %p103 = scmp.ne.s32.totalorder %s91, %s92
    %p104 = scmp.eq.s32.totalorder %s19, 1
    %p105 = por %p103, %p104
    %p107 = scmp.ne.s32.totalorder %s92, %s106
    %p108 = scmp.eq.s32.totalorder %s19, 0
    %p109 = por %p107, %p108
    %s111 = sadd.s32 %s110, 1
    %p114 = scmp.eq.s32.totalorder %s13, 1
    %p115 = scmp.ne.s32.totalorder %s110, %s112
    %p116 = scmp.eq.s32.totalorder %s13, 0
    %p117 = por %p115, %p116
    %p118 = scmp.ne.s32.totalorder %s110, %s112
    %p119 = scmp.eq.s32.totalorder %s18, 1
    %p120 = por %p118, %p119
    %p121 = scmp.ne.s32.totalorder %s112, %s113
    %p122 = scmp.eq.s32.totalorder %s18, 0
    %p123 = por %p121, %p122
    %p124 = scmp.ne.s32.totalorder %s112, %s113
    %p125 = scmp.eq.s32.totalorder %s19, 1
    %p126 = por %p124, %p125
    %p128 = scmp.ne.s32.totalorder %s113, %s127
    %p129 = scmp.eq.s32.totalorder %s19, 0
    %p130 = por %p128, %p129
    %s131 = ssub.s32 %s13, %s20
    %p132 = scmp.eq.s32.totalorder %s131, 0
    %s134 = sadd.s32 %s133, 1
    %s135 = scalar_select %p132, %s133, %s134
    %p138 = pneg %p132
    %p139 = scmp.eq.s32.totalorder %s13, 1
    %p140 = por %p138, %p139
    %p141 = scmp.ne.s32.totalorder %s133, %s136
    %p142 = scmp.eq.s32.totalorder %s13, 0
    %p143 = por %p141, %p142
    %p144 = scmp.ne.s32.totalorder %s133, %s136
    %p145 = scmp.eq.s32.totalorder %s18, 1
    %p146 = por %p144, %p145
    %p147 = scmp.ne.s32.totalorder %s136, %s137
    %p148 = scmp.eq.s32.totalorder %s18, 0
    %p149 = por %p147, %p148
    %p150 = scmp.ne.s32.totalorder %s136, %s137
    %p151 = scmp.eq.s32.totalorder %s19, 1
    %p152 = por %p150, %p151
    %p154 = scmp.ne.s32.totalorder %s137, %s153
    %p155 = scmp.eq.s32.totalorder %s19, 0
    %p156 = por %p154, %p155
    %s157 = ssub.s32 %s13, %s20
    %p158 = scmp.eq.s32.totalorder %s157, 0
    %s160 = sadd.s32 %s159, 1
    %s161 = scalar_select %p158, %s159, %s160
    %p164 = pneg %p158
    %p165 = scmp.eq.s32.totalorder %s13, 1
    %p166 = por %p164, %p165
    %p167 = scmp.ne.s32.totalorder %s159, %s162
    %p168 = scmp.eq.s32.totalorder %s13, 0
    %p169 = por %p167, %p168
    %p170 = scmp.ne.s32.totalorder %s159, %s162
    %p171 = scmp.eq.s32.totalorder %s18, 1
    %p172 = por %p170, %p171
    %p173 = scmp.ne.s32.totalorder %s162, %s163
    %p174 = scmp.eq.s32.totalorder %s18, 0
    %p175 = por %p173, %p174
    %p176 = scmp.ne.s32.totalorder %s162, %s163
    %p177 = scmp.eq.s32.totalorder %s19, 1
    %p178 = por %p176, %p177
    %p180 = scmp.ne.s32.totalorder %s163, %s179
    %p181 = scmp.eq.s32.totalorder %s19, 0
    %p182 = por %p180, %p181
    %p183 = scmp.le.s32.totalorder 1, %s13
    %p184 = scmp.lt.s32.totalorder %s13, 3
    %p185 = pnand %p183, %p184
    %p186 = pneg %p185
    // Predicated region
    $region9: #{tpu_custom_call.1} parent=5 // pred_check
      _
    $region10: #{tpu_custom_call.1} parent=5 // pred_check_branch
      %188 = sbr.rel (%p185) target = $region12
    $region11: #{tpu_custom_call.1} parent=5 // pred_region
      %s189 = ssub.s32 %s13, 1
      // Predicated region
      $region13: #{tpu_custom_call.1} parent=11 // pred_check
        %p190 = pneg %p60
      $region14: #{tpu_custom_call.1} parent=11 // pred_check_branch
        %192 = sbr.rel (%p190) target = $region16
      $region15: #{tpu_custom_call.1} parent=11 // pred_region
        _
      $region16: #{tpu_custom_call.1} parent=11 // pred_fallthru
        _
      // Predicated region
      $region17: #{tpu_custom_call.1} parent=11 // pred_check
        %p193 = pneg %p81
      $region18: #{tpu_custom_call.1} parent=11 // pred_check_branch
        %195 = sbr.rel (%p193) target = $region20
      $region19: #{tpu_custom_call.1} parent=11 // pred_region
        _
      $region20: #{tpu_custom_call.1} parent=11 // pred_fallthru
        _
      // Predicated region
      $region21: #{tpu_custom_call.1} parent=11 // pred_check
        %p196 = pneg %p102
      $region22: #{tpu_custom_call.1} parent=11 // pred_check_branch
        %198 = sbr.rel (%p196) target = $region24
      $region23: #{tpu_custom_call.1} parent=11 // pred_region
        _
      $region24: #{tpu_custom_call.1} parent=11 // pred_fallthru
        _
      // Predicated region
      $region25: #{tpu_custom_call.1} parent=11 // pred_check
        %p199 = pneg %p123
      $region26: #{tpu_custom_call.1} parent=11 // pred_check_branch
        %201 = sbr.rel (%p199) target = $region28
      $region27: #{tpu_custom_call.1} parent=11 // pred_region
        _
      $region28: #{tpu_custom_call.1} parent=11 // pred_fallthru
        _
    $region12: #{tpu_custom_call.1} parent=5 // pred_fallthru
      _
    %p202 = scmp.lt.s32.totalorder %s13, 2
    // Predicated region
    $region29: #{tpu_custom_call.1} parent=5 // pred_check
      %p203 = pneg %p202
    $region30: #{tpu_custom_call.1} parent=5 // pred_check_branch
      %205 = sbr.rel (%p203) target = $region32
    $region31: #{tpu_custom_call.1} parent=5 // pred_region
      // Predicated region
      $region33: #{tpu_custom_call.1} parent=31 // pred_check
        %p206 = pneg %p33
      $region34: #{tpu_custom_call.1} parent=31 // pred_check_branch
        %208 = sbr.rel (%p206) target = $region36
      $region35: #{tpu_custom_call.1} parent=31 // pred_region
        %p209 = scmp.lt.s32.totalorder %s13, 1
        %s210 = scalar_select %p209, %s13, 1
        %s211 = smul.addr %s210, 32
        %s212 = smul.addr %s211, 8
        %s213 = scalar_lea.vmem %s0, %s212
      $region36: #{tpu_custom_call.1} parent=31 // pred_fallthru
        _
    $region32: #{tpu_custom_call.1} parent=5 // pred_fallthru
      _
    %p214 = scmp.le.s32.totalorder 1, %s13
    %p215 = scmp.lt.s32.totalorder %s13, 3
    %p216 = pnand %p214, %p215
    %p217 = pneg %p216
    // Predicated region
    $region37: #{tpu_custom_call.1} parent=5 // pred_check
      _
    $region38: #{tpu_custom_call.1} parent=5 // pred_check_branch
      %219 = sbr.rel (%p216) target = $region40
    $region39: #{tpu_custom_call.1} parent=5 // pred_region
      %s220 = ssub.s32 %s13, 1
      %p221 = scmp.lt.s32.totalorder %s18, 1
      %s222 = scalar_select %p221, %s18, 1
      %s223 = smul.addr %s222, 32
      %s224 = smul.addr %s223, 8
      %s225 = scalar_lea.vmem %s0, %s224
      %p226 = pneg %p39
      %p227 = pneg %p36
      %p228 = pneg %p60
      %p229 = pneg %p57
      %p230 = pneg %p81
      %p231 = pneg %p78
      %p232 = pneg %p102
      %p233 = pneg %p99
      %p234 = pneg %p123
      %p235 = pneg %p120
      %p236 = pneg %p149
      %p237 = pneg %p146
      %p238 = scmp.lt.s32.totalorder %s18, 1
      %s239 = scalar_select %p238, %s18, 1
      %s240 = smul.addr %s239, 32
      %s241 = smul.addr %s240, 8
      %s242 = scalar_lea.vmem %s5, %s241
      %p243 = pneg %p175
      %p244 = pneg %p172
      %p245 = scmp.lt.s32.totalorder %s18, 1
      %s246 = scalar_select %p245, %s18, 1
      %s247 = smul.addr %s246, 8
      %s248 = smul.addr %s247, 8
      %s249 = scalar_lea.vmem %s6, %s248
      %p250 = scmp.lt.s32.totalorder %s18, 1
      %s251 = scalar_select %p250, %s18, 1
      %s252 = smul.addr %s251, 32
      %s253 = smul.addr %s252, 8
      %s254 = scalar_lea.vmem %s0, %s253
      %p255 = scmp.lt.s32.totalorder %s18, 1
      %s256 = scalar_select %p255, %s18, 1
      %s257 = smul.addr %s256, 32
      %s258 = smul.addr %s257, 8
      %s259 = scalar_lea.vmem %s5, %s258
      %p260 = scmp.lt.s32.totalorder %s18, 1
      %s261 = scalar_select %p260, %s18, 1
      %s262 = smul.addr %s261, 8
      %s263 = smul.addr %s262, 8
      %s264 = scalar_lea.vmem %s6, %s263
      %v265 = vld [vmem:[%s254] sm:$0xff]
      %v266 = vld [vmem:[%s254 + $0x8] sm:$0xff]
      %v267 = vld [vmem:[%s254 + $0x10] sm:$0xff]
      %v268 = vld [vmem:[%s254 + $0x18] sm:$0xff]
      %v269 = vld [vmem:[%s254 + $0x20] sm:$0xff]
      %v270 = vld [vmem:[%s254 + $0x28] sm:$0xff]
      %v271 = vld [vmem:[%s254 + $0x30] sm:$0xff]
      %v272 = vld [vmem:[%s254 + $0x38] sm:$0xff]
      %v273 = vld [vmem:[%s254 + $0x40] sm:$0xff]
      %v274 = vld [vmem:[%s254 + $0x48] sm:$0xff]
      %v275 = vld [vmem:[%s254 + $0x50] sm:$0xff]
      %v276 = vld [vmem:[%s254 + $0x58] sm:$0xff]
      %v277 = vld [vmem:[%s254 + $0x60] sm:$0xff]
      %v278 = vld [vmem:[%s254 + $0x68] sm:$0xff]
      %v279 = vld [vmem:[%s254 + $0x70] sm:$0xff]
      %v280 = vld [vmem:[%s254 + $0x78] sm:$0xff]
      %v281 = vld [vmem:[%s254 + $0x80] sm:$0xff]
      %v282 = vld [vmem:[%s254 + $0x88] sm:$0xff]
      %v283 = vld [vmem:[%s254 + $0x90] sm:$0xff]
      %v284 = vld [vmem:[%s254 + $0x98] sm:$0xff]
      %v285 = vld [vmem:[%s254 + $0xa0] sm:$0xff]
      %v286 = vld [vmem:[%s254 + $0xa8] sm:$0xff]
      %v287 = vld [vmem:[%s254 + $0xb0] sm:$0xff]
      %v288 = vld [vmem:[%s254 + $0xb8] sm:$0xff]
      %v289 = vld [vmem:[%s254 + $0xc0] sm:$0xff]
      %v290 = vld [vmem:[%s254 + $0xc8] sm:$0xff]
      %v291 = vld [vmem:[%s254 + $0xd0] sm:$0xff]
      %v292 = vld [vmem:[%s254 + $0xd8] sm:$0xff]
      %v293 = vld [vmem:[%s254 + $0xe0] sm:$0xff]
      %v294 = vld [vmem:[%s254 + $0xe8] sm:$0xff]
      %v295 = vld [vmem:[%s254 + $0xf0] sm:$0xff]
      %v296 = vld [vmem:[%s254 + $0xf8] sm:$0xff]
      %vm297 = vcmask 31744
      %298 = vst.msk [vmem:[#allocation2] sm:$0xff] %vm297, 0.0
      %299 = vst.msk [vmem:[#allocation2 + $0x8] sm:$0xff] %vm297, 0.0
      %vm300 = vcmask 25600
      %301 = vst.msk [vmem:[#allocation2 + $0x10] sm:$0x3] %vm300, 0.0
      %302 = vst.msk [vmem:[#allocation2 + $0x18] sm:$0xff] %vm297, 0.0
      %303 = vst.msk [vmem:[#allocation2 + $0x20] sm:$0xff] %vm297, 0.0
      %304 = vst.msk [vmem:[#allocation2 + $0x28] sm:$0x3] %vm300, 0.0
      %305 = vst.msk [vmem:[#allocation2 + $0x30] sm:$0xff] %vm297, 0.0
      %306 = vst.msk [vmem:[#allocation2 + $0x38] sm:$0xff] %vm297, 0.0
      %307 = vst.msk [vmem:[#allocation2 + $0x40] sm:$0x3] %vm300, 0.0
      %308 = vst.msk [vmem:[#allocation2 + $0x48] sm:$0xff] %vm297, 0.0
      %309 = vst.msk [vmem:[#allocation2 + $0x50] sm:$0xff] %vm297, 0.0
      %310 = vst.msk [vmem:[#allocation2 + $0x58] sm:$0x3] %vm300, 0.0
      %311 = vst.msk [vmem:[#allocation2 + $0x60] sm:$0xff] %vm297, 0.0
      %312 = vst.msk [vmem:[#allocation2 + $0x68] sm:$0xff] %vm297, 0.0
      %313 = vst.msk [vmem:[#allocation2 + $0x70] sm:$0x3] %vm300, 0.0
      %314 = vst.msk [vmem:[#allocation2 + $0x78] sm:$0xff] %vm297, 0.0
      %315 = vst.msk [vmem:[#allocation2 + $0x80] sm:$0xff] %vm297, 0.0
      %316 = vst.msk [vmem:[#allocation2 + $0x88] sm:$0x3] %vm300, 0.0
      %317 = vst.msk [vmem:[#allocation2 + $0x90] sm:$0xff] %vm297, 0.0
      %318 = vst.msk [vmem:[#allocation2 + $0x98] sm:$0xff] %vm297, 0.0
      %319 = vst.msk [vmem:[#allocation2 + $0xa0] sm:$0x3] %vm300, 0.0
      %320 = vst.msk [vmem:[#allocation2 + $0xa8] sm:$0xff] %vm297, 0.0
      %321 = vst.msk [vmem:[#allocation2 + $0xb0] sm:$0xff] %vm297, 0.0
      %322 = vst.msk [vmem:[#allocation2 + $0xb8] sm:$0x3] %vm300, 0.0
      %323 = vst.msk [vmem:[#allocation2 + $0xc0] sm:$0xff] %vm297, 0.0
      %324 = vst.msk [vmem:[#allocation2 + $0xc8] sm:$0xff] %vm297, 0.0
      %325 = vst.msk [vmem:[#allocation2 + $0xd0] sm:$0x3] %vm300, 0.0
      %326 = vst.msk [vmem:[#allocation2 + $0xd8] sm:$0xff] %vm297, 0.0
      %327 = vst.msk [vmem:[#allocation2 + $0xe0] sm:$0xff] %vm297, 0.0
      %328 = vst.msk [vmem:[#allocation2 + $0xe8] sm:$0x3] %vm300, 0.0
      %329 = vst.msk [vmem:[#allocation2 + $0xf0] sm:$0xff] %vm297, 0.0
      %330 = vst.msk [vmem:[#allocation2 + $0xf8] sm:$0xff] %vm297, 0.0
      %331 = vst.msk [vmem:[#allocation2 + $0x100] sm:$0x3] %vm300, 0.0
      %332 = vst.msk [vmem:[#allocation2 + $0x108] sm:$0xff] %vm297, 0.0
      %333 = vst.msk [vmem:[#allocation2 + $0x110] sm:$0xff] %vm297, 0.0
      %334 = vst.msk [vmem:[#allocation2 + $0x118] sm:$0x3] %vm300, 0.0
      %335 = vst.msk [vmem:[#allocation2 + $0x120] sm:$0xff] %vm297, 0.0
      %336 = vst.msk [vmem:[#allocation2 + $0x128] sm:$0xff] %vm297, 0.0
      %337 = vst.msk [vmem:[#allocation2 + $0x130] sm:$0x3] %vm300, 0.0
      %338 = vst.msk [vmem:[#allocation2 + $0x138] sm:$0xff] %vm297, 0.0
      %339 = vst.msk [vmem:[#allocation2 + $0x140] sm:$0xff] %vm297, 0.0
      %340 = vst.msk [vmem:[#allocation2 + $0x148] sm:$0x3] %vm300, 0.0
      %341 = vst.msk [vmem:[#allocation2 + $0x150] sm:$0xff] %vm297, 0.0
      %342 = vst.msk [vmem:[#allocation2 + $0x158] sm:$0xff] %vm297, 0.0
      %343 = vst.msk [vmem:[#allocation2 + $0x160] sm:$0x3] %vm300, 0.0
      %344 = vst.msk [vmem:[#allocation2 + $0x168] sm:$0xff] %vm297, 0.0
      %345 = vst.msk [vmem:[#allocation2 + $0x170] sm:$0xff] %vm297, 0.0
      %346 = vst.msk [vmem:[#allocation2 + $0x178] sm:$0x3] %vm300, 0.0
      %347 = vst.msk [vmem:[#allocation2 + $0x180] sm:$0xff] %vm297, 0.0
      %348 = vst.msk [vmem:[#allocation2 + $0x188] sm:$0xff] %vm297, 0.0
      %349 = vst.msk [vmem:[#allocation2 + $0x190] sm:$0x3] %vm300, 0.0
      %350 = vst.msk [vmem:[#allocation2 + $0x198] sm:$0xff] %vm297, 0.0
      %351 = vst.msk [vmem:[#allocation2 + $0x1a0] sm:$0xff] %vm297, 0.0
      %352 = vst.msk [vmem:[#allocation2 + $0x1a8] sm:$0x3] %vm300, 0.0
      %s353 = scalar_lea.vmem [#allocation2], 24
      %354 = vst.msk [vmem:[%s353 + $0x1] sm:$0xff] %vm297, %v265
      %355 = vst.msk [vmem:[%s353 + $0x9] sm:$0xff] %vm297, %v266
      %356 = vst.msk [vmem:[%s353 + $0x19] sm:$0xff] %vm297, %v267
      %357 = vst.msk [vmem:[%s353 + $0x21] sm:$0xff] %vm297, %v268
      %358 = vst.msk [vmem:[%s353 + $0x31] sm:$0xff] %vm297, %v269
      %359 = vst.msk [vmem:[%s353 + $0x39] sm:$0xff] %vm297, %v270
      %360 = vst.msk [vmem:[%s353 + $0x49] sm:$0xff] %vm297, %v271
      %361 = vst.msk [vmem:[%s353 + $0x51] sm:$0xff] %vm297, %v272
      %362 = vst.msk [vmem:[%s353 + $0x61] sm:$0xff] %vm297, %v273
      %363 = vst.msk [vmem:[%s353 + $0x69] sm:$0xff] %vm297, %v274
      %364 = vst.msk [vmem:[%s353 + $0x79] sm:$0xff] %vm297, %v275
      %365 = vst.msk [vmem:[%s353 + $0x81] sm:$0xff] %vm297, %v276
      %366 = vst.msk [vmem:[%s353 + $0x91] sm:$0xff] %vm297, %v277
      %367 = vst.msk [vmem:[%s353 + $0x99] sm:$0xff] %vm297, %v278
      %368 = vst.msk [vmem:[%s353 + $0xa9] sm:$0xff] %vm297, %v279
      %369 = vst.msk [vmem:[%s353 + $0xb1] sm:$0xff] %vm297, %v280
      %370 = vst.msk [vmem:[%s353 + $0xc1] sm:$0xff] %vm297, %v281
      %371 = vst.msk [vmem:[%s353 + $0xc9] sm:$0xff] %vm297, %v282
      %372 = vst.msk [vmem:[%s353 + $0xd9] sm:$0xff] %vm297, %v283
      %373 = vst.msk [vmem:[%s353 + $0xe1] sm:$0xff] %vm297, %v284
      %374 = vst.msk [vmem:[%s353 + $0xf1] sm:$0xff] %vm297, %v285
      %375 = vst.msk [vmem:[%s353 + $0xf9] sm:$0xff] %vm297, %v286
      %376 = vst.msk [vmem:[%s353 + $0x109] sm:$0xff] %vm297, %v287
      %377 = vst.msk [vmem:[%s353 + $0x111] sm:$0xff] %vm297, %v288
      %378 = vst.msk [vmem:[%s353 + $0x121] sm:$0xff] %vm297, %v289
      %379 = vst.msk [vmem:[%s353 + $0x129] sm:$0xff] %vm297, %v290
      %380 = vst.msk [vmem:[%s353 + $0x139] sm:$0xff] %vm297, %v291
      %381 = vst.msk [vmem:[%s353 + $0x141] sm:$0xff] %vm297, %v292
      %382 = vst.msk [vmem:[%s353 + $0x151] sm:$0xff] %vm297, %v293
      %383 = vst.msk [vmem:[%s353 + $0x159] sm:$0xff] %vm297, %v294
      %384 = vst.msk [vmem:[%s353 + $0x169] sm:$0xff] %vm297, %v295
      %385 = vst.msk [vmem:[%s353 + $0x171] sm:$0xff] %vm297, %v296
      %v386 = vld [vmem:[#allocation2] sm:$0xff]
      %v387 = vld [vmem:[#allocation2 + $0x8] sm:$0xff]
      %v388 = vld [vmem:[#allocation2 + $0x18] sm:$0xff]
      %v389 = vld [vmem:[#allocation2 + $0x20] sm:$0xff]
      %v390 = vld [vmem:[#allocation2 + $0x30] sm:$0xff]
      %v391 = vld [vmem:[#allocation2 + $0x38] sm:$0xff]
      %v392 = vld [vmem:[#allocation2 + $0x48] sm:$0xff]
      %v393 = vld [vmem:[#allocation2 + $0x50] sm:$0xff]
      %v394 = vld [vmem:[#allocation2 + $0x60] sm:$0xff]
      %v395 = vld [vmem:[#allocation2 + $0x68] sm:$0xff]
      %v396 = vld [vmem:[#allocation2 + $0x78] sm:$0xff]
      %v397 = vld [vmem:[#allocation2 + $0x80] sm:$0xff]
      %v398 = vld [vmem:[#allocation2 + $0x90] sm:$0xff]
      %v399 = vld [vmem:[#allocation2 + $0x98] sm:$0xff]
      %v400 = vld [vmem:[#allocation2 + $0xa8] sm:$0xff]
      %v401 = vld [vmem:[#allocation2 + $0xb0] sm:$0xff]
      %v402 = vld [vmem:[#allocation2 + $0xc0] sm:$0xff]
      %v403 = vld [vmem:[#allocation2 + $0xc8] sm:$0xff]
      %v404 = vld [vmem:[#allocation2 + $0xd8] sm:$0xff]
      %v405 = vld [vmem:[#allocation2 + $0xe0] sm:$0xff]
      %v406 = vld [vmem:[#allocation2 + $0xf0] sm:$0xff]
      %v407 = vld [vmem:[#allocation2 + $0xf8] sm:$0xff]
      %v408 = vld [vmem:[#allocation2 + $0x108] sm:$0xff]
      %v409 = vld [vmem:[#allocation2 + $0x110] sm:$0xff]
      %v410 = vld [vmem:[#allocation2 + $0x120] sm:$0xff]
      %v411 = vld [vmem:[#allocation2 + $0x128] sm:$0xff]
      %v412 = vld [vmem:[#allocation2 + $0x138] sm:$0xff]
      %v413 = vld [vmem:[#allocation2 + $0x140] sm:$0xff]
      %v414 = vld [vmem:[#allocation2 + $0x150] sm:$0xff]
      %v415 = vld [vmem:[#allocation2 + $0x158] sm:$0xff]
      %v416 = vld [vmem:[#allocation2 + $0x168] sm:$0xff]
      %v417 = vld [vmem:[#allocation2 + $0x170] sm:$0xff]
      %418 = vst.msk [vmem:[#allocation3] sm:$0xff] %vm297, %v386
      %419 = vst.msk [vmem:[#allocation3 + $0x8] sm:$0xff] %vm297, %v387
      %420 = vst.msk [vmem:[#allocation3 + $0x10] sm:$0xff] %vm297, %v388
      %421 = vst.msk [vmem:[#allocation3 + $0x18] sm:$0xff] %vm297, %v389
      %422 = vst.msk [vmem:[#allocation3 + $0x20] sm:$0xff] %vm297, %v390
      %423 = vst.msk [vmem:[#allocation3 + $0x28] sm:$0xff] %vm297, %v391
      %424 = vst.msk [vmem:[#allocation3 + $0x30] sm:$0xff] %vm297, %v392
      %425 = vst.msk [vmem:[#allocation3 + $0x38] sm:$0xff] %vm297, %v393
      %426 = vst.msk [vmem:[#allocation3 + $0x40] sm:$0xff] %vm297, %v394
      %427 = vst.msk [vmem:[#allocation3 + $0x48] sm:$0xff] %vm297, %v395
      %428 = vst.msk [vmem:[#allocation3 + $0x50] sm:$0xff] %vm297, %v396
      %429 = vst.msk [vmem:[#allocation3 + $0x58] sm:$0xff] %vm297, %v397
      %430 = vst.msk [vmem:[#allocation3 + $0x60] sm:$0xff] %vm297, %v398
      %431 = vst.msk [vmem:[#allocation3 + $0x68] sm:$0xff] %vm297, %v399
      %432 = vst.msk [vmem:[#allocation3 + $0x70] sm:$0xff] %vm297, %v400
      %433 = vst.msk [vmem:[#allocation3 + $0x78] sm:$0xff] %vm297, %v401
      %434 = vst.msk [vmem:[#allocation3 + $0x80] sm:$0xff] %vm297, %v402
      %435 = vst.msk [vmem:[#allocation3 + $0x88] sm:$0xff] %vm297, %v403
      %436 = vst.msk [vmem:[#allocation3 + $0x90] sm:$0xff] %vm297, %v404
      %437 = vst.msk [vmem:[#allocation3 + $0x98] sm:$0xff] %vm297, %v405
      %438 = vst.msk [vmem:[#allocation3 + $0xa0] sm:$0xff] %vm297, %v406
      %439 = vst.msk [vmem:[#allocation3 + $0xa8] sm:$0xff] %vm297, %v407
      %440 = vst.msk [vmem:[#allocation3 + $0xb0] sm:$0xff] %vm297, %v408
      %441 = vst.msk [vmem:[#allocation3 + $0xb8] sm:$0xff] %vm297, %v409
      %442 = vst.msk [vmem:[#allocation3 + $0xc0] sm:$0xff] %vm297, %v410
      %443 = vst.msk [vmem:[#allocation3 + $0xc8] sm:$0xff] %vm297, %v411
      %444 = vst.msk [vmem:[#allocation3 + $0xd0] sm:$0xff] %vm297, %v412
      %445 = vst.msk [vmem:[#allocation3 + $0xd8] sm:$0xff] %vm297, %v413
      %446 = vst.msk [vmem:[#allocation3 + $0xe0] sm:$0xff] %vm297, %v414
      %447 = vst.msk [vmem:[#allocation3 + $0xe8] sm:$0xff] %vm297, %v415
      %448 = vst.msk [vmem:[#allocation3 + $0xf0] sm:$0xff] %vm297, %v416
      %449 = vst.msk [vmem:[#allocation3 + $0xf8] sm:$0xff] %vm297, %v417
      %v450 = vld [vmem:[#allocation2 + $0x1] sm:$0xff]
      %v451 = vld [vmem:[#allocation2 + $0x9] sm:$0xff]
      %v452 = vld [vmem:[#allocation2 + $0x19] sm:$0xff]
      %v453 = vld [vmem:[#allocation2 + $0x21] sm:$0xff]
      %v454 = vld [vmem:[#allocation2 + $0x31] sm:$0xff]
      %v455 = vld [vmem:[#allocation2 + $0x39] sm:$0xff]
      %v456 = vld [vmem:[#allocation2 + $0x49] sm:$0xff]
      %v457 = vld [vmem:[#allocation2 + $0x51] sm:$0xff]
      %v458 = vld [vmem:[#allocation2 + $0x61] sm:$0xff]
      %v459 = vld [vmem:[#allocation2 + $0x69] sm:$0xff]
      %v460 = vld [vmem:[#allocation2 + $0x79] sm:$0xff]
      %v461 = vld [vmem:[#allocation2 + $0x81] sm:$0xff]
      %v462 = vld [vmem:[#allocation2 + $0x91] sm:$0xff]
      %v463 = vld [vmem:[#allocation2 + $0x99] sm:$0xff]
      %v464 = vld [vmem:[#allocation2 + $0xa9] sm:$0xff]
      %v465 = vld [vmem:[#allocation2 + $0xb1] sm:$0xff]
      %v466 = vld [vmem:[#allocation2 + $0xc1] sm:$0xff]
      %v467 = vld [vmem:[#allocation2 + $0xc9] sm:$0xff]
      %v468 = vld [vmem:[#allocation2 + $0xd9] sm:$0xff]
      %v469 = vld [vmem:[#allocation2 + $0xe1] sm:$0xff]
      %v470 = vld [vmem:[#allocation2 + $0xf1] sm:$0xff]
      %v471 = vld [vmem:[#allocation2 + $0xf9] sm:$0xff]
      %v472 = vld [vmem:[#allocation2 + $0x109] sm:$0xff]
      %v473 = vld [vmem:[#allocation2 + $0x111] sm:$0xff]
      %v474 = vld [vmem:[#allocation2 + $0x121] sm:$0xff]
      %v475 = vld [vmem:[#allocation2 + $0x129] sm:$0xff]
      %v476 = vld [vmem:[#allocation2 + $0x139] sm:$0xff]
      %v477 = vld [vmem:[#allocation2 + $0x141] sm:$0xff]
      %v478 = vld [vmem:[#allocation2 + $0x151] sm:$0xff]
      %v479 = vld [vmem:[#allocation2 + $0x159] sm:$0xff]
      %v480 = vld [vmem:[#allocation2 + $0x169] sm:$0xff]
      %v481 = vld [vmem:[#allocation2 + $0x171] sm:$0xff]
      %514 = vrot.lane.b32.xlu0 %v450, 4
      %v515 = vpop.permute.xlu0 %514
      %516 = vrot.lane.b32.xlu0 %v451, 4
      %v517 = vpop.permute.xlu0 %516
      %518 = vrot.lane.b32.xlu0 %v452, 4
      %v519 = vpop.permute.xlu0 %518
      %520 = vrot.lane.b32.xlu0 %v453, 4
      %v521 = vpop.permute.xlu0 %520
      %522 = vrot.lane.b32.xlu0 %v454, 4
      %v523 = vpop.permute.xlu0 %522
      %524 = vrot.lane.b32.xlu0 %v455, 4
      %v525 = vpop.permute.xlu0 %524
      %526 = vrot.lane.b32.xlu0 %v456, 4
      %v527 = vpop.permute.xlu0 %526
      %528 = vrot.lane.b32.xlu0 %v457, 4
      %v529 = vpop.permute.xlu0 %528
      %530 = vrot.lane.b32.xlu0 %v458, 4
      %v531 = vpop.permute.xlu0 %530
      %532 = vrot.lane.b32.xlu0 %v459, 4
      %v533 = vpop.permute.xlu0 %532
      %534 = vrot.lane.b32.xlu0 %v460, 4
      %v535 = vpop.permute.xlu0 %534
      %536 = vrot.lane.b32.xlu0 %v461, 4
      %v537 = vpop.permute.xlu0 %536
      %538 = vrot.lane.b32.xlu0 %v462, 4
      %v539 = vpop.permute.xlu0 %538
      %540 = vrot.lane.b32.xlu0 %v463, 4
      %v541 = vpop.permute.xlu0 %540
      %542 = vrot.lane.b32.xlu0 %v464, 4
      %v543 = vpop.permute.xlu0 %542
      %544 = vrot.lane.b32.xlu0 %v465, 4
      %v545 = vpop.permute.xlu0 %544
      %546 = vrot.lane.b32.xlu0 %v466, 4
      %v547 = vpop.permute.xlu0 %546
      %548 = vrot.lane.b32.xlu0 %v467, 4
      %v549 = vpop.permute.xlu0 %548
      %550 = vrot.lane.b32.xlu0 %v468, 4
      %v551 = vpop.permute.xlu0 %550
      %552 = vrot.lane.b32.xlu0 %v469, 4
      %v553 = vpop.permute.xlu0 %552
      %554 = vrot.lane.b32.xlu0 %v470, 4
      %v555 = vpop.permute.xlu0 %554
      %556 = vrot.lane.b32.xlu0 %v471, 4
      %v557 = vpop.permute.xlu0 %556
      %558 = vrot.lane.b32.xlu0 %v472, 4
      %v559 = vpop.permute.xlu0 %558
      %560 = vrot.lane.b32.xlu0 %v473, 4
      %v561 = vpop.permute.xlu0 %560
      %562 = vrot.lane.b32.xlu0 %v474, 4
      %v563 = vpop.permute.xlu0 %562
      %564 = vrot.lane.b32.xlu0 %v475, 4
      %v565 = vpop.permute.xlu0 %564
      %566 = vrot.lane.b32.xlu0 %v476, 4
      %v567 = vpop.permute.xlu0 %566
      %568 = vrot.lane.b32.xlu0 %v477, 4
      %v569 = vpop.permute.xlu0 %568
      %570 = vrot.lane.b32.xlu0 %v478, 4
      %v571 = vpop.permute.xlu0 %570
      %572 = vrot.lane.b32.xlu0 %v479, 4
      %v573 = vpop.permute.xlu0 %572
      %574 = vrot.lane.b32.xlu0 %v480, 4
      %v575 = vpop.permute.xlu0 %574
      %576 = vrot.lane.b32.xlu0 %v481, 4
      %v577 = vpop.permute.xlu0 %576
      %vm610 = vcmask 64544
      %611 = vst.msk [vmem:[#allocation3] sm:$0xff] %vm610, %v515
      %612 = vst.msk [vmem:[#allocation3 + $0x8] sm:$0xff] %vm610, %v517
      %613 = vst.msk [vmem:[#allocation3 + $0x10] sm:$0xff] %vm610, %v519
      %614 = vst.msk [vmem:[#allocation3 + $0x18] sm:$0xff] %vm610, %v521
      %615 = vst.msk [vmem:[#allocation3 + $0x20] sm:$0xff] %vm610, %v523
      %616 = vst.msk [vmem:[#allocation3 + $0x28] sm:$0xff] %vm610, %v525
      %617 = vst.msk [vmem:[#allocation3 + $0x30] sm:$0xff] %vm610, %v527
      %618 = vst.msk [vmem:[#allocation3 + $0x38] sm:$0xff] %vm610, %v529
      %619 = vst.msk [vmem:[#allocation3 + $0x40] sm:$0xff] %vm610, %v531
      %620 = vst.msk [vmem:[#allocation3 + $0x48] sm:$0xff] %vm610, %v533
      %621 = vst.msk [vmem:[#allocation3 + $0x50] sm:$0xff] %vm610, %v535
      %622 = vst.msk [vmem:[#allocation3 + $0x58] sm:$0xff] %vm610, %v537
      %623 = vst.msk [vmem:[#allocation3 + $0x60] sm:$0xff] %vm610, %v539
      %624 = vst.msk [vmem:[#allocation3 + $0x68] sm:$0xff] %vm610, %v541
      %625 = vst.msk [vmem:[#allocation3 + $0x70] sm:$0xff] %vm610, %v543
      %626 = vst.msk [vmem:[#allocation3 + $0x78] sm:$0xff] %vm610, %v545
      %627 = vst.msk [vmem:[#allocation3 + $0x80] sm:$0xff] %vm610, %v547
      %628 = vst.msk [vmem:[#allocation3 + $0x88] sm:$0xff] %vm610, %v549
      %629 = vst.msk [vmem:[#allocation3 + $0x90] sm:$0xff] %vm610, %v551
      %630 = vst.msk [vmem:[#allocation3 + $0x98] sm:$0xff] %vm610, %v553
      %631 = vst.msk [vmem:[#allocation3 + $0xa0] sm:$0xff] %vm610, %v555
      %632 = vst.msk [vmem:[#allocation3 + $0xa8] sm:$0xff] %vm610, %v557
      %633 = vst.msk [vmem:[#allocation3 + $0xb0] sm:$0xff] %vm610, %v559
      %634 = vst.msk [vmem:[#allocation3 + $0xb8] sm:$0xff] %vm610, %v561
      %635 = vst.msk [vmem:[#allocation3 + $0xc0] sm:$0xff] %vm610, %v563
      %636 = vst.msk [vmem:[#allocation3 + $0xc8] sm:$0xff] %vm610, %v565
      %637 = vst.msk [vmem:[#allocation3 + $0xd0] sm:$0xff] %vm610, %v567
      %638 = vst.msk [vmem:[#allocation3 + $0xd8] sm:$0xff] %vm610, %v569
      %639 = vst.msk [vmem:[#allocation3 + $0xe0] sm:$0xff] %vm610, %v571
      %640 = vst.msk [vmem:[#allocation3 + $0xe8] sm:$0xff] %vm610, %v573
      %641 = vst.msk [vmem:[#allocation3 + $0xf0] sm:$0xff] %vm610, %v575
      %642 = vst.msk [vmem:[#allocation3 + $0xf8] sm:$0xff] %vm610, %v577
      %v643 = vld [vmem:[#allocation2 + $0x2] sm:$0xff]
      %v644 = vld [vmem:[#allocation2 + $0xa] sm:$0xff]
      %v645 = vld [vmem:[#allocation2 + $0x1a] sm:$0xff]
      %v646 = vld [vmem:[#allocation2 + $0x22] sm:$0xff]
      %v647 = vld [vmem:[#allocation2 + $0x32] sm:$0xff]
      %v648 = vld [vmem:[#allocation2 + $0x3a] sm:$0xff]
      %v649 = vld [vmem:[#allocation2 + $0x4a] sm:$0xff]
      %v650 = vld [vmem:[#allocation2 + $0x52] sm:$0xff]
      %v651 = vld [vmem:[#allocation2 + $0x62] sm:$0xff]
      %v652 = vld [vmem:[#allocation2 + $0x6a] sm:$0xff]
      %v653 = vld [vmem:[#allocation2 + $0x7a] sm:$0xff]
      %v654 = vld [vmem:[#allocation2 + $0x82] sm:$0xff]
      %v655 = vld [vmem:[#allocation2 + $0x92] sm:$0xff]
      %v656 = vld [vmem:[#allocation2 + $0x9a] sm:$0xff]
      %v657 = vld [vmem:[#allocation2 + $0xaa] sm:$0xff]
      %v658 = vld [vmem:[#allocation2 + $0xb2] sm:$0xff]
      %v659 = vld [vmem:[#allocation2 + $0xc2] sm:$0xff]
      %v660 = vld [vmem:[#allocation2 + $0xca] sm:$0xff]
      %v661 = vld [vmem:[#allocation2 + $0xda] sm:$0xff]
      %v662 = vld [vmem:[#allocation2 + $0xe2] sm:$0xff]
      %v663 = vld [vmem:[#allocation2 + $0xf2] sm:$0xff]
      %v664 = vld [vmem:[#allocation2 + $0xfa] sm:$0xff]
      %v665 = vld [vmem:[#allocation2 + $0x10a] sm:$0xff]
      %v666 = vld [vmem:[#allocation2 + $0x112] sm:$0xff]
      %v667 = vld [vmem:[#allocation2 + $0x122] sm:$0xff]
      %v668 = vld [vmem:[#allocation2 + $0x12a] sm:$0xff]
      %v669 = vld [vmem:[#allocation2 + $0x13a] sm:$0xff]
      %v670 = vld [vmem:[#allocation2 + $0x142] sm:$0xff]
      %v671 = vld [vmem:[#allocation2 + $0x152] sm:$0xff]
      %v672 = vld [vmem:[#allocation2 + $0x15a] sm:$0xff]
      %v673 = vld [vmem:[#allocation2 + $0x16a] sm:$0xff]
      %v674 = vld [vmem:[#allocation2 + $0x172] sm:$0xff]
      %707 = vrot.lane.b32.xlu0 %v643, 8
      %v708 = vpop.permute.xlu0 %707
      %709 = vrot.lane.b32.xlu0 %v644, 8
      %v710 = vpop.permute.xlu0 %709
      %711 = vrot.lane.b32.xlu0 %v645, 8
      %v712 = vpop.permute.xlu0 %711
      %713 = vrot.lane.b32.xlu0 %v646, 8
      %v714 = vpop.permute.xlu0 %713
      %715 = vrot.lane.b32.xlu0 %v647, 8
      %v716 = vpop.permute.xlu0 %715
      %717 = vrot.lane.b32.xlu0 %v648, 8
      %v718 = vpop.permute.xlu0 %717
      %719 = vrot.lane.b32.xlu0 %v649, 8
      %v720 = vpop.permute.xlu0 %719
      %721 = vrot.lane.b32.xlu0 %v650, 8
      %v722 = vpop.permute.xlu0 %721
      %723 = vrot.lane.b32.xlu0 %v651, 8
      %v724 = vpop.permute.xlu0 %723
      %725 = vrot.lane.b32.xlu0 %v652, 8
      %v726 = vpop.permute.xlu0 %725
      %727 = vrot.lane.b32.xlu0 %v653, 8
      %v728 = vpop.permute.xlu0 %727
      %729 = vrot.lane.b32.xlu0 %v654, 8
      %v730 = vpop.permute.xlu0 %729
      %731 = vrot.lane.b32.xlu0 %v655, 8
      %v732 = vpop.permute.xlu0 %731
      %733 = vrot.lane.b32.xlu0 %v656, 8
      %v734 = vpop.permute.xlu0 %733
      %735 = vrot.lane.b32.xlu0 %v657, 8
      %v736 = vpop.permute.xlu0 %735
      %737 = vrot.lane.b32.xlu0 %v658, 8
      %v738 = vpop.permute.xlu0 %737
      %739 = vrot.lane.b32.xlu0 %v659, 8
      %v740 = vpop.permute.xlu0 %739
      %741 = vrot.lane.b32.xlu0 %v660, 8
      %v742 = vpop.permute.xlu0 %741
      %743 = vrot.lane.b32.xlu0 %v661, 8
      %v744 = vpop.permute.xlu0 %743
      %745 = vrot.lane.b32.xlu0 %v662, 8
      %v746 = vpop.permute.xlu0 %745
      %747 = vrot.lane.b32.xlu0 %v663, 8
      %v748 = vpop.permute.xlu0 %747
      %749 = vrot.lane.b32.xlu0 %v664, 8
      %v750 = vpop.permute.xlu0 %749
      %751 = vrot.lane.b32.xlu0 %v665, 8
      %v752 = vpop.permute.xlu0 %751
      %753 = vrot.lane.b32.xlu0 %v666, 8
      %v754 = vpop.permute.xlu0 %753
      %755 = vrot.lane.b32.xlu0 %v667, 8
      %v756 = vpop.permute.xlu0 %755
      %757 = vrot.lane.b32.xlu0 %v668, 8
      %v758 = vpop.permute.xlu0 %757
      %759 = vrot.lane.b32.xlu0 %v669, 8
      %v760 = vpop.permute.xlu0 %759
      %761 = vrot.lane.b32.xlu0 %v670, 8
      %v762 = vpop.permute.xlu0 %761
      %763 = vrot.lane.b32.xlu0 %v671, 8
      %v764 = vpop.permute.xlu0 %763
      %765 = vrot.lane.b32.xlu0 %v672, 8
      %v766 = vpop.permute.xlu0 %765
      %767 = vrot.lane.b32.xlu0 %v673, 8
      %v768 = vpop.permute.xlu0 %767
      %769 = vrot.lane.b32.xlu0 %v674, 8
      %v770 = vpop.permute.xlu0 %769
      %vm803 = vcmask 97344
      %804 = vst.msk [vmem:[#allocation3] sm:$0xff] %vm803, %v708
      %805 = vst.msk [vmem:[#allocation3 + $0x8] sm:$0xff] %vm803, %v710
      %806 = vst.msk [vmem:[#allocation3 + $0x10] sm:$0xff] %vm803, %v712
      %807 = vst.msk [vmem:[#allocation3 + $0x18] sm:$0xff] %vm803, %v714
      %808 = vst.msk [vmem:[#allocation3 + $0x20] sm:$0xff] %vm803, %v716
      %809 = vst.msk [vmem:[#allocation3 + $0x28] sm:$0xff] %vm803, %v718
      %810 = vst.msk [vmem:[#allocation3 + $0x30] sm:$0xff] %vm803, %v720
      %811 = vst.msk [vmem:[#allocation3 + $0x38] sm:$0xff] %vm803, %v722
      %812 = vst.msk [vmem:[#allocation3 + $0x40] sm:$0xff] %vm803, %v724
      %813 = vst.msk [vmem:[#allocation3 + $0x48] sm:$0xff] %vm803, %v726
      %814 = vst.msk [vmem:[#allocation3 + $0x50] sm:$0xff] %vm803, %v728
      %815 = vst.msk [vmem:[#allocation3 + $0x58] sm:$0xff] %vm803, %v730
      %816 = vst.msk [vmem:[#allocation3 + $0x60] sm:$0xff] %vm803, %v732
      %817 = vst.msk [vmem:[#allocation3 + $0x68] sm:$0xff] %vm803, %v734
      %818 = vst.msk [vmem:[#allocation3 + $0x70] sm:$0xff] %vm803, %v736
      %819 = vst.msk [vmem:[#allocation3 + $0x78] sm:$0xff] %vm803, %v738
      %820 = vst.msk [vmem:[#allocation3 + $0x80] sm:$0xff] %vm803, %v740
      %821 = vst.msk [vmem:[#allocation3 + $0x88] sm:$0xff] %vm803, %v742
      %822 = vst.msk [vmem:[#allocation3 + $0x90] sm:$0xff] %vm803, %v744
      %823 = vst.msk [vmem:[#allocation3 + $0x98] sm:$0xff] %vm803, %v746
      %824 = vst.msk [vmem:[#allocation3 + $0xa0] sm:$0xff] %vm803, %v748
      %825 = vst.msk [vmem:[#allocation3 + $0xa8] sm:$0xff] %vm803, %v750
      %826 = vst.msk [vmem:[#allocation3 + $0xb0] sm:$0xff] %vm803, %v752
      %827 = vst.msk [vmem:[#allocation3 + $0xb8] sm:$0xff] %vm803, %v754
      %828 = vst.msk [vmem:[#allocation3 + $0xc0] sm:$0xff] %vm803, %v756
      %829 = vst.msk [vmem:[#allocation3 + $0xc8] sm:$0xff] %vm803, %v758
      %830 = vst.msk [vmem:[#allocation3 + $0xd0] sm:$0xff] %vm803, %v760
      %831 = vst.msk [vmem:[#allocation3 + $0xd8] sm:$0xff] %vm803, %v762
      %832 = vst.msk [vmem:[#allocation3 + $0xe0] sm:$0xff] %vm803, %v764
      %833 = vst.msk [vmem:[#allocation3 + $0xe8] sm:$0xff] %vm803, %v766
      %834 = vst.msk [vmem:[#allocation3 + $0xf0] sm:$0xff] %vm803, %v768
      %835 = vst.msk [vmem:[#allocation3 + $0xf8] sm:$0xff] %vm803, %v770
      %v836 = vld [vmem:[%s353] sm:$0xff]
      %v837 = vld [vmem:[%s353 + $0x8] sm:$0xff]
      %v838 = vld [vmem:[%s353 + $0x18] sm:$0xff]
      %v839 = vld [vmem:[%s353 + $0x20] sm:$0xff]
      %v840 = vld [vmem:[%s353 + $0x30] sm:$0xff]
      %v841 = vld [vmem:[%s353 + $0x38] sm:$0xff]
      %v842 = vld [vmem:[%s353 + $0x48] sm:$0xff]
      %v843 = vld [vmem:[%s353 + $0x50] sm:$0xff]
      %v844 = vld [vmem:[%s353 + $0x60] sm:$0xff]
      %v845 = vld [vmem:[%s353 + $0x68] sm:$0xff]
      %v846 = vld [vmem:[%s353 + $0x78] sm:$0xff]
      %v847 = vld [vmem:[%s353 + $0x80] sm:$0xff]
      %v848 = vld [vmem:[%s353 + $0x90] sm:$0xff]
      %v849 = vld [vmem:[%s353 + $0x98] sm:$0xff]
      %v850 = vld [vmem:[%s353 + $0xa8] sm:$0xff]
      %v851 = vld [vmem:[%s353 + $0xb0] sm:$0xff]
      %v852 = vld [vmem:[%s353 + $0xc0] sm:$0xff]
      %v853 = vld [vmem:[%s353 + $0xc8] sm:$0xff]
      %v854 = vld [vmem:[%s353 + $0xd8] sm:$0xff]
      %v855 = vld [vmem:[%s353 + $0xe0] sm:$0xff]
      %v856 = vld [vmem:[%s353 + $0xf0] sm:$0xff]
      %v857 = vld [vmem:[%s353 + $0xf8] sm:$0xff]
      %v858 = vld [vmem:[%s353 + $0x108] sm:$0xff]
      %v859 = vld [vmem:[%s353 + $0x110] sm:$0xff]
      %v860 = vld [vmem:[%s353 + $0x120] sm:$0xff]
      %v861 = vld [vmem:[%s353 + $0x128] sm:$0xff]
      %v862 = vld [vmem:[%s353 + $0x138] sm:$0xff]
      %v863 = vld [vmem:[%s353 + $0x140] sm:$0xff]
      %v864 = vld [vmem:[%s353 + $0x150] sm:$0xff]
      %v865 = vld [vmem:[%s353 + $0x158] sm:$0xff]
      %v866 = vld [vmem:[%s353 + $0x168] sm:$0xff]
      %v867 = vld [vmem:[%s353 + $0x170] sm:$0xff]
      %900 = vrot.lane.b32.xlu0 %v836, 12
      %v901 = vpop.permute.xlu0 %900
      %902 = vrot.lane.b32.xlu0 %v837, 12
      %v903 = vpop.permute.xlu0 %902
      %904 = vrot.lane.b32.xlu0 %v838, 12
      %v905 = vpop.permute.xlu0 %904
      %906 = vrot.lane.b32.xlu0 %v839, 12
      %v907 = vpop.permute.xlu0 %906
      %908 = vrot.lane.b32.xlu0 %v840, 12
      %v909 = vpop.permute.xlu0 %908
      %910 = vrot.lane.b32.xlu0 %v841, 12
      %v911 = vpop.permute.xlu0 %910
      %912 = vrot.lane.b32.xlu0 %v842, 12
      %v913 = vpop.permute.xlu0 %912
      %914 = vrot.lane.b32.xlu0 %v843, 12
      %v915 = vpop.permute.xlu0 %914
      %916 = vrot.lane.b32.xlu0 %v844, 12
      %v917 = vpop.permute.xlu0 %916
      %918 = vrot.lane.b32.xlu0 %v845, 12
      %v919 = vpop.permute.xlu0 %918
      %920 = vrot.lane.b32.xlu0 %v846, 12
      %v921 = vpop.permute.xlu0 %920
      %922 = vrot.lane.b32.xlu0 %v847, 12
      %v923 = vpop.permute.xlu0 %922
      %924 = vrot.lane.b32.xlu0 %v848, 12
      %v925 = vpop.permute.xlu0 %924
      %926 = vrot.lane.b32.xlu0 %v849, 12
      %v927 = vpop.permute.xlu0 %926
      %928 = vrot.lane.b32.xlu0 %v850, 12
      %v929 = vpop.permute.xlu0 %928
      %930 = vrot.lane.b32.xlu0 %v851, 12
      %v931 = vpop.permute.xlu0 %930
      %932 = vrot.lane.b32.xlu0 %v852, 12
      %v933 = vpop.permute.xlu0 %932
      %934 = vrot.lane.b32.xlu0 %v853, 12
      %v935 = vpop.permute.xlu0 %934
      %936 = vrot.lane.b32.xlu0 %v854, 12
      %v937 = vpop.permute.xlu0 %936
      %938 = vrot.lane.b32.xlu0 %v855, 12
      %v939 = vpop.permute.xlu0 %938
      %940 = vrot.lane.b32.xlu0 %v856, 12
      %v941 = vpop.permute.xlu0 %940
      %942 = vrot.lane.b32.xlu0 %v857, 12
      %v943 = vpop.permute.xlu0 %942
      %944 = vrot.lane.b32.xlu0 %v858, 12
      %v945 = vpop.permute.xlu0 %944
      %946 = vrot.lane.b32.xlu0 %v859, 12
      %v947 = vpop.permute.xlu0 %946
      %948 = vrot.lane.b32.xlu0 %v860, 12
      %v949 = vpop.permute.xlu0 %948
      %950 = vrot.lane.b32.xlu0 %v861, 12
      %v951 = vpop.permute.xlu0 %950
      %952 = vrot.lane.b32.xlu0 %v862, 12
      %v953 = vpop.permute.xlu0 %952
      %954 = vrot.lane.b32.xlu0 %v863, 12
      %v955 = vpop.permute.xlu0 %954
      %956 = vrot.lane.b32.xlu0 %v864, 12
      %v957 = vpop.permute.xlu0 %956
      %958 = vrot.lane.b32.xlu0 %v865, 12
      %v959 = vpop.permute.xlu0 %958
      %960 = vrot.lane.b32.xlu0 %v866, 12
      %v961 = vpop.permute.xlu0 %960
      %962 = vrot.lane.b32.xlu0 %v867, 12
      %v963 = vpop.permute.xlu0 %962
      %vm996 = vcmask 130144
      %997 = vst.msk [vmem:[#allocation3] sm:$0xff] %vm996, %v901
      %998 = vst.msk [vmem:[#allocation3 + $0x8] sm:$0xff] %vm996, %v903
      %999 = vst.msk [vmem:[#allocation3 + $0x10] sm:$0xff] %vm996, %v905
      %1000 = vst.msk [vmem:[#allocation3 + $0x18] sm:$0xff] %vm996, %v907
      %1001 = vst.msk [vmem:[#allocation3 + $0x20] sm:$0xff] %vm996, %v909
      %1002 = vst.msk [vmem:[#allocation3 + $0x28] sm:$0xff] %vm996, %v911
      %1003 = vst.msk [vmem:[#allocation3 + $0x30] sm:$0xff] %vm996, %v913
      %1004 = vst.msk [vmem:[#allocation3 + $0x38] sm:$0xff] %vm996, %v915
      %1005 = vst.msk [vmem:[#allocation3 + $0x40] sm:$0xff] %vm996, %v917
      %1006 = vst.msk [vmem:[#allocation3 + $0x48] sm:$0xff] %vm996, %v919
      %1007 = vst.msk [vmem:[#allocation3 + $0x50] sm:$0xff] %vm996, %v921
      %1008 = vst.msk [vmem:[#allocation3 + $0x58] sm:$0xff] %vm996, %v923
      %1009 = vst.msk [vmem:[#allocation3 + $0x60] sm:$0xff] %vm996, %v925
      %1010 = vst.msk [vmem:[#allocation3 + $0x68] sm:$0xff] %vm996, %v927
      %1011 = vst.msk [vmem:[#allocation3 + $0x70] sm:$0xff] %vm996, %v929
      %1012 = vst.msk [vmem:[#allocation3 + $0x78] sm:$0xff] %vm996, %v931
      %1013 = vst.msk [vmem:[#allocation3 + $0x80] sm:$0xff] %vm996, %v933
      %1014 = vst.msk [vmem:[#allocation3 + $0x88] sm:$0xff] %vm996, %v935
      %1015 = vst.msk [vmem:[#allocation3 + $0x90] sm:$0xff] %vm996, %v937
      %1016 = vst.msk [vmem:[#allocation3 + $0x98] sm:$0xff] %vm996, %v939
      %1017 = vst.msk [vmem:[#allocation3 + $0xa0] sm:$0xff] %vm996, %v941
      %1018 = vst.msk [vmem:[#allocation3 + $0xa8] sm:$0xff] %vm996, %v943
      %1019 = vst.msk [vmem:[#allocation3 + $0xb0] sm:$0xff] %vm996, %v945
      %1020 = vst.msk [vmem:[#allocation3 + $0xb8] sm:$0xff] %vm996, %v947
      %1021 = vst.msk [vmem:[#allocation3 + $0xc0] sm:$0xff] %vm996, %v949
      %1022 = vst.msk [vmem:[#allocation3 + $0xc8] sm:$0xff] %vm996, %v951
      %1023 = vst.msk [vmem:[#allocation3 + $0xd0] sm:$0xff] %vm996, %v953
      %1024 = vst.msk [vmem:[#allocation3 + $0xd8] sm:$0xff] %vm996, %v955
      %1025 = vst.msk [vmem:[#allocation3 + $0xe0] sm:$0xff] %vm996, %v957
      %1026 = vst.msk [vmem:[#allocation3 + $0xe8] sm:$0xff] %vm996, %v959
      %1027 = vst.msk [vmem:[#allocation3 + $0xf0] sm:$0xff] %vm996, %v961
      %1028 = vst.msk [vmem:[#allocation3 + $0xf8] sm:$0xff] %vm996, %v963
      %v1029 = vld [vmem:[%s353 + $0x1] sm:$0xff]
      %v1030 = vld [vmem:[%s353 + $0x9] sm:$0xff]
      %v1031 = vld [vmem:[%s353 + $0x19] sm:$0xff]
      %v1032 = vld [vmem:[%s353 + $0x21] sm:$0xff]
      %v1033 = vld [vmem:[%s353 + $0x31] sm:$0xff]
      %v1034 = vld [vmem:[%s353 + $0x39] sm:$0xff]
      %v1035 = vld [vmem:[%s353 + $0x49] sm:$0xff]
      %v1036 = vld [vmem:[%s353 + $0x51] sm:$0xff]
      %v1037 = vld [vmem:[%s353 + $0x61] sm:$0xff]
      %v1038 = vld [vmem:[%s353 + $0x69] sm:$0xff]
      %v1039 = vld [vmem:[%s353 + $0x79] sm:$0xff]
      %v1040 = vld [vmem:[%s353 + $0x81] sm:$0xff]
      %v1041 = vld [vmem:[%s353 + $0x91] sm:$0xff]
      %v1042 = vld [vmem:[%s353 + $0x99] sm:$0xff]
      %v1043 = vld [vmem:[%s353 + $0xa9] sm:$0xff]
      %v1044 = vld [vmem:[%s353 + $0xb1] sm:$0xff]
      %v1045 = vld [vmem:[%s353 + $0xc1] sm:$0xff]
      %v1046 = vld [vmem:[%s353 + $0xc9] sm:$0xff]
      %v1047 = vld [vmem:[%s353 + $0xd9] sm:$0xff]
      %v1048 = vld [vmem:[%s353 + $0xe1] sm:$0xff]
      %v1049 = vld [vmem:[%s353 + $0xf1] sm:$0xff]
      %v1050 = vld [vmem:[%s353 + $0xf9] sm:$0xff]
      %v1051 = vld [vmem:[%s353 + $0x109] sm:$0xff]
      %v1052 = vld [vmem:[%s353 + $0x111] sm:$0xff]
      %v1053 = vld [vmem:[%s353 + $0x121] sm:$0xff]
      %v1054 = vld [vmem:[%s353 + $0x129] sm:$0xff]
      %v1055 = vld [vmem:[%s353 + $0x139] sm:$0xff]
      %v1056 = vld [vmem:[%s353 + $0x141] sm:$0xff]
      %v1057 = vld [vmem:[%s353 + $0x151] sm:$0xff]
      %v1058 = vld [vmem:[%s353 + $0x159] sm:$0xff]
      %v1059 = vld [vmem:[%s353 + $0x169] sm:$0xff]
      %v1060 = vld [vmem:[%s353 + $0x171] sm:$0xff]
      %1093 = vrot.lane.b32.xlu0 %v1029, 16
      %v1094 = vpop.permute.xlu0 %1093
      %1095 = vrot.lane.b32.xlu0 %v1030, 16
      %v1096 = vpop.permute.xlu0 %1095
      %1097 = vrot.lane.b32.xlu0 %v1031, 16
      %v1098 = vpop.permute.xlu0 %1097
      %1099 = vrot.lane.b32.xlu0 %v1032, 16
      %v1100 = vpop.permute.xlu0 %1099
      %1101 = vrot.lane.b32.xlu0 %v1033, 16
      %v1102 = vpop.permute.xlu0 %1101
      %1103 = vrot.lane.b32.xlu0 %v1034, 16
      %v1104 = vpop.permute.xlu0 %1103
      %1105 = vrot.lane.b32.xlu0 %v1035, 16
      %v1106 = vpop.permute.xlu0 %1105
      %1107 = vrot.lane.b32.xlu0 %v1036, 16
      %v1108 = vpop.permute.xlu0 %1107
      %1109 = vrot.lane.b32.xlu0 %v1037, 16
      %v1110 = vpop.permute.xlu0 %1109
      %1111 = vrot.lane.b32.xlu0 %v1038, 16
      %v1112 = vpop.permute.xlu0 %1111
      %1113 = vrot.lane.b32.xlu0 %v1039, 16
      %v1114 = vpop.permute.xlu0 %1113
      %1115 = vrot.lane.b32.xlu0 %v1040, 16
      %v1116 = vpop.permute.xlu0 %1115
      %1117 = vrot.lane.b32.xlu0 %v1041, 16
      %v1118 = vpop.permute.xlu0 %1117
      %1119 = vrot.lane.b32.xlu0 %v1042, 16
      %v1120 = vpop.permute.xlu0 %1119
      %1121 = vrot.lane.b32.xlu0 %v1043, 16
      %v1122 = vpop.permute.xlu0 %1121
      %1123 = vrot.lane.b32.xlu0 %v1044, 16
      %v1124 = vpop.permute.xlu0 %1123
      %1125 = vrot.lane.b32.xlu0 %v1045, 16
      %v1126 = vpop.permute.xlu0 %1125
      %1127 = vrot.lane.b32.xlu0 %v1046, 16
      %v1128 = vpop.permute.xlu0 %1127
      %1129 = vrot.lane.b32.xlu0 %v1047, 16
      %v1130 = vpop.permute.xlu0 %1129
      %1131 = vrot.lane.b32.xlu0 %v1048, 16
      %v1132 = vpop.permute.xlu0 %1131
      %1133 = vrot.lane.b32.xlu0 %v1049, 16
      %v1134 = vpop.permute.xlu0 %1133
      %1135 = vrot.lane.b32.xlu0 %v1050, 16
      %v1136 = vpop.permute.xlu0 %1135
      %1137 = vrot.lane.b32.xlu0 %v1051, 16
      %v1138 = vpop.permute.xlu0 %1137
      %1139 = vrot.lane.b32.xlu0 %v1052, 16
      %v1140 = vpop.permute.xlu0 %1139
      %1141 = vrot.lane.b32.xlu0 %v1053, 16
      %v1142 = vpop.permute.xlu0 %1141
      %1143 = vrot.lane.b32.xlu0 %v1054, 16
      %v1144 = vpop.permute.xlu0 %1143
      %1145 = vrot.lane.b32.xlu0 %v1055, 16
      %v1146 = vpop.permute.xlu0 %1145
      %1147 = vrot.lane.b32.xlu0 %v1056, 16
      %v1148 = vpop.permute.xlu0 %1147
      %1149 = vrot.lane.b32.xlu0 %v1057, 16
      %v1150 = vpop.permute.xlu0 %1149
      %1151 = vrot.lane.b32.xlu0 %v1058, 16
      %v1152 = vpop.permute.xlu0 %1151
      %1153 = vrot.lane.b32.xlu0 %v1059, 16
      %v1154 = vpop.permute.xlu0 %1153
      %1155 = vrot.lane.b32.xlu0 %v1060, 16
      %v1156 = vpop.permute.xlu0 %1155
      %vm1189 = vcmask 162944
      %1190 = vst.msk [vmem:[#allocation3] sm:$0xff] %vm1189, %v1094
      %1191 = vst.msk [vmem:[#allocation3 + $0x8] sm:$0xff] %vm1189, %v1096
      %1192 = vst.msk [vmem:[#allocation3 + $0x10] sm:$0xff] %vm1189, %v1098
      %1193 = vst.msk [vmem:[#allocation3 + $0x18] sm:$0xff] %vm1189, %v1100
      %1194 = vst.msk [vmem:[#allocation3 + $0x20] sm:$0xff] %vm1189, %v1102
      %1195 = vst.msk [vmem:[#allocation3 + $0x28] sm:$0xff] %vm1189, %v1104
      %1196 = vst.msk [vmem:[#allocation3 + $0x30] sm:$0xff] %vm1189, %v1106
      %1197 = vst.msk [vmem:[#allocation3 + $0x38] sm:$0xff] %vm1189, %v1108
      %1198 = vst.msk [vmem:[#allocation3 + $0x40] sm:$0xff] %vm1189, %v1110
      %1199 = vst.msk [vmem:[#allocation3 + $0x48] sm:$0xff] %vm1189, %v1112
      %1200 = vst.msk [vmem:[#allocation3 + $0x50] sm:$0xff] %vm1189, %v1114
      %1201 = vst.msk [vmem:[#allocation3 + $0x58] sm:$0xff] %vm1189, %v1116
      %1202 = vst.msk [vmem:[#allocation3 + $0x60] sm:$0xff] %vm1189, %v1118
      %1203 = vst.msk [vmem:[#allocation3 + $0x68] sm:$0xff] %vm1189, %v1120
      %1204 = vst.msk [vmem:[#allocation3 + $0x70] sm:$0xff] %vm1189, %v1122
      %1205 = vst.msk [vmem:[#allocation3 + $0x78] sm:$0xff] %vm1189, %v1124
      %1206 = vst.msk [vmem:[#allocation3 + $0x80] sm:$0xff] %vm1189, %v1126
      %1207 = vst.msk [vmem:[#allocation3 + $0x88] sm:$0xff] %vm1189, %v1128
      %1208 = vst.msk [vmem:[#allocation3 + $0x90] sm:$0xff] %vm1189, %v1130
      %1209 = vst.msk [vmem:[#allocation3 + $0x98] sm:$0xff] %vm1189, %v1132
      %1210 = vst.msk [vmem:[#allocation3 + $0xa0] sm:$0xff] %vm1189, %v1134
      %1211 = vst.msk [vmem:[#allocation3 + $0xa8] sm:$0xff] %vm1189, %v1136
      %1212 = vst.msk [vmem:[#allocation3 + $0xb0] sm:$0xff] %vm1189, %v1138
      %1213 = vst.msk [vmem:[#allocation3 + $0xb8] sm:$0xff] %vm1189, %v1140
      %1214 = vst.msk [vmem:[#allocation3 + $0xc0] sm:$0xff] %vm1189, %v1142
      %1215 = vst.msk [vmem:[#allocation3 + $0xc8] sm:$0xff] %vm1189, %v1144
      %1216 = vst.msk [vmem:[#allocation3 + $0xd0] sm:$0xff] %vm1189, %v1146
      %1217 = vst.msk [vmem:[#allocation3 + $0xd8] sm:$0xff] %vm1189, %v1148
      %1218 = vst.msk [vmem:[#allocation3 + $0xe0] sm:$0xff] %vm1189, %v1150
      %1219 = vst.msk [vmem:[#allocation3 + $0xe8] sm:$0xff] %vm1189, %v1152
      %1220 = vst.msk [vmem:[#allocation3 + $0xf0] sm:$0xff] %vm1189, %v1154
      %1221 = vst.msk [vmem:[#allocation3 + $0xf8] sm:$0xff] %vm1189, %v1156
      %v1222 = vld [vmem:[%s353 + $0x2] sm:$0xff]
      %v1223 = vld [vmem:[%s353 + $0xa] sm:$0xff]
      %v1224 = vld [vmem:[%s353 + $0x1a] sm:$0xff]
      %v1225 = vld [vmem:[%s353 + $0x22] sm:$0xff]
      %v1226 = vld [vmem:[%s353 + $0x32] sm:$0xff]
      %v1227 = vld [vmem:[%s353 + $0x3a] sm:$0xff]
      %v1228 = vld [vmem:[%s353 + $0x4a] sm:$0xff]
      %v1229 = vld [vmem:[%s353 + $0x52] sm:$0xff]
      %v1230 = vld [vmem:[%s353 + $0x62] sm:$0xff]
      %v1231 = vld [vmem:[%s353 + $0x6a] sm:$0xff]
      %v1232 = vld [vmem:[%s353 + $0x7a] sm:$0xff]
      %v1233 = vld [vmem:[%s353 + $0x82] sm:$0xff]
      %v1234 = vld [vmem:[%s353 + $0x92] sm:$0xff]
      %v1235 = vld [vmem:[%s353 + $0x9a] sm:$0xff]
      %v1236 = vld [vmem:[%s353 + $0xaa] sm:$0xff]
      %v1237 = vld [vmem:[%s353 + $0xb2] sm:$0xff]
      %v1238 = vld [vmem:[%s353 + $0xc2] sm:$0xff]
      %v1239 = vld [vmem:[%s353 + $0xca] sm:$0xff]
      %v1240 = vld [vmem:[%s353 + $0xda] sm:$0xff]
      %v1241 = vld [vmem:[%s353 + $0xe2] sm:$0xff]
      %v1242 = vld [vmem:[%s353 + $0xf2] sm:$0xff]
      %v1243 = vld [vmem:[%s353 + $0xfa] sm:$0xff]
      %v1244 = vld [vmem:[%s353 + $0x10a] sm:$0xff]
      %v1245 = vld [vmem:[%s353 + $0x112] sm:$0xff]
      %v1246 = vld [vmem:[%s353 + $0x122] sm:$0xff]
      %v1247 = vld [vmem:[%s353 + $0x12a] sm:$0xff]
      %v1248 = vld [vmem:[%s353 + $0x13a] sm:$0xff]
      %v1249 = vld [vmem:[%s353 + $0x142] sm:$0xff]
      %v1250 = vld [vmem:[%s353 + $0x152] sm:$0xff]
      %v1251 = vld [vmem:[%s353 + $0x15a] sm:$0xff]
      %v1252 = vld [vmem:[%s353 + $0x16a] sm:$0xff]
      %v1253 = vld [vmem:[%s353 + $0x172] sm:$0xff]
      %1286 = vrot.lane.b32.xlu0 %v1222, 20
      %v1287 = vpop.permute.xlu0 %1286
      %1288 = vrot.lane.b32.xlu0 %v1223, 20
      %v1289 = vpop.permute.xlu0 %1288
      %1290 = vrot.lane.b32.xlu0 %v1224, 20
      %v1291 = vpop.permute.xlu0 %1290
      %1292 = vrot.lane.b32.xlu0 %v1225, 20
      %v1293 = vpop.permute.xlu0 %1292
      %1294 = vrot.lane.b32.xlu0 %v1226, 20
      %v1295 = vpop.permute.xlu0 %1294
      %1296 = vrot.lane.b32.xlu0 %v1227, 20
      %v1297 = vpop.permute.xlu0 %1296
      %1298 = vrot.lane.b32.xlu0 %v1228, 20
      %v1299 = vpop.permute.xlu0 %1298
      %1300 = vrot.lane.b32.xlu0 %v1229, 20
      %v1301 = vpop.permute.xlu0 %1300
      %1302 = vrot.lane.b32.xlu0 %v1230, 20
      %v1303 = vpop.permute.xlu0 %1302
      %1304 = vrot.lane.b32.xlu0 %v1231, 20
      %v1305 = vpop.permute.xlu0 %1304
      %1306 = vrot.lane.b32.xlu0 %v1232, 20
      %v1307 = vpop.permute.xlu0 %1306
      %1308 = vrot.lane.b32.xlu0 %v1233, 20
      %v1309 = vpop.permute.xlu0 %1308
      %1310 = vrot.lane.b32.xlu0 %v1234, 20
      %v1311 = vpop.permute.xlu0 %1310
      %1312 = vrot.lane.b32.xlu0 %v1235, 20
      %v1313 = vpop.permute.xlu0 %1312
      %1314 = vrot.lane.b32.xlu0 %v1236, 20
      %v1315 = vpop.permute.xlu0 %1314
      %1316 = vrot.lane.b32.xlu0 %v1237, 20
      %v1317 = vpop.permute.xlu0 %1316
      %1318 = vrot.lane.b32.xlu0 %v1238, 20
      %v1319 = vpop.permute.xlu0 %1318
      %1320 = vrot.lane.b32.xlu0 %v1239, 20
      %v1321 = vpop.permute.xlu0 %1320
      %1322 = vrot.lane.b32.xlu0 %v1240, 20
      %v1323 = vpop.permute.xlu0 %1322
      %1324 = vrot.lane.b32.xlu0 %v1241, 20
      %v1325 = vpop.permute.xlu0 %1324
      %1326 = vrot.lane.b32.xlu0 %v1242, 20
      %v1327 = vpop.permute.xlu0 %1326
      %1328 = vrot.lane.b32.xlu0 %v1243, 20
      %v1329 = vpop.permute.xlu0 %1328
      %1330 = vrot.lane.b32.xlu0 %v1244, 20
      %v1331 = vpop.permute.xlu0 %1330
      %1332 = vrot.lane.b32.xlu0 %v1245, 20
      %v1333 = vpop.permute.xlu0 %1332
      %1334 = vrot.lane.b32.xlu0 %v1246, 20
      %v1335 = vpop.permute.xlu0 %1334
      %1336 = vrot.lane.b32.xlu0 %v1247, 20
      %v1337 = vpop.permute.xlu0 %1336
      %1338 = vrot.lane.b32.xlu0 %v1248, 20
      %v1339 = vpop.permute.xlu0 %1338
      %1340 = vrot.lane.b32.xlu0 %v1249, 20
      %v1341 = vpop.permute.xlu0 %1340
      %1342 = vrot.lane.b32.xlu0 %v1250, 20
      %v1343 = vpop.permute.xlu0 %1342
      %1344 = vrot.lane.b32.xlu0 %v1251, 20
      %v1345 = vpop.permute.xlu0 %1344
      %1346 = vrot.lane.b32.xlu0 %v1252, 20
      %v1347 = vpop.permute.xlu0 %1346
      %1348 = vrot.lane.b32.xlu0 %v1253, 20
      %v1349 = vpop.permute.xlu0 %1348
      %vm1382 = vcmask 195744
      %1383 = vst.msk [vmem:[#allocation3] sm:$0xff] %vm1382, %v1287
      %1384 = vst.msk [vmem:[#allocation3 + $0x8] sm:$0xff] %vm1382, %v1289
      %1385 = vst.msk [vmem:[#allocation3 + $0x10] sm:$0xff] %vm1382, %v1291
      %1386 = vst.msk [vmem:[#allocation3 + $0x18] sm:$0xff] %vm1382, %v1293
      %1387 = vst.msk [vmem:[#allocation3 + $0x20] sm:$0xff] %vm1382, %v1295
      %1388 = vst.msk [vmem:[#allocation3 + $0x28] sm:$0xff] %vm1382, %v1297
      %1389 = vst.msk [vmem:[#allocation3 + $0x30] sm:$0xff] %vm1382, %v1299
      %1390 = vst.msk [vmem:[#allocation3 + $0x38] sm:$0xff] %vm1382, %v1301
      %1391 = vst.msk [vmem:[#allocation3 + $0x40] sm:$0xff] %vm1382, %v1303
      %1392 = vst.msk [vmem:[#allocation3 + $0x48] sm:$0xff] %vm1382, %v1305
      %1393 = vst.msk [vmem:[#allocation3 + $0x50] sm:$0xff] %vm1382, %v1307
      %1394 = vst.msk [vmem:[#allocation3 + $0x58] sm:$0xff] %vm1382, %v1309
      %1395 = vst.msk [vmem:[#allocation3 + $0x60] sm:$0xff] %vm1382, %v1311
      %1396 = vst.msk [vmem:[#allocation3 + $0x68] sm:$0xff] %vm1382, %v1313
      %1397 = vst.msk [vmem:[#allocation3 + $0x70] sm:$0xff] %vm1382, %v1315
      %1398 = vst.msk [vmem:[#allocation3 + $0x78] sm:$0xff] %vm1382, %v1317
      %1399 = vst.msk [vmem:[#allocation3 + $0x80] sm:$0xff] %vm1382, %v1319
      %1400 = vst.msk [vmem:[#allocation3 + $0x88] sm:$0xff] %vm1382, %v1321
      %1401 = vst.msk [vmem:[#allocation3 + $0x90] sm:$0xff] %vm1382, %v1323
      %1402 = vst.msk [vmem:[#allocation3 + $0x98] sm:$0xff] %vm1382, %v1325
      %1403 = vst.msk [vmem:[#allocation3 + $0xa0] sm:$0xff] %vm1382, %v1327
      %1404 = vst.msk [vmem:[#allocation3 + $0xa8] sm:$0xff] %vm1382, %v1329
      %1405 = vst.msk [vmem:[#allocation3 + $0xb0] sm:$0xff] %vm1382, %v1331
      %1406 = vst.msk [vmem:[#allocation3 + $0xb8] sm:$0xff] %vm1382, %v1333
      %1407 = vst.msk [vmem:[#allocation3 + $0xc0] sm:$0xff] %vm1382, %v1335
      %1408 = vst.msk [vmem:[#allocation3 + $0xc8] sm:$0xff] %vm1382, %v1337
      %1409 = vst.msk [vmem:[#allocation3 + $0xd0] sm:$0xff] %vm1382, %v1339
      %1410 = vst.msk [vmem:[#allocation3 + $0xd8] sm:$0xff] %vm1382, %v1341
      %1411 = vst.msk [vmem:[#allocation3 + $0xe0] sm:$0xff] %vm1382, %v1343
      %1412 = vst.msk [vmem:[#allocation3 + $0xe8] sm:$0xff] %vm1382, %v1345
      %1413 = vst.msk [vmem:[#allocation3 + $0xf0] sm:$0xff] %vm1382, %v1347
      %1414 = vst.msk [vmem:[#allocation3 + $0xf8] sm:$0xff] %vm1382, %v1349
      %s1415 = scalar_lea.vmem [#allocation2], 48
      %v1416 = vld [vmem:[%s1415] sm:$0xff]
      %v1417 = vld [vmem:[%s1415 + $0x8] sm:$0xff]
      %v1418 = vld [vmem:[%s1415 + $0x18] sm:$0xff]
      %v1419 = vld [vmem:[%s1415 + $0x20] sm:$0xff]
      %v1420 = vld [vmem:[%s1415 + $0x30] sm:$0xff]
      %v1421 = vld [vmem:[%s1415 + $0x38] sm:$0xff]
      %v1422 = vld [vmem:[%s1415 + $0x48] sm:$0xff]
      %v1423 = vld [vmem:[%s1415 + $0x50] sm:$0xff]
      %v1424 = vld [vmem:[%s1415 + $0x60] sm:$0xff]
      %v1425 = vld [vmem:[%s1415 + $0x68] sm:$0xff]
      %v1426 = vld [vmem:[%s1415 + $0x78] sm:$0xff]
      %v1427 = vld [vmem:[%s1415 + $0x80] sm:$0xff]
      %v1428 = vld [vmem:[%s1415 + $0x90] sm:$0xff]
      %v1429 = vld [vmem:[%s1415 + $0x98] sm:$0xff]
      %v1430 = vld [vmem:[%s1415 + $0xa8] sm:$0xff]
      %v1431 = vld [vmem:[%s1415 + $0xb0] sm:$0xff]
      %v1432 = vld [vmem:[%s1415 + $0xc0] sm:$0xff]
      %v1433 = vld [vmem:[%s1415 + $0xc8] sm:$0xff]
      %v1434 = vld [vmem:[%s1415 + $0xd8] sm:$0xff]
      %v1435 = vld [vmem:[%s1415 + $0xe0] sm:$0xff]
      %v1436 = vld [vmem:[%s1415 + $0xf0] sm:$0xff]
      %v1437 = vld [vmem:[%s1415 + $0xf8] sm:$0xff]
      %v1438 = vld [vmem:[%s1415 + $0x108] sm:$0xff]
      %v1439 = vld [vmem:[%s1415 + $0x110] sm:$0xff]
      %v1440 = vld [vmem:[%s1415 + $0x120] sm:$0xff]
      %v1441 = vld [vmem:[%s1415 + $0x128] sm:$0xff]
      %v1442 = vld [vmem:[%s1415 + $0x138] sm:$0xff]
      %v1443 = vld [vmem:[%s1415 + $0x140] sm:$0xff]
      %v1444 = vld [vmem:[%s1415 + $0x150] sm:$0xff]
      %v1445 = vld [vmem:[%s1415 + $0x158] sm:$0xff]
      %v1446 = vld [vmem:[%s1415 + $0x168] sm:$0xff]
      %v1447 = vld [vmem:[%s1415 + $0x170] sm:$0xff]
      %1480 = vrot.lane.b32.xlu0 %v1416, 24
      %v1481 = vpop.permute.xlu0 %1480
      %1482 = vrot.lane.b32.xlu0 %v1417, 24
      %v1483 = vpop.permute.xlu0 %1482
      %1484 = vrot.lane.b32.xlu0 %v1418, 24
      %v1485 = vpop.permute.xlu0 %1484
      %1486 = vrot.lane.b32.xlu0 %v1419, 24
      %v1487 = vpop.permute.xlu0 %1486
      %1488 = vrot.lane.b32.xlu0 %v1420, 24
      %v1489 = vpop.permute.xlu0 %1488
      %1490 = vrot.lane.b32.xlu0 %v1421, 24
      %v1491 = vpop.permute.xlu0 %1490
      %1492 = vrot.lane.b32.xlu0 %v1422, 24
      %v1493 = vpop.permute.xlu0 %1492
      %1494 = vrot.lane.b32.xlu0 %v1423, 24
      %v1495 = vpop.permute.xlu0 %1494
      %1496 = vrot.lane.b32.xlu0 %v1424, 24
      %v1497 = vpop.permute.xlu0 %1496
      %1498 = vrot.lane.b32.xlu0 %v1425, 24
      %v1499 = vpop.permute.xlu0 %1498
      %1500 = vrot.lane.b32.xlu0 %v1426, 24
      %v1501 = vpop.permute.xlu0 %1500
      %1502 = vrot.lane.b32.xlu0 %v1427, 24
      %v1503 = vpop.permute.xlu0 %1502
      %1504 = vrot.lane.b32.xlu0 %v1428, 24
      %v1505 = vpop.permute.xlu0 %1504
      %1506 = vrot.lane.b32.xlu0 %v1429, 24
      %v1507 = vpop.permute.xlu0 %1506
      %1508 = vrot.lane.b32.xlu0 %v1430, 24
      %v1509 = vpop.permute.xlu0 %1508
      %1510 = vrot.lane.b32.xlu0 %v1431, 24
      %v1511 = vpop.permute.xlu0 %1510
      %1512 = vrot.lane.b32.xlu0 %v1432, 24
      %v1513 = vpop.permute.xlu0 %1512
      %1514 = vrot.lane.b32.xlu0 %v1433, 24
      %v1515 = vpop.permute.xlu0 %1514
      %1516 = vrot.lane.b32.xlu0 %v1434, 24
      %v1517 = vpop.permute.xlu0 %1516
      %1518 = vrot.lane.b32.xlu0 %v1435, 24
      %v1519 = vpop.permute.xlu0 %1518
      %1520 = vrot.lane.b32.xlu0 %v1436, 24
      %v1521 = vpop.permute.xlu0 %1520
      %1522 = vrot.lane.b32.xlu0 %v1437, 24
      %v1523 = vpop.permute.xlu0 %1522
      %1524 = vrot.lane.b32.xlu0 %v1438, 24
      %v1525 = vpop.permute.xlu0 %1524
      %1526 = vrot.lane.b32.xlu0 %v1439, 24
      %v1527 = vpop.permute.xlu0 %1526
      %1528 = vrot.lane.b32.xlu0 %v1440, 24
      %v1529 = vpop.permute.xlu0 %1528
      %1530 = vrot.lane.b32.xlu0 %v1441, 24
      %v1531 = vpop.permute.xlu0 %1530
      %1532 = vrot.lane.b32.xlu0 %v1442, 24
      %v1533 = vpop.permute.xlu0 %1532
      %1534 = vrot.lane.b32.xlu0 %v1443, 24
      %v1535 = vpop.permute.xlu0 %1534
      %1536 = vrot.lane.b32.xlu0 %v1444, 24
      %v1537 = vpop.permute.xlu0 %1536
      %1538 = vrot.lane.b32.xlu0 %v1445, 24
      %v1539 = vpop.permute.xlu0 %1538
      %1540 = vrot.lane.b32.xlu0 %v1446, 24
      %v1541 = vpop.permute.xlu0 %1540
      %1542 = vrot.lane.b32.xlu0 %v1447, 24
      %v1543 = vpop.permute.xlu0 %1542
      %vm1576 = vcmask 228544
      %1577 = vst.msk [vmem:[#allocation3] sm:$0xff] %vm1576, %v1481
      %1578 = vst.msk [vmem:[#allocation3 + $0x8] sm:$0xff] %vm1576, %v1483
      %1579 = vst.msk [vmem:[#allocation3 + $0x10] sm:$0xff] %vm1576, %v1485
      %1580 = vst.msk [vmem:[#allocation3 + $0x18] sm:$0xff] %vm1576, %v1487
      %1581 = vst.msk [vmem:[#allocation3 + $0x20] sm:$0xff] %vm1576, %v1489
      %1582 = vst.msk [vmem:[#allocation3 + $0x28] sm:$0xff] %vm1576, %v1491
      %1583 = vst.msk [vmem:[#allocation3 + $0x30] sm:$0xff] %vm1576, %v1493
      %1584 = vst.msk [vmem:[#allocation3 + $0x38] sm:$0xff] %vm1576, %v1495
      %1585 = vst.msk [vmem:[#allocation3 + $0x40] sm:$0xff] %vm1576, %v1497
      %1586 = vst.msk [vmem:[#allocation3 + $0x48] sm:$0xff] %vm1576, %v1499
      %1587 = vst.msk [vmem:[#allocation3 + $0x50] sm:$0xff] %vm1576, %v1501
      %1588 = vst.msk [vmem:[#allocation3 + $0x58] sm:$0xff] %vm1576, %v1503
      %1589 = vst.msk [vmem:[#allocation3 + $0x60] sm:$0xff] %vm1576, %v1505
      %1590 = vst.msk [vmem:[#allocation3 + $0x68] sm:$0xff] %vm1576, %v1507
      %1591 = vst.msk [vmem:[#allocation3 + $0x70] sm:$0xff] %vm1576, %v1509
      %1592 = vst.msk [vmem:[#allocation3 + $0x78] sm:$0xff] %vm1576, %v1511
      %1593 = vst.msk [vmem:[#allocation3 + $0x80] sm:$0xff] %vm1576, %v1513
      %1594 = vst.msk [vmem:[#allocation3 + $0x88] sm:$0xff] %vm1576, %v1515
      %1595 = vst.msk [vmem:[#allocation3 + $0x90] sm:$0xff] %vm1576, %v1517
      %1596 = vst.msk [vmem:[#allocation3 + $0x98] sm:$0xff] %vm1576, %v1519
      %1597 = vst.msk [vmem:[#allocation3 + $0xa0] sm:$0xff] %vm1576, %v1521
      %1598 = vst.msk [vmem:[#allocation3 + $0xa8] sm:$0xff] %vm1576, %v1523
      %1599 = vst.msk [vmem:[#allocation3 + $0xb0] sm:$0xff] %vm1576, %v1525
      %1600 = vst.msk [vmem:[#allocation3 + $0xb8] sm:$0xff] %vm1576, %v1527
      %1601 = vst.msk [vmem:[#allocation3 + $0xc0] sm:$0xff] %vm1576, %v1529
      %1602 = vst.msk [vmem:[#allocation3 + $0xc8] sm:$0xff] %vm1576, %v1531
      %1603 = vst.msk [vmem:[#allocation3 + $0xd0] sm:$0xff] %vm1576, %v1533
      %1604 = vst.msk [vmem:[#allocation3 + $0xd8] sm:$0xff] %vm1576, %v1535
      %1605 = vst.msk [vmem:[#allocation3 + $0xe0] sm:$0xff] %vm1576, %v1537
      %1606 = vst.msk [vmem:[#allocation3 + $0xe8] sm:$0xff] %vm1576, %v1539
      %1607 = vst.msk [vmem:[#allocation3 + $0xf0] sm:$0xff] %vm1576, %v1541
      %1608 = vst.msk [vmem:[#allocation3 + $0xf8] sm:$0xff] %vm1576, %v1543
      %v1609 = vld [vmem:[%s1415 + $0x1] sm:$0xff]
      %v1610 = vld [vmem:[%s1415 + $0x9] sm:$0xff]
      %v1611 = vld [vmem:[%s1415 + $0x19] sm:$0xff]
      %v1612 = vld [vmem:[%s1415 + $0x21] sm:$0xff]
      %v1613 = vld [vmem:[%s1415 + $0x31] sm:$0xff]
      %v1614 = vld [vmem:[%s1415 + $0x39] sm:$0xff]
      %v1615 = vld [vmem:[%s1415 + $0x49] sm:$0xff]
      %v1616 = vld [vmem:[%s1415 + $0x51] sm:$0xff]
      %v1617 = vld [vmem:[%s1415 + $0x61] sm:$0xff]
      %v1618 = vld [vmem:[%s1415 + $0x69] sm:$0xff]
      %v1619 = vld [vmem:[%s1415 + $0x79] sm:$0xff]
      %v1620 = vld [vmem:[%s1415 + $0x81] sm:$0xff]
      %v1621 = vld [vmem:[%s1415 + $0x91] sm:$0xff]
      %v1622 = vld [vmem:[%s1415 + $0x99] sm:$0xff]
      %v1623 = vld [vmem:[%s1415 + $0xa9] sm:$0xff]
      %v1624 = vld [vmem:[%s1415 + $0xb1] sm:$0xff]
      %v1625 = vld [vmem:[%s1415 + $0xc1] sm:$0xff]
      %v1626 = vld [vmem:[%s1415 + $0xc9] sm:$0xff]
      %v1627 = vld [vmem:[%s1415 + $0xd9] sm:$0xff]
      %v1628 = vld [vmem:[%s1415 + $0xe1] sm:$0xff]
      %v1629 = vld [vmem:[%s1415 + $0xf1] sm:$0xff]
      %v1630 = vld [vmem:[%s1415 + $0xf9] sm:$0xff]
      %v1631 = vld [vmem:[%s1415 + $0x109] sm:$0xff]
      %v1632 = vld [vmem:[%s1415 + $0x111] sm:$0xff]
      %v1633 = vld [vmem:[%s1415 + $0x121] sm:$0xff]
      %v1634 = vld [vmem:[%s1415 + $0x129] sm:$0xff]
      %v1635 = vld [vmem:[%s1415 + $0x139] sm:$0xff]
      %v1636 = vld [vmem:[%s1415 + $0x141] sm:$0xff]
      %v1637 = vld [vmem:[%s1415 + $0x151] sm:$0xff]
      %v1638 = vld [vmem:[%s1415 + $0x159] sm:$0xff]
      %v1639 = vld [vmem:[%s1415 + $0x169] sm:$0xff]
      %v1640 = vld [vmem:[%s1415 + $0x171] sm:$0xff]
      %1673 = vrot.lane.b32.xlu0 %v1609, 28
      %v1674 = vpop.permute.xlu0 %1673
      %1675 = vrot.lane.b32.xlu0 %v1610, 28
      %v1676 = vpop.permute.xlu0 %1675
      %1677 = vrot.lane.b32.xlu0 %v1611, 28
      %v1678 = vpop.permute.xlu0 %1677
      %1679 = vrot.lane.b32.xlu0 %v1612, 28
      %v1680 = vpop.permute.xlu0 %1679
      %1681 = vrot.lane.b32.xlu0 %v1613, 28
      %v1682 = vpop.permute.xlu0 %1681
      %1683 = vrot.lane.b32.xlu0 %v1614, 28
      %v1684 = vpop.permute.xlu0 %1683
      %1685 = vrot.lane.b32.xlu0 %v1615, 28
      %v1686 = vpop.permute.xlu0 %1685
      %1687 = vrot.lane.b32.xlu0 %v1616, 28
      %v1688 = vpop.permute.xlu0 %1687
      %1689 = vrot.lane.b32.xlu0 %v1617, 28
      %v1690 = vpop.permute.xlu0 %1689
      %1691 = vrot.lane.b32.xlu0 %v1618, 28
      %v1692 = vpop.permute.xlu0 %1691
      %1693 = vrot.lane.b32.xlu0 %v1619, 28
      %v1694 = vpop.permute.xlu0 %1693
      %1695 = vrot.lane.b32.xlu0 %v1620, 28
      %v1696 = vpop.permute.xlu0 %1695
      %1697 = vrot.lane.b32.xlu0 %v1621, 28
      %v1698 = vpop.permute.xlu0 %1697
      %1699 = vrot.lane.b32.xlu0 %v1622, 28
      %v1700 = vpop.permute.xlu0 %1699
      %1701 = vrot.lane.b32.xlu0 %v1623, 28
      %v1702 = vpop.permute.xlu0 %1701
      %1703 = vrot.lane.b32.xlu0 %v1624, 28
      %v1704 = vpop.permute.xlu0 %1703
      %1705 = vrot.lane.b32.xlu0 %v1625, 28
      %v1706 = vpop.permute.xlu0 %1705
      %1707 = vrot.lane.b32.xlu0 %v1626, 28
      %v1708 = vpop.permute.xlu0 %1707
      %1709 = vrot.lane.b32.xlu0 %v1627, 28
      %v1710 = vpop.permute.xlu0 %1709
      %1711 = vrot.lane.b32.xlu0 %v1628, 28
      %v1712 = vpop.permute.xlu0 %1711
      %1713 = vrot.lane.b32.xlu0 %v1629, 28
      %v1714 = vpop.permute.xlu0 %1713
      %1715 = vrot.lane.b32.xlu0 %v1630, 28
      %v1716 = vpop.permute.xlu0 %1715
      %1717 = vrot.lane.b32.xlu0 %v1631, 28
      %v1718 = vpop.permute.xlu0 %1717
      %1719 = vrot.lane.b32.xlu0 %v1632, 28
      %v1720 = vpop.permute.xlu0 %1719
      %1721 = vrot.lane.b32.xlu0 %v1633, 28
      %v1722 = vpop.permute.xlu0 %1721
      %1723 = vrot.lane.b32.xlu0 %v1634, 28
      %v1724 = vpop.permute.xlu0 %1723
      %1725 = vrot.lane.b32.xlu0 %v1635, 28
      %v1726 = vpop.permute.xlu0 %1725
      %1727 = vrot.lane.b32.xlu0 %v1636, 28
      %v1728 = vpop.permute.xlu0 %1727
      %1729 = vrot.lane.b32.xlu0 %v1637, 28
      %v1730 = vpop.permute.xlu0 %1729
      %1731 = vrot.lane.b32.xlu0 %v1638, 28
      %v1732 = vpop.permute.xlu0 %1731
      %1733 = vrot.lane.b32.xlu0 %v1639, 28
      %v1734 = vpop.permute.xlu0 %1733
      %1735 = vrot.lane.b32.xlu0 %v1640, 28
      %v1736 = vpop.permute.xlu0 %1735
      %vm1769 = vcmask 261344
      %1770 = vst.msk [vmem:[#allocation3] sm:$0xff] %vm1769, %v1674
      %1771 = vst.msk [vmem:[#allocation3 + $0x8] sm:$0xff] %vm1769, %v1676
      %1772 = vst.msk [vmem:[#allocation3 + $0x10] sm:$0xff] %vm1769, %v1678
      %1773 = vst.msk [vmem:[#allocation3 + $0x18] sm:$0xff] %vm1769, %v1680
      %1774 = vst.msk [vmem:[#allocation3 + $0x20] sm:$0xff] %vm1769, %v1682
      %1775 = vst.msk [vmem:[#allocation3 + $0x28] sm:$0xff] %vm1769, %v1684
      %1776 = vst.msk [vmem:[#allocation3 + $0x30] sm:$0xff] %vm1769, %v1686
      %1777 = vst.msk [vmem:[#allocation3 + $0x38] sm:$0xff] %vm1769, %v1688
      %1778 = vst.msk [vmem:[#allocation3 + $0x40] sm:$0xff] %vm1769, %v1690
      %1779 = vst.msk [vmem:[#allocation3 + $0x48] sm:$0xff] %vm1769, %v1692
      %1780 = vst.msk [vmem:[#allocation3 + $0x50] sm:$0xff] %vm1769, %v1694
      %1781 = vst.msk [vmem:[#allocation3 + $0x58] sm:$0xff] %vm1769, %v1696
      %1782 = vst.msk [vmem:[#allocation3 + $0x60] sm:$0xff] %vm1769, %v1698
      %1783 = vst.msk [vmem:[#allocation3 + $0x68] sm:$0xff] %vm1769, %v1700
      %1784 = vst.msk [vmem:[#allocation3 + $0x70] sm:$0xff] %vm1769, %v1702
      %1785 = vst.msk [vmem:[#allocation3 + $0x78] sm:$0xff] %vm1769, %v1704
      %1786 = vst.msk [vmem:[#allocation3 + $0x80] sm:$0xff] %vm1769, %v1706
      %1787 = vst.msk [vmem:[#allocation3 + $0x88] sm:$0xff] %vm1769, %v1708
      %1788 = vst.msk [vmem:[#allocation3 + $0x90] sm:$0xff] %vm1769, %v1710
      %1789 = vst.msk [vmem:[#allocation3 + $0x98] sm:$0xff] %vm1769, %v1712
      %1790 = vst.msk [vmem:[#allocation3 + $0xa0] sm:$0xff] %vm1769, %v1714
      %1791 = vst.msk [vmem:[#allocation3 + $0xa8] sm:$0xff] %vm1769, %v1716
      %1792 = vst.msk [vmem:[#allocation3 + $0xb0] sm:$0xff] %vm1769, %v1718
      %1793 = vst.msk [vmem:[#allocation3 + $0xb8] sm:$0xff] %vm1769, %v1720
      %1794 = vst.msk [vmem:[#allocation3 + $0xc0] sm:$0xff] %vm1769, %v1722
      %1795 = vst.msk [vmem:[#allocation3 + $0xc8] sm:$0xff] %vm1769, %v1724
      %1796 = vst.msk [vmem:[#allocation3 + $0xd0] sm:$0xff] %vm1769, %v1726
      %1797 = vst.msk [vmem:[#allocation3 + $0xd8] sm:$0xff] %vm1769, %v1728
      %1798 = vst.msk [vmem:[#allocation3 + $0xe0] sm:$0xff] %vm1769, %v1730
      %1799 = vst.msk [vmem:[#allocation3 + $0xe8] sm:$0xff] %vm1769, %v1732
      %1800 = vst.msk [vmem:[#allocation3 + $0xf0] sm:$0xff] %vm1769, %v1734
      %1801 = vst.msk [vmem:[#allocation3 + $0xf8] sm:$0xff] %vm1769, %v1736
      %v1802 = vld [vmem:[%s1415 + $0x2] sm:$0xff]
      %v1803 = vld [vmem:[%s1415 + $0xa] sm:$0xff]
      %v1804 = vld [vmem:[%s1415 + $0x1a] sm:$0xff]
      %v1805 = vld [vmem:[%s1415 + $0x22] sm:$0xff]
      %v1806 = vld [vmem:[%s1415 + $0x32] sm:$0xff]
      %v1807 = vld [vmem:[%s1415 + $0x3a] sm:$0xff]
      %v1808 = vld [vmem:[%s1415 + $0x4a] sm:$0xff]
      %v1809 = vld [vmem:[%s1415 + $0x52] sm:$0xff]
      %v1810 = vld [vmem:[%s1415 + $0x62] sm:$0xff]
      %v1811 = vld [vmem:[%s1415 + $0x6a] sm:$0xff]
      %v1812 = vld [vmem:[%s1415 + $0x7a] sm:$0xff]
      %v1813 = vld [vmem:[%s1415 + $0x82] sm:$0xff]
      %v1814 = vld [vmem:[%s1415 + $0x92] sm:$0xff]
      %v1815 = vld [vmem:[%s1415 + $0x9a] sm:$0xff]
      %v1816 = vld [vmem:[%s1415 + $0xaa] sm:$0xff]
      %v1817 = vld [vmem:[%s1415 + $0xb2] sm:$0xff]
      %v1818 = vld [vmem:[%s1415 + $0xc2] sm:$0xff]
      %v1819 = vld [vmem:[%s1415 + $0xca] sm:$0xff]
      %v1820 = vld [vmem:[%s1415 + $0xda] sm:$0xff]
      %v1821 = vld [vmem:[%s1415 + $0xe2] sm:$0xff]
      %v1822 = vld [vmem:[%s1415 + $0xf2] sm:$0xff]
      %v1823 = vld [vmem:[%s1415 + $0xfa] sm:$0xff]
      %v1824 = vld [vmem:[%s1415 + $0x10a] sm:$0xff]
      %v1825 = vld [vmem:[%s1415 + $0x112] sm:$0xff]
      %v1826 = vld [vmem:[%s1415 + $0x122] sm:$0xff]
      %v1827 = vld [vmem:[%s1415 + $0x12a] sm:$0xff]
      %v1828 = vld [vmem:[%s1415 + $0x13a] sm:$0xff]
      %v1829 = vld [vmem:[%s1415 + $0x142] sm:$0xff]
      %v1830 = vld [vmem:[%s1415 + $0x152] sm:$0xff]
      %v1831 = vld [vmem:[%s1415 + $0x15a] sm:$0xff]
      %v1832 = vld [vmem:[%s1415 + $0x16a] sm:$0xff]
      %v1833 = vld [vmem:[%s1415 + $0x172] sm:$0xff]
      %1866 = vrot.lane.b32.xlu0 %v1802, 32
      %v1867 = vpop.permute.xlu0 %1866
      %1868 = vrot.lane.b32.xlu0 %v1803, 32
      %v1869 = vpop.permute.xlu0 %1868
      %1870 = vrot.lane.b32.xlu0 %v1804, 32
      %v1871 = vpop.permute.xlu0 %1870
      %1872 = vrot.lane.b32.xlu0 %v1805, 32
      %v1873 = vpop.permute.xlu0 %1872
      %1874 = vrot.lane.b32.xlu0 %v1806, 32
      %v1875 = vpop.permute.xlu0 %1874
      %1876 = vrot.lane.b32.xlu0 %v1807, 32
      %v1877 = vpop.permute.xlu0 %1876
      %1878 = vrot.lane.b32.xlu0 %v1808, 32
      %v1879 = vpop.permute.xlu0 %1878
      %1880 = vrot.lane.b32.xlu0 %v1809, 32
      %v1881 = vpop.permute.xlu0 %1880
      %1882 = vrot.lane.b32.xlu0 %v1810, 32
      %v1883 = vpop.permute.xlu0 %1882
      %1884 = vrot.lane.b32.xlu0 %v1811, 32
      %v1885 = vpop.permute.xlu0 %1884
      %1886 = vrot.lane.b32.xlu0 %v1812, 32
      %v1887 = vpop.permute.xlu0 %1886
      %1888 = vrot.lane.b32.xlu0 %v1813, 32
      %v1889 = vpop.permute.xlu0 %1888
      %1890 = vrot.lane.b32.xlu0 %v1814, 32
      %v1891 = vpop.permute.xlu0 %1890
      %1892 = vrot.lane.b32.xlu0 %v1815, 32
      %v1893 = vpop.permute.xlu0 %1892
      %1894 = vrot.lane.b32.xlu0 %v1816, 32
      %v1895 = vpop.permute.xlu0 %1894
      %1896 = vrot.lane.b32.xlu0 %v1817, 32
      %v1897 = vpop.permute.xlu0 %1896
      %1898 = vrot.lane.b32.xlu0 %v1818, 32
      %v1899 = vpop.permute.xlu0 %1898
      %1900 = vrot.lane.b32.xlu0 %v1819, 32
      %v1901 = vpop.permute.xlu0 %1900
      %1902 = vrot.lane.b32.xlu0 %v1820, 32
      %v1903 = vpop.permute.xlu0 %1902
      %1904 = vrot.lane.b32.xlu0 %v1821, 32
      %v1905 = vpop.permute.xlu0 %1904
      %1906 = vrot.lane.b32.xlu0 %v1822, 32
      %v1907 = vpop.permute.xlu0 %1906
      %1908 = vrot.lane.b32.xlu0 %v1823, 32
      %v1909 = vpop.permute.xlu0 %1908
      %1910 = vrot.lane.b32.xlu0 %v1824, 32
      %v1911 = vpop.permute.xlu0 %1910
      %1912 = vrot.lane.b32.xlu0 %v1825, 32
      %v1913 = vpop.permute.xlu0 %1912
      %1914 = vrot.lane.b32.xlu0 %v1826, 32
      %v1915 = vpop.permute.xlu0 %1914
      %1916 = vrot.lane.b32.xlu0 %v1827, 32
      %v1917 = vpop.permute.xlu0 %1916
      %1918 = vrot.lane.b32.xlu0 %v1828, 32
      %v1919 = vpop.permute.xlu0 %1918
      %1920 = vrot.lane.b32.xlu0 %v1829, 32
      %v1921 = vpop.permute.xlu0 %1920
      %1922 = vrot.lane.b32.xlu0 %v1830, 32
      %v1923 = vpop.permute.xlu0 %1922
      %1924 = vrot.lane.b32.xlu0 %v1831, 32
      %v1925 = vpop.permute.xlu0 %1924
      %1926 = vrot.lane.b32.xlu0 %v1832, 32
      %v1927 = vpop.permute.xlu0 %1926
      %1928 = vrot.lane.b32.xlu0 %v1833, 32
      %v1929 = vpop.permute.xlu0 %1928
      %vm1962 = vcmask 294144
      %1963 = vst.msk [vmem:[#allocation3] sm:$0xff] %vm1962, %v1867
      %1964 = vst.msk [vmem:[#allocation3 + $0x8] sm:$0xff] %vm1962, %v1869
      %1965 = vst.msk [vmem:[#allocation3 + $0x10] sm:$0xff] %vm1962, %v1871
      %1966 = vst.msk [vmem:[#allocation3 + $0x18] sm:$0xff] %vm1962, %v1873
      %1967 = vst.msk [vmem:[#allocation3 + $0x20] sm:$0xff] %vm1962, %v1875
      %1968 = vst.msk [vmem:[#allocation3 + $0x28] sm:$0xff] %vm1962, %v1877
      %1969 = vst.msk [vmem:[#allocation3 + $0x30] sm:$0xff] %vm1962, %v1879
      %1970 = vst.msk [vmem:[#allocation3 + $0x38] sm:$0xff] %vm1962, %v1881
      %1971 = vst.msk [vmem:[#allocation3 + $0x40] sm:$0xff] %vm1962, %v1883
      %1972 = vst.msk [vmem:[#allocation3 + $0x48] sm:$0xff] %vm1962, %v1885
      %1973 = vst.msk [vmem:[#allocation3 + $0x50] sm:$0xff] %vm1962, %v1887
      %1974 = vst.msk [vmem:[#allocation3 + $0x58] sm:$0xff] %vm1962, %v1889
      %1975 = vst.msk [vmem:[#allocation3 + $0x60] sm:$0xff] %vm1962, %v1891
      %1976 = vst.msk [vmem:[#allocation3 + $0x68] sm:$0xff] %vm1962, %v1893
      %1977 = vst.msk [vmem:[#allocation3 + $0x70] sm:$0xff] %vm1962, %v1895
      %1978 = vst.msk [vmem:[#allocation3 + $0x78] sm:$0xff] %vm1962, %v1897
      %1979 = vst.msk [vmem:[#allocation3 + $0x80] sm:$0xff] %vm1962, %v1899
      %1980 = vst.msk [vmem:[#allocation3 + $0x88] sm:$0xff] %vm1962, %v1901
      %1981 = vst.msk [vmem:[#allocation3 + $0x90] sm:$0xff] %vm1962, %v1903
      %1982 = vst.msk [vmem:[#allocation3 + $0x98] sm:$0xff] %vm1962, %v1905
      %1983 = vst.msk [vmem:[#allocation3 + $0xa0] sm:$0xff] %vm1962, %v1907
      %1984 = vst.msk [vmem:[#allocation3 + $0xa8] sm:$0xff] %vm1962, %v1909
      %1985 = vst.msk [vmem:[#allocation3 + $0xb0] sm:$0xff] %vm1962, %v1911
      %1986 = vst.msk [vmem:[#allocation3 + $0xb8] sm:$0xff] %vm1962, %v1913
      %1987 = vst.msk [vmem:[#allocation3 + $0xc0] sm:$0xff] %vm1962, %v1915
      %1988 = vst.msk [vmem:[#allocation3 + $0xc8] sm:$0xff] %vm1962, %v1917
      %1989 = vst.msk [vmem:[#allocation3 + $0xd0] sm:$0xff] %vm1962, %v1919
      %1990 = vst.msk [vmem:[#allocation3 + $0xd8] sm:$0xff] %vm1962, %v1921
      %1991 = vst.msk [vmem:[#allocation3 + $0xe0] sm:$0xff] %vm1962, %v1923
      %1992 = vst.msk [vmem:[#allocation3 + $0xe8] sm:$0xff] %vm1962, %v1925
      %1993 = vst.msk [vmem:[#allocation3 + $0xf0] sm:$0xff] %vm1962, %v1927
      %1994 = vst.msk [vmem:[#allocation3 + $0xf8] sm:$0xff] %vm1962, %v1929
      %v1995 = vld [vmem:[#allocation3] sm:$0xff]
      %v1996 = vld [vmem:[#allocation3 + $0x8] sm:$0xff]
      %v1997 = vld [vmem:[#allocation3 + $0x10] sm:$0xff]
      %v1998 = vld [vmem:[#allocation3 + $0x18] sm:$0xff]
      %v1999 = vld [vmem:[#allocation3 + $0x20] sm:$0xff]
      %v2000 = vld [vmem:[#allocation3 + $0x28] sm:$0xff]
      %v2001 = vld [vmem:[#allocation3 + $0x30] sm:$0xff]
      %v2002 = vld [vmem:[#allocation3 + $0x38] sm:$0xff]
      %v2003 = vld [vmem:[#allocation3 + $0x40] sm:$0xff]
      %v2004 = vld [vmem:[#allocation3 + $0x48] sm:$0xff]
      %v2005 = vld [vmem:[#allocation3 + $0x50] sm:$0xff]
      %v2006 = vld [vmem:[#allocation3 + $0x58] sm:$0xff]
      %v2007 = vld [vmem:[#allocation3 + $0x60] sm:$0xff]
      %v2008 = vld [vmem:[#allocation3 + $0x68] sm:$0xff]
      %v2009 = vld [vmem:[#allocation3 + $0x70] sm:$0xff]
      %v2010 = vld [vmem:[#allocation3 + $0x78] sm:$0xff]
      %v2011 = vld [vmem:[#allocation3 + $0x80] sm:$0xff]
      %v2012 = vld [vmem:[#allocation3 + $0x88] sm:$0xff]
      %v2013 = vld [vmem:[#allocation3 + $0x90] sm:$0xff]
      %v2014 = vld [vmem:[#allocation3 + $0x98] sm:$0xff]
      %v2015 = vld [vmem:[#allocation3 + $0xa0] sm:$0xff]
      %v2016 = vld [vmem:[#allocation3 + $0xa8] sm:$0xff]
      %v2017 = vld [vmem:[#allocation3 + $0xb0] sm:$0xff]
      %v2018 = vld [vmem:[#allocation3 + $0xb8] sm:$0xff]
      %v2019 = vld [vmem:[#allocation3 + $0xc0] sm:$0xff]
      %v2020 = vld [vmem:[#allocation3 + $0xc8] sm:$0xff]
      %v2021 = vld [vmem:[#allocation3 + $0xd0] sm:$0xff]
      %v2022 = vld [vmem:[#allocation3 + $0xd8] sm:$0xff]
      %v2023 = vld [vmem:[#allocation3 + $0xe0] sm:$0xff]
      %v2024 = vld [vmem:[#allocation3 + $0xe8] sm:$0xff]
      %v2025 = vld [vmem:[#allocation3 + $0xf0] sm:$0xff]
      %v2026 = vld [vmem:[#allocation3 + $0xf8] sm:$0xff]
      %v2027 = vld [vmem:[%s1] sm:$0xff]
      %v2028 = vld [vmem:[%s1 + $0x8] sm:$0xff]
      %v2029 = vld [vmem:[%s1 + $0x10] sm:$0xff]
      %v2030 = vld [vmem:[%s1 + $0x18] sm:$0xff]
      %v2031 = vld [vmem:[%s1 + $0x20] sm:$0xf]
      %v2032 = vld [vmem:[%s2] sm:$0x1]
      %v2034 = vlaneseq
      %v2035 = vshrl.u32 %v2034, 7
      %v2036 = vsub.s32 0, %v2035
      %v2037 = vrot.slane %v2032, %v2036
      %vm2039 = vcmask 293888
      %v2041 = vsel %vm2039, %v1995, 0
      %v2044 = vsel %vm2039, %v1996, 0
      %v2047 = vsel %vm2039, %v1997, 0
      %v2050 = vsel %vm2039, %v1998, 0
      %v2053 = vsel %vm2039, %v1999, 0
      %v2056 = vsel %vm2039, %v2000, 0
      %v2059 = vsel %vm2039, %v2001, 0
      %v2062 = vsel %vm2039, %v2002, 0
      %v2065 = vsel %vm2039, %v2003, 0
      %v2068 = vsel %vm2039, %v2004, 0
      %v2071 = vsel %vm2039, %v2005, 0
      %v2074 = vsel %vm2039, %v2006, 0
      %v2077 = vsel %vm2039, %v2007, 0
      %v2080 = vsel %vm2039, %v2008, 0
      %v2083 = vsel %vm2039, %v2009, 0
      %v2086 = vsel %vm2039, %v2010, 0
      %v2089 = vsel %vm2039, %v2011, 0
      %v2092 = vsel %vm2039, %v2012, 0
      %v2095 = vsel %vm2039, %v2013, 0
      %v2098 = vsel %vm2039, %v2014, 0
      %v2101 = vsel %vm2039, %v2015, 0
      %v2104 = vsel %vm2039, %v2016, 0
      %v2107 = vsel %vm2039, %v2017, 0
      %v2110 = vsel %vm2039, %v2018, 0
      %v2113 = vsel %vm2039, %v2019, 0
      %v2116 = vsel %vm2039, %v2020, 0
      %v2119 = vsel %vm2039, %v2021, 0
      %v2122 = vsel %vm2039, %v2022, 0
      %v2125 = vsel %vm2039, %v2023, 0
      %v2128 = vsel %vm2039, %v2024, 0
      %v2131 = vsel %vm2039, %v2025, 0
      %v2134 = vsel %vm2039, %v2026, 0
      %vm2136 = vcmask 1043456
      %v2138 = vsel %vm2136, %v2031, 0
      %2140 = vmatprep.subr.mxu0 0.0
      %2141 = vmatpush1.msra.mxu0 0.0
      %2142 = vmatprep.subr.mxu0 0.0
      %2143 = vmatpush1.msra.mxu0 0.0
      %2144 = vmatprep.subr.mxu0 0.0
      %2145 = vmatpush1.msra.mxu0 0.0
      %2146 = vmatprep.subr.mxu0 0.0
      %2147 = vmatpush1.msra.mxu0 0.0
      %2148 = vmatprep.subr.mxu0 0.0
      %2149 = vmatpush1.msra.mxu0 0.0
      %2150 = vmatprep.subr.mxu0 0.0
      %2151 = vmatpush1.msra.mxu0 0.0
      %2152 = vmatprep.subr.mxu0 0.0
      %2153 = vmatpush1.msra.mxu0 0.0
      %2154 = vmatprep.subr.mxu0 0.0
      %2155 = vmatpush1.msra.mxu0 0.0
      %2156 = vmatprep.subr.mxu0 0.0
      %2157 = vmatpush1.msra.mxu0 0.0
      %2158 = vmatprep.subr.mxu0 0.0
      %2159 = vmatpush1.msra.mxu0 0.0
      %2160 = vmatprep.subr.mxu0 0.0
      %2161 = vmatpush1.msra.mxu0 0.0
      %2162 = vmatprep.subr.mxu0 0.0
      %2163 = vmatpush1.msra.mxu0 %v2138
      %2164 = vmatprep.subr.mxu0 0.0
      %2165 = vmatpush1.msra.mxu0 %v2030
      %2166 = vmatprep.subr.mxu0 0.0
      %2167 = vmatpush1.msra.mxu0 %v2029
      %2168 = vmatprep.subr.mxu0 0.0
      %2169 = vmatpush1.msra.mxu0 %v2028
      %2170 = vmatprep.subr.mxu0 0.0
      %2171 = vmatpush1.msra.mxu0 %v2027
      %2172 = vmatprep.subr.mxu0 0.0
      %2173 = vmatpush2.msra.mxu0 0.0
      %2174 = vmatprep.subr.mxu0 0.0
      %2175 = vmatpush2.msra.mxu0 0.0
      %2176 = vmatprep.subr.mxu0 0.0
      %2177 = vmatpush2.msra.mxu0 0.0
      %2178 = vmatprep.subr.mxu0 0.0
      %2179 = vmatpush2.msra.mxu0 0.0
      %2180 = vmatprep.subr.mxu0 0.0
      %2181 = vmatpush2.msra.mxu0 0.0
      %2182 = vmatprep.subr.mxu0 0.0
      %2183 = vmatpush2.msra.mxu0 0.0
      %2184 = vmatprep.subr.mxu0 0.0
      %2185 = vmatpush2.msra.mxu0 0.0
      %2186 = vmatprep.subr.mxu0 0.0
      %2187 = vmatpush2.msra.mxu0 0.0
      %2188 = vmatprep.subr.mxu0 0.0
      %2189 = vmatpush2.msra.mxu0 0.0
      %2190 = vmatprep.subr.mxu0 0.0
      %2191 = vmatpush2.msra.mxu0 0.0
      %2192 = vmatprep.subr.mxu0 0.0
      %2193 = vmatpush2.msra.mxu0 0.0
      %2194 = vmatprep.subr.mxu0 0.0
      %2195 = vmatpush2.msra.mxu0 0.0
      %2196 = vmatprep.subr.mxu0 0.0
      %2197 = vmatpush2.msra.mxu0 0.0
      %2198 = vmatprep.subr.mxu0 0.0
      %2199 = vmatpush2.msra.mxu0 0.0
      %2200 = vmatprep.subr.mxu0 0.0
      %2201 = vmatpush2.msra.mxu0 0.0
      %2202 = vmatprep.subr.mxu0 0.0
      %2203 = vmatpush2.msra.mxu0 0.0
      %2204 = vmatprep.mubr.f32.mxu0 0.0
      %2205 = vmatmul.mubr.f32.gmra.mxu0 %v2041
      %v2206 = vpop.f32.mrf.mxu0
      %v2207 = vadd.f32 %v2037, %v2206
      %v2208 = vpop.f32.mrf.mxu0
      %2209 = vmatprep.mubr.f32.mxu0 0.0
      %2210 = vmatmul.mubr.f32.gmra.mxu0 %v2044
      %v2211 = vpop.f32.mrf.mxu0
      %v2212 = vadd.f32 %v2037, %v2211
      %v2213 = vpop.f32.mrf.mxu0
      %2214 = vmatprep.mubr.f32.mxu0 0.0
      %2215 = vmatmul.mubr.f32.gmra.mxu0 %v2047
      %v2216 = vpop.f32.mrf.mxu0
      %v2217 = vadd.f32 %v2037, %v2216
      %v2218 = vpop.f32.mrf.mxu0
      %2219 = vmatprep.mubr.f32.mxu0 0.0
      %2220 = vmatmul.mubr.f32.gmra.mxu0 %v2050
      %v2221 = vpop.f32.mrf.mxu0
      %v2222 = vadd.f32 %v2037, %v2221
      %v2223 = vpop.f32.mrf.mxu0
      %2224 = vmatprep.mubr.f32.mxu0 0.0
      %2225 = vmatmul.mubr.f32.gmra.mxu0 %v2053
      %v2226 = vpop.f32.mrf.mxu0
      %v2227 = vadd.f32 %v2037, %v2226
      %v2228 = vpop.f32.mrf.mxu0
      %2229 = vmatprep.mubr.f32.mxu0 0.0
      %2230 = vmatmul.mubr.f32.gmra.mxu0 %v2056
      %v2231 = vpop.f32.mrf.mxu0
      %v2232 = vadd.f32 %v2037, %v2231
      %v2233 = vpop.f32.mrf.mxu0
      %2234 = vmatprep.mubr.f32.mxu0 0.0
      %2235 = vmatmul.mubr.f32.gmra.mxu0 %v2059
      %v2236 = vpop.f32.mrf.mxu0
      %v2237 = vadd.f32 %v2037, %v2236
      %v2238 = vpop.f32.mrf.mxu0
      %2239 = vmatprep.mubr.f32.mxu0 0.0
      %2240 = vmatmul.mubr.f32.gmra.mxu0 %v2062
      %v2241 = vpop.f32.mrf.mxu0
      %v2242 = vadd.f32 %v2037, %v2241
      %v2243 = vpop.f32.mrf.mxu0
      %2244 = vmatprep.mubr.f32.mxu0 0.0
      %2245 = vmatmul.mubr.f32.gmra.mxu0 %v2065
      %v2246 = vpop.f32.mrf.mxu0
      %v2247 = vadd.f32 %v2037, %v2246
      %v2248 = vpop.f32.mrf.mxu0
      %2249 = vmatprep.mubr.f32.mxu0 0.0
      %2250 = vmatmul.mubr.f32.gmra.mxu0 %v2068
      %v2251 = vpop.f32.mrf.mxu0
      %v2252 = vadd.f32 %v2037, %v2251
      %v2253 = vpop.f32.mrf.mxu0
      %2254 = vmatprep.mubr.f32.mxu0 0.0
      %2255 = vmatmul.mubr.f32.gmra.mxu0 %v2071
      %v2256 = vpop.f32.mrf.mxu0
      %v2257 = vadd.f32 %v2037, %v2256
      %v2258 = vpop.f32.mrf.mxu0
      %2259 = vmatprep.mubr.f32.mxu0 0.0
      %2260 = vmatmul.mubr.f32.gmra.mxu0 %v2074
      %v2261 = vpop.f32.mrf.mxu0
      %v2262 = vadd.f32 %v2037, %v2261
      %v2263 = vpop.f32.mrf.mxu0
      %2264 = vmatprep.mubr.f32.mxu0 0.0
      %2265 = vmatmul.mubr.f32.gmra.mxu0 %v2077
      %v2266 = vpop.f32.mrf.mxu0
      %v2267 = vadd.f32 %v2037, %v2266
      %v2268 = vpop.f32.mrf.mxu0
      %2269 = vmatprep.mubr.f32.mxu0 0.0
      %2270 = vmatmul.mubr.f32.gmra.mxu0 %v2080
      %v2271 = vpop.f32.mrf.mxu0
      %v2272 = vadd.f32 %v2037, %v2271
      %v2273 = vpop.f32.mrf.mxu0
      %2274 = vmatprep.mubr.f32.mxu0 0.0
      %2275 = vmatmul.mubr.f32.gmra.mxu0 %v2083
      %v2276 = vpop.f32.mrf.mxu0
      %v2277 = vadd.f32 %v2037, %v2276
      %v2278 = vpop.f32.mrf.mxu0
      %2279 = vmatprep.mubr.f32.mxu0 0.0
      %2280 = vmatmul.mubr.f32.gmra.mxu0 %v2086
      %v2281 = vpop.f32.mrf.mxu0
      %v2282 = vadd.f32 %v2037, %v2281
      %v2283 = vpop.f32.mrf.mxu0
      %2284 = vmatprep.mubr.f32.mxu0 0.0
      %2285 = vmatmul.mubr.f32.gmra.mxu0 %v2089
      %v2286 = vpop.f32.mrf.mxu0
      %v2287 = vadd.f32 %v2037, %v2286
      %v2288 = vpop.f32.mrf.mxu0
      %2289 = vmatprep.mubr.f32.mxu0 0.0
      %2290 = vmatmul.mubr.f32.gmra.mxu0 %v2092
      %v2291 = vpop.f32.mrf.mxu0
      %v2292 = vadd.f32 %v2037, %v2291
      %v2293 = vpop.f32.mrf.mxu0
      %2294 = vmatprep.mubr.f32.mxu0 0.0
      %2295 = vmatmul.mubr.f32.gmra.mxu0 %v2095
      %v2296 = vpop.f32.mrf.mxu0
      %v2297 = vadd.f32 %v2037, %v2296
      %v2298 = vpop.f32.mrf.mxu0
      %2299 = vmatprep.mubr.f32.mxu0 0.0
      %2300 = vmatmul.mubr.f32.gmra.mxu0 %v2098
      %v2301 = vpop.f32.mrf.mxu0
      %v2302 = vadd.f32 %v2037, %v2301
      %v2303 = vpop.f32.mrf.mxu0
      %2304 = vmatprep.mubr.f32.mxu0 0.0
      %2305 = vmatmul.mubr.f32.gmra.mxu0 %v2101
      %v2306 = vpop.f32.mrf.mxu0
      %v2307 = vadd.f32 %v2037, %v2306
      %v2308 = vpop.f32.mrf.mxu0
      %2309 = vmatprep.mubr.f32.mxu0 0.0
      %2310 = vmatmul.mubr.f32.gmra.mxu0 %v2104
      %v2311 = vpop.f32.mrf.mxu0
      %v2312 = vadd.f32 %v2037, %v2311
      %v2313 = vpop.f32.mrf.mxu0
      %2314 = vmatprep.mubr.f32.mxu0 0.0
      %2315 = vmatmul.mubr.f32.gmra.mxu0 %v2107
      %v2316 = vpop.f32.mrf.mxu0
      %v2317 = vadd.f32 %v2037, %v2316
      %v2318 = vpop.f32.mrf.mxu0
      %2319 = vmatprep.mubr.f32.mxu0 0.0
      %2320 = vmatmul.mubr.f32.gmra.mxu0 %v2110
      %v2321 = vpop.f32.mrf.mxu0
      %v2322 = vadd.f32 %v2037, %v2321
      %v2323 = vpop.f32.mrf.mxu0
      %2324 = vmatprep.mubr.f32.mxu0 0.0
      %2325 = vmatmul.mubr.f32.gmra.mxu0 %v2113
      %v2326 = vpop.f32.mrf.mxu0
      %v2327 = vadd.f32 %v2037, %v2326
      %v2328 = vpop.f32.mrf.mxu0
      %2329 = vmatprep.mubr.f32.mxu0 0.0
      %2330 = vmatmul.mubr.f32.gmra.mxu0 %v2116
      %v2331 = vpop.f32.mrf.mxu0
      %v2332 = vadd.f32 %v2037, %v2331
      %v2333 = vpop.f32.mrf.mxu0
      %2334 = vmatprep.mubr.f32.mxu0 0.0
      %2335 = vmatmul.mubr.f32.gmra.mxu0 %v2119
      %v2336 = vpop.f32.mrf.mxu0
      %v2337 = vadd.f32 %v2037, %v2336
      %v2338 = vpop.f32.mrf.mxu0
      %2339 = vmatprep.mubr.f32.mxu0 0.0
      %2340 = vmatmul.mubr.f32.gmra.mxu0 %v2122
      %v2341 = vpop.f32.mrf.mxu0
      %v2342 = vadd.f32 %v2037, %v2341
      %v2343 = vpop.f32.mrf.mxu0
      %2344 = vmatprep.mubr.f32.mxu0 0.0
      %2345 = vmatmul.mubr.f32.gmra.mxu0 %v2125
      %v2346 = vpop.f32.mrf.mxu0
      %v2347 = vadd.f32 %v2037, %v2346
      %v2348 = vpop.f32.mrf.mxu0
      %2349 = vmatprep.mubr.f32.mxu0 0.0
      %2350 = vmatmul.mubr.f32.gmra.mxu0 %v2128
      %v2351 = vpop.f32.mrf.mxu0
      %v2352 = vadd.f32 %v2037, %v2351
      %v2353 = vpop.f32.mrf.mxu0
      %2354 = vmatprep.mubr.f32.mxu0 0.0
      %2355 = vmatmul.mubr.f32.gmra.mxu0 %v2131
      %v2356 = vpop.f32.mrf.mxu0
      %v2357 = vadd.f32 %v2037, %v2356
      %v2358 = vpop.f32.mrf.mxu0
      %2359 = vmatprep.mubr.f32.mxu0 0.0
      %2360 = vmatmul.mubr.f32.gmra.mxu0 %v2134
      %v2361 = vpop.f32.mrf.mxu0
      %v2362 = vadd.f32 %v2037, %v2361
      %v2363 = vpop.f32.mrf.mxu0
      %2364 = vdwg.mxu0
      %v2365 = vmax.f32 %v2207, 0.0
      %v2366 = vmax.f32 %v2212, 0.0
      %v2367 = vmax.f32 %v2217, 0.0
      %v2368 = vmax.f32 %v2222, 0.0
      %v2369 = vmax.f32 %v2227, 0.0
      %v2370 = vmax.f32 %v2232, 0.0
      %v2371 = vmax.f32 %v2237, 0.0
      %v2372 = vmax.f32 %v2242, 0.0
      %v2373 = vmax.f32 %v2247, 0.0
      %v2374 = vmax.f32 %v2252, 0.0
      %v2375 = vmax.f32 %v2257, 0.0
      %v2376 = vmax.f32 %v2262, 0.0
      %v2377 = vmax.f32 %v2267, 0.0
      %v2378 = vmax.f32 %v2272, 0.0
      %v2379 = vmax.f32 %v2277, 0.0
      %v2380 = vmax.f32 %v2282, 0.0
      %v2381 = vmax.f32 %v2287, 0.0
      %v2382 = vmax.f32 %v2292, 0.0
      %v2383 = vmax.f32 %v2297, 0.0
      %v2384 = vmax.f32 %v2302, 0.0
      %v2385 = vmax.f32 %v2307, 0.0
      %v2386 = vmax.f32 %v2312, 0.0
      %v2387 = vmax.f32 %v2317, 0.0
      %v2388 = vmax.f32 %v2322, 0.0
      %v2389 = vmax.f32 %v2327, 0.0
      %v2390 = vmax.f32 %v2332, 0.0
      %v2391 = vmax.f32 %v2337, 0.0
      %v2392 = vmax.f32 %v2342, 0.0
      %v2393 = vmax.f32 %v2347, 0.0
      %v2394 = vmax.f32 %v2352, 0.0
      %v2395 = vmax.f32 %v2357, 0.0
      %v2396 = vmax.f32 %v2362, 0.0
      %v2397 = vxor.u32 %v2365, 2147483648
      %v2398 = vxor.u32 %v2366, 2147483648
      %v2399 = vxor.u32 %v2367, 2147483648
      %v2400 = vxor.u32 %v2368, 2147483648
      %v2401 = vxor.u32 %v2369, 2147483648
      %v2402 = vxor.u32 %v2370, 2147483648
      %v2403 = vxor.u32 %v2371, 2147483648
      %v2404 = vxor.u32 %v2372, 2147483648
      %v2405 = vxor.u32 %v2373, 2147483648
      %v2406 = vxor.u32 %v2374, 2147483648
      %v2407 = vxor.u32 %v2375, 2147483648
      %v2408 = vxor.u32 %v2376, 2147483648
      %v2409 = vxor.u32 %v2377, 2147483648
      %v2410 = vxor.u32 %v2378, 2147483648
      %v2411 = vxor.u32 %v2379, 2147483648
      %v2412 = vxor.u32 %v2380, 2147483648
      %v2413 = vxor.u32 %v2381, 2147483648
      %v2414 = vxor.u32 %v2382, 2147483648
      %v2415 = vxor.u32 %v2383, 2147483648
      %v2416 = vxor.u32 %v2384, 2147483648
      %v2417 = vxor.u32 %v2385, 2147483648
      %v2418 = vxor.u32 %v2386, 2147483648
      %v2419 = vxor.u32 %v2387, 2147483648
      %v2420 = vxor.u32 %v2388, 2147483648
      %v2421 = vxor.u32 %v2389, 2147483648
      %v2422 = vxor.u32 %v2390, 2147483648
      %v2423 = vxor.u32 %v2391, 2147483648
      %v2424 = vxor.u32 %v2392, 2147483648
      %v2425 = vxor.u32 %v2393, 2147483648
      %v2426 = vxor.u32 %v2394, 2147483648
      %v2427 = vxor.u32 %v2395, 2147483648
      %v2428 = vxor.u32 %v2396, 2147483648
      %v2429 = vmul.f32 %v2397, 1.442695
      %v2430 = vpow.pop %v2429
      %v2431 = vmul.f32 %v2398, 1.442695
      %v2432 = vpow.pop %v2431
      %v2433 = vmul.f32 %v2399, 1.442695
      %v2434 = vpow.pop %v2433
      %v2435 = vmul.f32 %v2400, 1.442695
      %v2436 = vpow.pop %v2435
      %v2437 = vmul.f32 %v2401, 1.442695
      %v2438 = vpow.pop %v2437
      %v2439 = vmul.f32 %v2402, 1.442695
      %v2440 = vpow.pop %v2439
      %v2441 = vmul.f32 %v2403, 1.442695
      %v2442 = vpow.pop %v2441
      %v2443 = vmul.f32 %v2404, 1.442695
      %v2444 = vpow.pop %v2443
      %v2445 = vmul.f32 %v2405, 1.442695
      %v2446 = vpow.pop %v2445
      %v2447 = vmul.f32 %v2406, 1.442695
      %v2448 = vpow.pop %v2447
      %v2449 = vmul.f32 %v2407, 1.442695
      %v2450 = vpow.pop %v2449
      %v2451 = vmul.f32 %v2408, 1.442695
      %v2452 = vpow.pop %v2451
      %v2453 = vmul.f32 %v2409, 1.442695
      %v2454 = vpow.pop %v2453
      %v2455 = vmul.f32 %v2410, 1.442695
      %v2456 = vpow.pop %v2455
      %v2457 = vmul.f32 %v2411, 1.442695
      %v2458 = vpow.pop %v2457
      %v2459 = vmul.f32 %v2412, 1.442695
      %v2460 = vpow.pop %v2459
      %v2461 = vmul.f32 %v2413, 1.442695
      %v2462 = vpow.pop %v2461
      %v2463 = vmul.f32 %v2414, 1.442695
      %v2464 = vpow.pop %v2463
      %v2465 = vmul.f32 %v2415, 1.442695
      %v2466 = vpow.pop %v2465
      %v2467 = vmul.f32 %v2416, 1.442695
      %v2468 = vpow.pop %v2467
      %v2469 = vmul.f32 %v2417, 1.442695
      %v2470 = vpow.pop %v2469
      %v2471 = vmul.f32 %v2418, 1.442695
      %v2472 = vpow.pop %v2471
      %v2473 = vmul.f32 %v2419, 1.442695
      %v2474 = vpow.pop %v2473
      %v2475 = vmul.f32 %v2420, 1.442695
      %v2476 = vpow.pop %v2475
      %v2477 = vmul.f32 %v2421, 1.442695
      %v2478 = vpow.pop %v2477
      %v2479 = vmul.f32 %v2422, 1.442695
      %v2480 = vpow.pop %v2479
      %v2481 = vmul.f32 %v2423, 1.442695
      %v2482 = vpow.pop %v2481
      %v2483 = vmul.f32 %v2424, 1.442695
      %v2484 = vpow.pop %v2483
      %v2485 = vmul.f32 %v2425, 1.442695
      %v2486 = vpow.pop %v2485
      %v2487 = vmul.f32 %v2426, 1.442695
      %v2488 = vpow.pop %v2487
      %v2489 = vmul.f32 %v2427, 1.442695
      %v2490 = vpow.pop %v2489
      %v2491 = vmul.f32 %v2428, 1.442695
      %v2492 = vpow.pop %v2491
      %v2493 = vadd.f32 %v2430, 1.0
      %v2494 = vadd.f32 %v2432, 1.0
      %v2495 = vadd.f32 %v2434, 1.0
      %v2496 = vadd.f32 %v2436, 1.0
      %v2497 = vadd.f32 %v2438, 1.0
      %v2498 = vadd.f32 %v2440, 1.0
      %v2499 = vadd.f32 %v2442, 1.0
      %v2500 = vadd.f32 %v2444, 1.0
      %v2501 = vadd.f32 %v2446, 1.0
      %v2502 = vadd.f32 %v2448, 1.0
      %v2503 = vadd.f32 %v2450, 1.0
      %v2504 = vadd.f32 %v2452, 1.0
      %v2505 = vadd.f32 %v2454, 1.0
      %v2506 = vadd.f32 %v2456, 1.0
      %v2507 = vadd.f32 %v2458, 1.0
      %v2508 = vadd.f32 %v2460, 1.0
      %v2509 = vadd.f32 %v2462, 1.0
      %v2510 = vadd.f32 %v2464, 1.0
      %v2511 = vadd.f32 %v2466, 1.0
      %v2512 = vadd.f32 %v2468, 1.0
      %v2513 = vadd.f32 %v2470, 1.0
      %v2514 = vadd.f32 %v2472, 1.0
      %v2515 = vadd.f32 %v2474, 1.0
      %v2516 = vadd.f32 %v2476, 1.0
      %v2517 = vadd.f32 %v2478, 1.0
      %v2518 = vadd.f32 %v2480, 1.0
      %v2519 = vadd.f32 %v2482, 1.0
      %v2520 = vadd.f32 %v2484, 1.0
      %v2521 = vadd.f32 %v2486, 1.0
      %v2522 = vadd.f32 %v2488, 1.0
      %v2523 = vadd.f32 %v2490, 1.0
      %v2524 = vadd.f32 %v2492, 1.0
      %v2525 = vrcp.pop %v2493
      %v2526 = vmul.f32 1.0, %v2525
      %v2527 = vrcp.pop %v2494
      %v2528 = vmul.f32 1.0, %v2527
      %v2529 = vrcp.pop %v2495
      %v2530 = vmul.f32 1.0, %v2529
      %v2531 = vrcp.pop %v2496
      %v2532 = vmul.f32 1.0, %v2531
      %v2533 = vrcp.pop %v2497
      %v2534 = vmul.f32 1.0, %v2533
      %v2535 = vrcp.pop %v2498
      %v2536 = vmul.f32 1.0, %v2535
      %v2537 = vrcp.pop %v2499
      %v2538 = vmul.f32 1.0, %v2537
      %v2539 = vrcp.pop %v2500
      %v2540 = vmul.f32 1.0, %v2539
      %v2541 = vrcp.pop %v2501
      %v2542 = vmul.f32 1.0, %v2541
      %v2543 = vrcp.pop %v2502
      %v2544 = vmul.f32 1.0, %v2543
      %v2545 = vrcp.pop %v2503
      %v2546 = vmul.f32 1.0, %v2545
      %v2547 = vrcp.pop %v2504
      %v2548 = vmul.f32 1.0, %v2547
      %v2549 = vrcp.pop %v2505
      %v2550 = vmul.f32 1.0, %v2549
      %v2551 = vrcp.pop %v2506
      %v2552 = vmul.f32 1.0, %v2551
      %v2553 = vrcp.pop %v2507
      %v2554 = vmul.f32 1.0, %v2553
      %v2555 = vrcp.pop %v2508
      %v2556 = vmul.f32 1.0, %v2555
      %v2557 = vrcp.pop %v2509
      %v2558 = vmul.f32 1.0, %v2557
      %v2559 = vrcp.pop %v2510
      %v2560 = vmul.f32 1.0, %v2559
      %v2561 = vrcp.pop %v2511
      %v2562 = vmul.f32 1.0, %v2561
      %v2563 = vrcp.pop %v2512
      %v2564 = vmul.f32 1.0, %v2563
      %v2565 = vrcp.pop %v2513
      %v2566 = vmul.f32 1.0, %v2565
      %v2567 = vrcp.pop %v2514
      %v2568 = vmul.f32 1.0, %v2567
      %v2569 = vrcp.pop %v2515
      %v2570 = vmul.f32 1.0, %v2569
      %v2571 = vrcp.pop %v2516
      %v2572 = vmul.f32 1.0, %v2571
      %v2573 = vrcp.pop %v2517
      %v2574 = vmul.f32 1.0, %v2573
      %v2575 = vrcp.pop %v2518
      %v2576 = vmul.f32 1.0, %v2575
      %v2577 = vrcp.pop %v2519
      %v2578 = vmul.f32 1.0, %v2577
      %v2579 = vrcp.pop %v2520
      %v2580 = vmul.f32 1.0, %v2579
      %v2581 = vrcp.pop %v2521
      %v2582 = vmul.f32 1.0, %v2581
      %v2583 = vrcp.pop %v2522
      %v2584 = vmul.f32 1.0, %v2583
      %v2585 = vrcp.pop %v2523
      %v2586 = vmul.f32 1.0, %v2585
      %v2587 = vrcp.pop %v2524
      %v2588 = vmul.f32 1.0, %v2587
      %vm2589 = vcmask 64512
      %2590 = vst.msk [vmem:[%s259] sm:$0xff] %vm2589, %v2526
      %2591 = vst.msk [vmem:[%s259 + $0x8] sm:$0xff] %vm2589, %v2528
      %2592 = vst.msk [vmem:[%s259 + $0x10] sm:$0xff] %vm2589, %v2530
      %2593 = vst.msk [vmem:[%s259 + $0x18] sm:$0xff] %vm2589, %v2532
      %2594 = vst.msk [vmem:[%s259 + $0x20] sm:$0xff] %vm2589, %v2534
      %2595 = vst.msk [vmem:[%s259 + $0x28] sm:$0xff] %vm2589, %v2536
      %2596 = vst.msk [vmem:[%s259 + $0x30] sm:$0xff] %vm2589, %v2538
      %2597 = vst.msk [vmem:[%s259 + $0x38] sm:$0xff] %vm2589, %v2540
      %2598 = vst.msk [vmem:[%s259 + $0x40] sm:$0xff] %vm2589, %v2542
      %2599 = vst.msk [vmem:[%s259 + $0x48] sm:$0xff] %vm2589, %v2544
      %2600 = vst.msk [vmem:[%s259 + $0x50] sm:$0xff] %vm2589, %v2546
      %2601 = vst.msk [vmem:[%s259 + $0x58] sm:$0xff] %vm2589, %v2548
      %2602 = vst.msk [vmem:[%s259 + $0x60] sm:$0xff] %vm2589, %v2550
      %2603 = vst.msk [vmem:[%s259 + $0x68] sm:$0xff] %vm2589, %v2552
      %2604 = vst.msk [vmem:[%s259 + $0x70] sm:$0xff] %vm2589, %v2554
      %2605 = vst.msk [vmem:[%s259 + $0x78] sm:$0xff] %vm2589, %v2556
      %2606 = vst.msk [vmem:[%s259 + $0x80] sm:$0xff] %vm2589, %v2558
      %2607 = vst.msk [vmem:[%s259 + $0x88] sm:$0xff] %vm2589, %v2560
      %2608 = vst.msk [vmem:[%s259 + $0x90] sm:$0xff] %vm2589, %v2562
      %2609 = vst.msk [vmem:[%s259 + $0x98] sm:$0xff] %vm2589, %v2564
      %2610 = vst.msk [vmem:[%s259 + $0xa0] sm:$0xff] %vm2589, %v2566
      %2611 = vst.msk [vmem:[%s259 + $0xa8] sm:$0xff] %vm2589, %v2568
      %2612 = vst.msk [vmem:[%s259 + $0xb0] sm:$0xff] %vm2589, %v2570
      %2613 = vst.msk [vmem:[%s259 + $0xb8] sm:$0xff] %vm2589, %v2572
      %2614 = vst.msk [vmem:[%s259 + $0xc0] sm:$0xff] %vm2589, %v2574
      %2615 = vst.msk [vmem:[%s259 + $0xc8] sm:$0xff] %vm2589, %v2576
      %2616 = vst.msk [vmem:[%s259 + $0xd0] sm:$0xff] %vm2589, %v2578
      %2617 = vst.msk [vmem:[%s259 + $0xd8] sm:$0xff] %vm2589, %v2580
      %2618 = vst.msk [vmem:[%s259 + $0xe0] sm:$0xff] %vm2589, %v2582
      %2619 = vst.msk [vmem:[%s259 + $0xe8] sm:$0xff] %vm2589, %v2584
      %2620 = vst.msk [vmem:[%s259 + $0xf0] sm:$0xff] %vm2589, %v2586
      %2621 = vst.msk [vmem:[%s259 + $0xf8] sm:$0xff] %vm2589, %v2588
      %2622 = vst.msk [vmem:[#allocation6] sm:$0xff] %vm2589, %v2365
      %2623 = vst.msk [vmem:[#allocation6 + $0x8] sm:$0xff] %vm2589, %v2366
      %2624 = vst.msk [vmem:[#allocation6 + $0x10] sm:$0xff] %vm2589, %v2367
      %2625 = vst.msk [vmem:[#allocation6 + $0x18] sm:$0xff] %vm2589, %v2368
      %2626 = vst.msk [vmem:[#allocation6 + $0x20] sm:$0xff] %vm2589, %v2369
      %2627 = vst.msk [vmem:[#allocation6 + $0x28] sm:$0xff] %vm2589, %v2370
      %2628 = vst.msk [vmem:[#allocation6 + $0x30] sm:$0xff] %vm2589, %v2371
      %2629 = vst.msk [vmem:[#allocation6 + $0x38] sm:$0xff] %vm2589, %v2372
      %2630 = vst.msk [vmem:[#allocation6 + $0x40] sm:$0xff] %vm2589, %v2373
      %2631 = vst.msk [vmem:[#allocation6 + $0x48] sm:$0xff] %vm2589, %v2374
      %2632 = vst.msk [vmem:[#allocation6 + $0x50] sm:$0xff] %vm2589, %v2375
      %2633 = vst.msk [vmem:[#allocation6 + $0x58] sm:$0xff] %vm2589, %v2376
      %2634 = vst.msk [vmem:[#allocation6 + $0x60] sm:$0xff] %vm2589, %v2377
      %2635 = vst.msk [vmem:[#allocation6 + $0x68] sm:$0xff] %vm2589, %v2378
      %2636 = vst.msk [vmem:[#allocation6 + $0x70] sm:$0xff] %vm2589, %v2379
      %2637 = vst.msk [vmem:[#allocation6 + $0x78] sm:$0xff] %vm2589, %v2380
      %2638 = vst.msk [vmem:[#allocation6 + $0x80] sm:$0xff] %vm2589, %v2381
      %2639 = vst.msk [vmem:[#allocation6 + $0x88] sm:$0xff] %vm2589, %v2382
      %2640 = vst.msk [vmem:[#allocation6 + $0x90] sm:$0xff] %vm2589, %v2383
      %2641 = vst.msk [vmem:[#allocation6 + $0x98] sm:$0xff] %vm2589, %v2384
      %2642 = vst.msk [vmem:[#allocation6 + $0xa0] sm:$0xff] %vm2589, %v2385
      %2643 = vst.msk [vmem:[#allocation6 + $0xa8] sm:$0xff] %vm2589, %v2386
      %2644 = vst.msk [vmem:[#allocation6 + $0xb0] sm:$0xff] %vm2589, %v2387
      %2645 = vst.msk [vmem:[#allocation6 + $0xb8] sm:$0xff] %vm2589, %v2388
      %2646 = vst.msk [vmem:[#allocation6 + $0xc0] sm:$0xff] %vm2589, %v2389
      %2647 = vst.msk [vmem:[#allocation6 + $0xc8] sm:$0xff] %vm2589, %v2390
      %2648 = vst.msk [vmem:[#allocation6 + $0xd0] sm:$0xff] %vm2589, %v2391
      %2649 = vst.msk [vmem:[#allocation6 + $0xd8] sm:$0xff] %vm2589, %v2392
      %2650 = vst.msk [vmem:[#allocation6 + $0xe0] sm:$0xff] %vm2589, %v2393
      %2651 = vst.msk [vmem:[#allocation6 + $0xe8] sm:$0xff] %vm2589, %v2394
      %2652 = vst.msk [vmem:[#allocation6 + $0xf0] sm:$0xff] %vm2589, %v2395
      %2653 = vst.msk [vmem:[#allocation6 + $0xf8] sm:$0xff] %vm2589, %v2396
      %v2654 = vld [vmem:[#allocation6] sm:$0xff]
      %v2655 = vld [vmem:[#allocation6 + $0x8] sm:$0xff]
      %v2656 = vld [vmem:[#allocation6 + $0x20] sm:$0xff]
      %v2657 = vld [vmem:[#allocation6 + $0x28] sm:$0xff]
      %v2658 = vld [vmem:[#allocation6 + $0x40] sm:$0xff]
      %v2659 = vld [vmem:[#allocation6 + $0x48] sm:$0xff]
      %v2660 = vld [vmem:[#allocation6 + $0x60] sm:$0xff]
      %v2661 = vld [vmem:[#allocation6 + $0x68] sm:$0xff]
      %v2662 = vld [vmem:[#allocation6 + $0x80] sm:$0xff]
      %v2663 = vld [vmem:[#allocation6 + $0x88] sm:$0xff]
      %v2664 = vld [vmem:[#allocation6 + $0xa0] sm:$0xff]
      %v2665 = vld [vmem:[#allocation6 + $0xa8] sm:$0xff]
      %v2666 = vld [vmem:[#allocation6 + $0xc0] sm:$0xff]
      %v2667 = vld [vmem:[#allocation6 + $0xc8] sm:$0xff]
      %v2668 = vld [vmem:[#allocation6 + $0xe0] sm:$0xff]
      %v2669 = vld [vmem:[#allocation6 + $0xe8] sm:$0xff]
      %s2670 = scalar_lea.vmem [#allocation6], 16
      %v2671 = vld [vmem:[%s2670] sm:$0xff]
      %v2672 = vld [vmem:[%s2670 + $0x8] sm:$0xff]
      %v2673 = vld [vmem:[%s2670 + $0x20] sm:$0xff]
      %v2674 = vld [vmem:[%s2670 + $0x28] sm:$0xff]
      %v2675 = vld [vmem:[%s2670 + $0x40] sm:$0xff]
      %v2676 = vld [vmem:[%s2670 + $0x48] sm:$0xff]
      %v2677 = vld [vmem:[%s2670 + $0x60] sm:$0xff]
      %v2678 = vld [vmem:[%s2670 + $0x68] sm:$0xff]
      %v2679 = vld [vmem:[%s2670 + $0x80] sm:$0xff]
      %v2680 = vld [vmem:[%s2670 + $0x88] sm:$0xff]
      %v2681 = vld [vmem:[%s2670 + $0xa0] sm:$0xff]
      %v2682 = vld [vmem:[%s2670 + $0xa8] sm:$0xff]
      %v2683 = vld [vmem:[%s2670 + $0xc0] sm:$0xff]
      %v2684 = vld [vmem:[%s2670 + $0xc8] sm:$0xff]
      %v2685 = vld [vmem:[%s2670 + $0xe0] sm:$0xff]
      %v2686 = vld [vmem:[%s2670 + $0xe8] sm:$0xff]
      %v2687 = vmax.f32 %v2654, %v2671
      %v2688 = vmax.f32 %v2655, %v2672
      %v2689 = vmax.f32 %v2656, %v2673
      %v2690 = vmax.f32 %v2657, %v2674
      %v2691 = vmax.f32 %v2658, %v2675
      %v2692 = vmax.f32 %v2659, %v2676
      %v2693 = vmax.f32 %v2660, %v2677
      %v2694 = vmax.f32 %v2661, %v2678
      %v2695 = vmax.f32 %v2662, %v2679
      %v2696 = vmax.f32 %v2663, %v2680
      %v2697 = vmax.f32 %v2664, %v2681
      %v2698 = vmax.f32 %v2665, %v2682
      %v2699 = vmax.f32 %v2666, %v2683
      %v2700 = vmax.f32 %v2667, %v2684
      %v2701 = vmax.f32 %v2668, %v2685
      %v2702 = vmax.f32 %v2669, %v2686
      %2703 = vst.msk [vmem:[#allocation7] sm:$0xff] %vm2589, %v2687
      %2704 = vst.msk [vmem:[#allocation7 + $0x8] sm:$0xff] %vm2589, %v2688
      %2705 = vst.msk [vmem:[#allocation7 + $0x10] sm:$0xff] %vm2589, %v2689
      %2706 = vst.msk [vmem:[#allocation7 + $0x18] sm:$0xff] %vm2589, %v2690
      %2707 = vst.msk [vmem:[#allocation7 + $0x20] sm:$0xff] %vm2589, %v2691
      %2708 = vst.msk [vmem:[#allocation7 + $0x28] sm:$0xff] %vm2589, %v2692
      %2709 = vst.msk [vmem:[#allocation7 + $0x30] sm:$0xff] %vm2589, %v2693
      %2710 = vst.msk [vmem:[#allocation7 + $0x38] sm:$0xff] %vm2589, %v2694
      %2711 = vst.msk [vmem:[#allocation7 + $0x40] sm:$0xff] %vm2589, %v2695
      %2712 = vst.msk [vmem:[#allocation7 + $0x48] sm:$0xff] %vm2589, %v2696
      %2713 = vst.msk [vmem:[#allocation7 + $0x50] sm:$0xff] %vm2589, %v2697
      %2714 = vst.msk [vmem:[#allocation7 + $0x58] sm:$0xff] %vm2589, %v2698
      %2715 = vst.msk [vmem:[#allocation7 + $0x60] sm:$0xff] %vm2589, %v2699
      %2716 = vst.msk [vmem:[#allocation7 + $0x68] sm:$0xff] %vm2589, %v2700
      %2717 = vst.msk [vmem:[#allocation7 + $0x70] sm:$0xff] %vm2589, %v2701
      %2718 = vst.msk [vmem:[#allocation7 + $0x78] sm:$0xff] %vm2589, %v2702
      %v2719 = vld [vmem:[#allocation7] ss:$2 sm:$0xff]
      %s2720 = scalar_lea.vmem [#allocation7], 16
      %v2721 = vld [vmem:[%s2720] ss:$2 sm:$0xff]
      %s2722 = scalar_lea.vmem [#allocation7], 32
      %v2723 = vld [vmem:[%s2722] ss:$2 sm:$0xff]
      %s2724 = scalar_lea.vmem [#allocation7], 48
      %v2725 = vld [vmem:[%s2724] ss:$2 sm:$0xff]
      %s2726 = scalar_lea.vmem [#allocation7], 64
      %v2727 = vld [vmem:[%s2726] ss:$2 sm:$0xff]
      %s2728 = scalar_lea.vmem [#allocation7], 80
      %v2729 = vld [vmem:[%s2728] ss:$2 sm:$0xff]
      %s2730 = scalar_lea.vmem [#allocation7], 96
      %v2731 = vld [vmem:[%s2730] ss:$2 sm:$0xff]
      %s2732 = scalar_lea.vmem [#allocation7], 112
      %v2733 = vld [vmem:[%s2732] ss:$2 sm:$0xff]
      %s2734 = scalar_lea.vmem [#allocation7], 1
      %v2735 = vld [vmem:[%s2734] ss:$2 sm:$0xff]
      %s2736 = scalar_lea.vmem [#allocation7], 17
      %v2737 = vld [vmem:[%s2736] ss:$2 sm:$0xff]
      %s2738 = scalar_lea.vmem [#allocation7], 33
      %v2739 = vld [vmem:[%s2738] ss:$2 sm:$0xff]
      %s2740 = scalar_lea.vmem [#allocation7], 49
      %v2741 = vld [vmem:[%s2740] ss:$2 sm:$0xff]
      %s2742 = scalar_lea.vmem [#allocation7], 65
      %v2743 = vld [vmem:[%s2742] ss:$2 sm:$0xff]
      %s2744 = scalar_lea.vmem [#allocation7], 81
      %v2745 = vld [vmem:[%s2744] ss:$2 sm:$0xff]
      %s2746 = scalar_lea.vmem [#allocation7], 97
      %v2747 = vld [vmem:[%s2746] ss:$2 sm:$0xff]
      %s2748 = scalar_lea.vmem [#allocation7], 113
      %v2749 = vld [vmem:[%s2748] ss:$2 sm:$0xff]
      %v2750 = vmax.f32 %v2719, %v2735
      %v2751 = vmax.f32 %v2721, %v2737
      %v2752 = vmax.f32 %v2723, %v2739
      %v2753 = vmax.f32 %v2725, %v2741
      %v2754 = vmax.f32 %v2727, %v2743
      %v2755 = vmax.f32 %v2729, %v2745
      %v2756 = vmax.f32 %v2731, %v2747
      %v2757 = vmax.f32 %v2733, %v2749
      %2758 = vst.msk [vmem:[#allocation4] sm:$0xff] %vm2589, 0.0
      %vm2759 = vcmask 58368
      %2760 = vst.msk [vmem:[#allocation4 + $0x8] sm:$0x3] %vm2759, 0.0
      %2761 = vst.msk [vmem:[#allocation4 + $0x10] sm:$0xff] %vm2589, 0.0
      %2762 = vst.msk [vmem:[#allocation4 + $0x18] sm:$0x3] %vm2759, 0.0
      %2763 = vst.msk [vmem:[#allocation4 + $0x20] sm:$0xff] %vm2589, 0.0
      %2764 = vst.msk [vmem:[#allocation4 + $0x28] sm:$0x3] %vm2759, 0.0
      %2765 = vst.msk [vmem:[#allocation4 + $0x30] sm:$0xff] %vm2589, 0.0
      %2766 = vst.msk [vmem:[#allocation4 + $0x38] sm:$0x3] %vm2759, 0.0
      %2767 = vst.msk [vmem:[#allocation4 + $0x40] sm:$0xff] %vm2589, 0.0
      %2768 = vst.msk [vmem:[#allocation4 + $0x48] sm:$0x3] %vm2759, 0.0
      %2769 = vst.msk [vmem:[#allocation4 + $0x50] sm:$0xff] %vm2589, 0.0
      %2770 = vst.msk [vmem:[#allocation4 + $0x58] sm:$0x3] %vm2759, 0.0
      %2771 = vst.msk [vmem:[#allocation4 + $0x60] sm:$0xff] %vm2589, 0.0
      %2772 = vst.msk [vmem:[#allocation4 + $0x68] sm:$0x3] %vm2759, 0.0
      %2773 = vst.msk [vmem:[#allocation4 + $0x70] sm:$0xff] %vm2589, 0.0
      %2774 = vst.msk [vmem:[#allocation4 + $0x78] sm:$0x3] %vm2759, 0.0
      %2775 = vst.msk [vmem:[#allocation4 + $0x80] sm:$0xff] %vm2589, 0.0
      %2776 = vst.msk [vmem:[#allocation4 + $0x88] sm:$0x3] %vm2759, 0.0
      %2777 = vst.msk [vmem:[#allocation4 + $0x90] sm:$0xff] %vm2589, 0.0
      %2778 = vst.msk [vmem:[#allocation4 + $0x98] sm:$0x3] %vm2759, 0.0
      %s2779 = scalar_lea.vmem [#allocation4], 16
      %2780 = vst.msk [vmem:[%s2779 + $0x1] sm:$0xff] %vm2589, %v2750
      %2781 = vst.msk [vmem:[%s2779 + $0x11] sm:$0xff] %vm2589, %v2751
      %2782 = vst.msk [vmem:[%s2779 + $0x21] sm:$0xff] %vm2589, %v2752
      %2783 = vst.msk [vmem:[%s2779 + $0x31] sm:$0xff] %vm2589, %v2753
      %2784 = vst.msk [vmem:[%s2779 + $0x41] sm:$0xff] %vm2589, %v2754
      %2785 = vst.msk [vmem:[%s2779 + $0x51] sm:$0xff] %vm2589, %v2755
      %2786 = vst.msk [vmem:[%s2779 + $0x61] sm:$0xff] %vm2589, %v2756
      %2787 = vst.msk [vmem:[%s2779 + $0x71] sm:$0xff] %vm2589, %v2757
      %v2788 = vld [vmem:[#allocation4] sm:$0xff]
      %v2789 = vld [vmem:[#allocation4 + $0x10] sm:$0xff]
      %v2790 = vld [vmem:[#allocation4 + $0x20] sm:$0xff]
      %v2791 = vld [vmem:[#allocation4 + $0x30] sm:$0xff]
      %v2792 = vld [vmem:[#allocation4 + $0x40] sm:$0xff]
      %v2793 = vld [vmem:[#allocation4 + $0x50] sm:$0xff]
      %v2794 = vld [vmem:[#allocation4 + $0x60] sm:$0xff]
      %v2795 = vld [vmem:[#allocation4 + $0x70] sm:$0xff]
      %2796 = vst.msk [vmem:[#allocation5] sm:$0xff] %vm2589, %v2788
      %2797 = vst.msk [vmem:[#allocation5 + $0x8] sm:$0xff] %vm2589, %v2789
      %2798 = vst.msk [vmem:[#allocation5 + $0x10] sm:$0xff] %vm2589, %v2790
      %2799 = vst.msk [vmem:[#allocation5 + $0x18] sm:$0xff] %vm2589, %v2791
      %2800 = vst.msk [vmem:[#allocation5 + $0x20] sm:$0xff] %vm2589, %v2792
      %2801 = vst.msk [vmem:[#allocation5 + $0x28] sm:$0xff] %vm2589, %v2793
      %2802 = vst.msk [vmem:[#allocation5 + $0x30] sm:$0xff] %vm2589, %v2794
      %2803 = vst.msk [vmem:[#allocation5 + $0x38] sm:$0xff] %vm2589, %v2795
      %v2804 = vld [vmem:[#allocation4 + $0x1] sm:$0xff]
      %v2805 = vld [vmem:[#allocation4 + $0x11] sm:$0xff]
      %v2806 = vld [vmem:[#allocation4 + $0x21] sm:$0xff]
      %v2807 = vld [vmem:[#allocation4 + $0x31] sm:$0xff]
      %v2808 = vld [vmem:[#allocation4 + $0x41] sm:$0xff]
      %v2809 = vld [vmem:[#allocation4 + $0x51] sm:$0xff]
      %v2810 = vld [vmem:[#allocation4 + $0x61] sm:$0xff]
      %v2811 = vld [vmem:[#allocation4 + $0x71] sm:$0xff]
      %2820 = vrot.lane.b32.xlu0 %v2804, 8
      %v2821 = vpop.permute.xlu0 %2820
      %2822 = vrot.lane.b32.xlu0 %v2805, 8
      %v2823 = vpop.permute.xlu0 %2822
      %2824 = vrot.lane.b32.xlu0 %v2806, 8
      %v2825 = vpop.permute.xlu0 %2824
      %2826 = vrot.lane.b32.xlu0 %v2807, 8
      %v2827 = vpop.permute.xlu0 %2826
      %2828 = vrot.lane.b32.xlu0 %v2808, 8
      %v2829 = vpop.permute.xlu0 %2828
      %2830 = vrot.lane.b32.xlu0 %v2809, 8
      %v2831 = vpop.permute.xlu0 %2830
      %2832 = vrot.lane.b32.xlu0 %v2810, 8
      %v2833 = vpop.permute.xlu0 %2832
      %2834 = vrot.lane.b32.xlu0 %v2811, 8
      %v2835 = vpop.permute.xlu0 %2834
      %vm2844 = vcmask 130112
      %2845 = vst.msk [vmem:[#allocation5] sm:$0xff] %vm2844, %v2821
      %2846 = vst.msk [vmem:[#allocation5 + $0x8] sm:$0xff] %vm2844, %v2823
      %2847 = vst.msk [vmem:[#allocation5 + $0x10] sm:$0xff] %vm2844, %v2825
      %2848 = vst.msk [vmem:[#allocation5 + $0x18] sm:$0xff] %vm2844, %v2827
      %2849 = vst.msk [vmem:[#allocation5 + $0x20] sm:$0xff] %vm2844, %v2829
      %2850 = vst.msk [vmem:[#allocation5 + $0x28] sm:$0xff] %vm2844, %v2831
      %2851 = vst.msk [vmem:[#allocation5 + $0x30] sm:$0xff] %vm2844, %v2833
      %2852 = vst.msk [vmem:[#allocation5 + $0x38] sm:$0xff] %vm2844, %v2835
      %v2853 = vld [vmem:[#allocation4 + $0x2] sm:$0xff]
      %v2854 = vld [vmem:[#allocation4 + $0x12] sm:$0xff]
      %v2855 = vld [vmem:[#allocation4 + $0x22] sm:$0xff]
      %v2856 = vld [vmem:[#allocation4 + $0x32] sm:$0xff]
      %v2857 = vld [vmem:[#allocation4 + $0x42] sm:$0xff]
      %v2858 = vld [vmem:[#allocation4 + $0x52] sm:$0xff]
      %v2859 = vld [vmem:[#allocation4 + $0x62] sm:$0xff]
      %v2860 = vld [vmem:[#allocation4 + $0x72] sm:$0xff]
      %2869 = vrot.lane.b32.xlu0 %v2853, 16
      %v2870 = vpop.permute.xlu0 %2869
      %2871 = vrot.lane.b32.xlu0 %v2854, 16
      %v2872 = vpop.permute.xlu0 %2871
      %2873 = vrot.lane.b32.xlu0 %v2855, 16
      %v2874 = vpop.permute.xlu0 %2873
      %2875 = vrot.lane.b32.xlu0 %v2856, 16
      %v2876 = vpop.permute.xlu0 %2875
      %2877 = vrot.lane.b32.xlu0 %v2857, 16
      %v2878 = vpop.permute.xlu0 %2877
      %2879 = vrot.lane.b32.xlu0 %v2858, 16
      %v2880 = vpop.permute.xlu0 %2879
      %2881 = vrot.lane.b32.xlu0 %v2859, 16
      %v2882 = vpop.permute.xlu0 %2881
      %2883 = vrot.lane.b32.xlu0 %v2860, 16
      %v2884 = vpop.permute.xlu0 %2883
      %vm2893 = vcmask 195712
      %2894 = vst.msk [vmem:[#allocation5] sm:$0xff] %vm2893, %v2870
      %2895 = vst.msk [vmem:[#allocation5 + $0x8] sm:$0xff] %vm2893, %v2872
      %2896 = vst.msk [vmem:[#allocation5 + $0x10] sm:$0xff] %vm2893, %v2874
      %2897 = vst.msk [vmem:[#allocation5 + $0x18] sm:$0xff] %vm2893, %v2876
      %2898 = vst.msk [vmem:[#allocation5 + $0x20] sm:$0xff] %vm2893, %v2878
      %2899 = vst.msk [vmem:[#allocation5 + $0x28] sm:$0xff] %vm2893, %v2880
      %2900 = vst.msk [vmem:[#allocation5 + $0x30] sm:$0xff] %vm2893, %v2882
      %2901 = vst.msk [vmem:[#allocation5 + $0x38] sm:$0xff] %vm2893, %v2884
      %v2902 = vld [vmem:[%s2779] sm:$0xff]
      %v2903 = vld [vmem:[%s2779 + $0x10] sm:$0xff]
      %v2904 = vld [vmem:[%s2779 + $0x20] sm:$0xff]
      %v2905 = vld [vmem:[%s2779 + $0x30] sm:$0xff]
      %v2906 = vld [vmem:[%s2779 + $0x40] sm:$0xff]
      %v2907 = vld [vmem:[%s2779 + $0x50] sm:$0xff]
      %v2908 = vld [vmem:[%s2779 + $0x60] sm:$0xff]
      %v2909 = vld [vmem:[%s2779 + $0x70] sm:$0xff]
      %2918 = vrot.lane.b32.xlu0 %v2902, 24
      %v2919 = vpop.permute.xlu0 %2918
      %2920 = vrot.lane.b32.xlu0 %v2903, 24
      %v2921 = vpop.permute.xlu0 %2920
      %2922 = vrot.lane.b32.xlu0 %v2904, 24
      %v2923 = vpop.permute.xlu0 %2922
      %2924 = vrot.lane.b32.xlu0 %v2905, 24
      %v2925 = vpop.permute.xlu0 %2924
      %2926 = vrot.lane.b32.xlu0 %v2906, 24
      %v2927 = vpop.permute.xlu0 %2926
      %2928 = vrot.lane.b32.xlu0 %v2907, 24
      %v2929 = vpop.permute.xlu0 %2928
      %2930 = vrot.lane.b32.xlu0 %v2908, 24
      %v2931 = vpop.permute.xlu0 %2930
      %2932 = vrot.lane.b32.xlu0 %v2909, 24
      %v2933 = vpop.permute.xlu0 %2932
      %vm2942 = vcmask 261312
      %2943 = vst.msk [vmem:[#allocation5] sm:$0xff] %vm2942, %v2919
      %2944 = vst.msk [vmem:[#allocation5 + $0x8] sm:$0xff] %vm2942, %v2921
      %2945 = vst.msk [vmem:[#allocation5 + $0x10] sm:$0xff] %vm2942, %v2923
      %2946 = vst.msk [vmem:[#allocation5 + $0x18] sm:$0xff] %vm2942, %v2925
      %2947 = vst.msk [vmem:[#allocation5 + $0x20] sm:$0xff] %vm2942, %v2927
      %2948 = vst.msk [vmem:[#allocation5 + $0x28] sm:$0xff] %vm2942, %v2929
      %2949 = vst.msk [vmem:[#allocation5 + $0x30] sm:$0xff] %vm2942, %v2931
      %2950 = vst.msk [vmem:[#allocation5 + $0x38] sm:$0xff] %vm2942, %v2933
      %v2951 = vld [vmem:[%s2779 + $0x1] sm:$0xff]
      %v2952 = vld [vmem:[%s2779 + $0x11] sm:$0xff]
      %v2953 = vld [vmem:[%s2779 + $0x21] sm:$0xff]
      %v2954 = vld [vmem:[%s2779 + $0x31] sm:$0xff]
      %v2955 = vld [vmem:[%s2779 + $0x41] sm:$0xff]
      %v2956 = vld [vmem:[%s2779 + $0x51] sm:$0xff]
      %v2957 = vld [vmem:[%s2779 + $0x61] sm:$0xff]
      %v2958 = vld [vmem:[%s2779 + $0x71] sm:$0xff]
      %2967 = vrot.lane.b32.xlu0 %v2951, 32
      %v2968 = vpop.permute.xlu0 %2967
      %2969 = vrot.lane.b32.xlu0 %v2952, 32
      %v2970 = vpop.permute.xlu0 %2969
      %2971 = vrot.lane.b32.xlu0 %v2953, 32
      %v2972 = vpop.permute.xlu0 %2971
      %2973 = vrot.lane.b32.xlu0 %v2954, 32
      %v2974 = vpop.permute.xlu0 %2973
      %2975 = vrot.lane.b32.xlu0 %v2955, 32
      %v2976 = vpop.permute.xlu0 %2975
      %2977 = vrot.lane.b32.xlu0 %v2956, 32
      %v2978 = vpop.permute.xlu0 %2977
      %2979 = vrot.lane.b32.xlu0 %v2957, 32
      %v2980 = vpop.permute.xlu0 %2979
      %2981 = vrot.lane.b32.xlu0 %v2958, 32
      %v2982 = vpop.permute.xlu0 %2981
      %vm2991 = vcmask 326912
      %2992 = vst.msk [vmem:[#allocation5] sm:$0xff] %vm2991, %v2968
      %2993 = vst.msk [vmem:[#allocation5 + $0x8] sm:$0xff] %vm2991, %v2970
      %2994 = vst.msk [vmem:[#allocation5 + $0x10] sm:$0xff] %vm2991, %v2972
      %2995 = vst.msk [vmem:[#allocation5 + $0x18] sm:$0xff] %vm2991, %v2974
      %2996 = vst.msk [vmem:[#allocation5 + $0x20] sm:$0xff] %vm2991, %v2976
      %2997 = vst.msk [vmem:[#allocation5 + $0x28] sm:$0xff] %vm2991, %v2978
      %2998 = vst.msk [vmem:[#allocation5 + $0x30] sm:$0xff] %vm2991, %v2980
      %2999 = vst.msk [vmem:[#allocation5 + $0x38] sm:$0xff] %vm2991, %v2982
      %v3000 = vld [vmem:[%s2779 + $0x2] sm:$0xff]
      %v3001 = vld [vmem:[%s2779 + $0x12] sm:$0xff]
      %v3002 = vld [vmem:[%s2779 + $0x22] sm:$0xff]
      %v3003 = vld [vmem:[%s2779 + $0x32] sm:$0xff]
      %v3004 = vld [vmem:[%s2779 + $0x42] sm:$0xff]
      %v3005 = vld [vmem:[%s2779 + $0x52] sm:$0xff]
      %v3006 = vld [vmem:[%s2779 + $0x62] sm:$0xff]
      %v3007 = vld [vmem:[%s2779 + $0x72] sm:$0xff]
      %3016 = vrot.lane.b32.xlu0 %v3000, 40
      %v3017 = vpop.permute.xlu0 %3016
      %3018 = vrot.lane.b32.xlu0 %v3001, 40
      %v3019 = vpop.permute.xlu0 %3018
      %3020 = vrot.lane.b32.xlu0 %v3002, 40
      %v3021 = vpop.permute.xlu0 %3020
      %3022 = vrot.lane.b32.xlu0 %v3003, 40
      %v3023 = vpop.permute.xlu0 %3022
      %3024 = vrot.lane.b32.xlu0 %v3004, 40
      %v3025 = vpop.permute.xlu0 %3024
      %3026 = vrot.lane.b32.xlu0 %v3005, 40
      %v3027 = vpop.permute.xlu0 %3026
      %3028 = vrot.lane.b32.xlu0 %v3006, 40
      %v3029 = vpop.permute.xlu0 %3028
      %3030 = vrot.lane.b32.xlu0 %v3007, 40
      %v3031 = vpop.permute.xlu0 %3030
      %vm3040 = vcmask 392512
      %3041 = vst.msk [vmem:[#allocation5] sm:$0xff] %vm3040, %v3017
      %3042 = vst.msk [vmem:[#allocation5 + $0x8] sm:$0xff] %vm3040, %v3019
      %3043 = vst.msk [vmem:[#allocation5 + $0x10] sm:$0xff] %vm3040, %v3021
      %3044 = vst.msk [vmem:[#allocation5 + $0x18] sm:$0xff] %vm3040, %v3023
      %3045 = vst.msk [vmem:[#allocation5 + $0x20] sm:$0xff] %vm3040, %v3025
      %3046 = vst.msk [vmem:[#allocation5 + $0x28] sm:$0xff] %vm3040, %v3027
      %3047 = vst.msk [vmem:[#allocation5 + $0x30] sm:$0xff] %vm3040, %v3029
      %3048 = vst.msk [vmem:[#allocation5 + $0x38] sm:$0xff] %vm3040, %v3031
      %s3049 = scalar_lea.vmem [#allocation4], 32
      %v3050 = vld [vmem:[%s3049] sm:$0xff]
      %v3051 = vld [vmem:[%s3049 + $0x10] sm:$0xff]
      %v3052 = vld [vmem:[%s3049 + $0x20] sm:$0xff]
      %v3053 = vld [vmem:[%s3049 + $0x30] sm:$0xff]
      %v3054 = vld [vmem:[%s3049 + $0x40] sm:$0xff]
      %v3055 = vld [vmem:[%s3049 + $0x50] sm:$0xff]
      %v3056 = vld [vmem:[%s3049 + $0x60] sm:$0xff]
      %v3057 = vld [vmem:[%s3049 + $0x70] sm:$0xff]
      %3066 = vrot.lane.b32.xlu0 %v3050, 48
      %v3067 = vpop.permute.xlu0 %3066
      %3068 = vrot.lane.b32.xlu0 %v3051, 48
      %v3069 = vpop.permute.xlu0 %3068
      %3070 = vrot.lane.b32.xlu0 %v3052, 48
      %v3071 = vpop.permute.xlu0 %3070
      %3072 = vrot.lane.b32.xlu0 %v3053, 48
      %v3073 = vpop.permute.xlu0 %3072
      %3074 = vrot.lane.b32.xlu0 %v3054, 48
      %v3075 = vpop.permute.xlu0 %3074
      %3076 = vrot.lane.b32.xlu0 %v3055, 48
      %v3077 = vpop.permute.xlu0 %3076
      %3078 = vrot.lane.b32.xlu0 %v3056, 48
      %v3079 = vpop.permute.xlu0 %3078
      %3080 = vrot.lane.b32.xlu0 %v3057, 48
      %v3081 = vpop.permute.xlu0 %3080
      %vm3090 = vcmask 458112
      %3091 = vst.msk [vmem:[#allocation5] sm:$0xff] %vm3090, %v3067
      %3092 = vst.msk [vmem:[#allocation5 + $0x8] sm:$0xff] %vm3090, %v3069
      %3093 = vst.msk [vmem:[#allocation5 + $0x10] sm:$0xff] %vm3090, %v3071
      %3094 = vst.msk [vmem:[#allocation5 + $0x18] sm:$0xff] %vm3090, %v3073
      %3095 = vst.msk [vmem:[#allocation5 + $0x20] sm:$0xff] %vm3090, %v3075
      %3096 = vst.msk [vmem:[#allocation5 + $0x28] sm:$0xff] %vm3090, %v3077
      %3097 = vst.msk [vmem:[#allocation5 + $0x30] sm:$0xff] %vm3090, %v3079
      %3098 = vst.msk [vmem:[#allocation5 + $0x38] sm:$0xff] %vm3090, %v3081
      %v3099 = vld [vmem:[%s3049 + $0x1] sm:$0xff]
      %v3100 = vld [vmem:[%s3049 + $0x11] sm:$0xff]
      %v3101 = vld [vmem:[%s3049 + $0x21] sm:$0xff]
      %v3102 = vld [vmem:[%s3049 + $0x31] sm:$0xff]
      %v3103 = vld [vmem:[%s3049 + $0x41] sm:$0xff]
      %v3104 = vld [vmem:[%s3049 + $0x51] sm:$0xff]
      %v3105 = vld [vmem:[%s3049 + $0x61] sm:$0xff]
      %v3106 = vld [vmem:[%s3049 + $0x71] sm:$0xff]
      %3115 = vrot.lane.b32.xlu0 %v3099, 56
      %v3116 = vpop.permute.xlu0 %3115
      %3117 = vrot.lane.b32.xlu0 %v3100, 56
      %v3118 = vpop.permute.xlu0 %3117
      %3119 = vrot.lane.b32.xlu0 %v3101, 56
      %v3120 = vpop.permute.xlu0 %3119
      %3121 = vrot.lane.b32.xlu0 %v3102, 56
      %v3122 = vpop.permute.xlu0 %3121
      %3123 = vrot.lane.b32.xlu0 %v3103, 56
      %v3124 = vpop.permute.xlu0 %3123
      %3125 = vrot.lane.b32.xlu0 %v3104, 56
      %v3126 = vpop.permute.xlu0 %3125
      %3127 = vrot.lane.b32.xlu0 %v3105, 56
      %v3128 = vpop.permute.xlu0 %3127
      %3129 = vrot.lane.b32.xlu0 %v3106, 56
      %v3130 = vpop.permute.xlu0 %3129
      %vm3139 = vcmask 523712
      %3140 = vst.msk [vmem:[#allocation5] sm:$0xff] %vm3139, %v3116
      %3141 = vst.msk [vmem:[#allocation5 + $0x8] sm:$0xff] %vm3139, %v3118
      %3142 = vst.msk [vmem:[#allocation5 + $0x10] sm:$0xff] %vm3139, %v3120
      %3143 = vst.msk [vmem:[#allocation5 + $0x18] sm:$0xff] %vm3139, %v3122
      %3144 = vst.msk [vmem:[#allocation5 + $0x20] sm:$0xff] %vm3139, %v3124
      %3145 = vst.msk [vmem:[#allocation5 + $0x28] sm:$0xff] %vm3139, %v3126
      %3146 = vst.msk [vmem:[#allocation5 + $0x30] sm:$0xff] %vm3139, %v3128
      %3147 = vst.msk [vmem:[#allocation5 + $0x38] sm:$0xff] %vm3139, %v3130
      %v3148 = vld [vmem:[%s3049 + $0x2] sm:$0xff]
      %v3149 = vld [vmem:[%s3049 + $0x12] sm:$0xff]
      %v3150 = vld [vmem:[%s3049 + $0x22] sm:$0xff]
      %v3151 = vld [vmem:[%s3049 + $0x32] sm:$0xff]
      %v3152 = vld [vmem:[%s3049 + $0x42] sm:$0xff]
      %v3153 = vld [vmem:[%s3049 + $0x52] sm:$0xff]
      %v3154 = vld [vmem:[%s3049 + $0x62] sm:$0xff]
      %v3155 = vld [vmem:[%s3049 + $0x72] sm:$0xff]
      %3164 = vrot.lane.b32.xlu0 %v3148, 64
      %v3165 = vpop.permute.xlu0 %3164
      %3166 = vrot.lane.b32.xlu0 %v3149, 64
      %v3167 = vpop.permute.xlu0 %3166
      %3168 = vrot.lane.b32.xlu0 %v3150, 64
      %v3169 = vpop.permute.xlu0 %3168
      %3170 = vrot.lane.b32.xlu0 %v3151, 64
      %v3171 = vpop.permute.xlu0 %3170
      %3172 = vrot.lane.b32.xlu0 %v3152, 64
      %v3173 = vpop.permute.xlu0 %3172
      %3174 = vrot.lane.b32.xlu0 %v3153, 64
      %v3175 = vpop.permute.xlu0 %3174
      %3176 = vrot.lane.b32.xlu0 %v3154, 64
      %v3177 = vpop.permute.xlu0 %3176
      %3178 = vrot.lane.b32.xlu0 %v3155, 64
      %v3179 = vpop.permute.xlu0 %3178
      %vm3188 = vcmask 589312
      %3189 = vst.msk [vmem:[#allocation5] sm:$0xff] %vm3188, %v3165
      %3190 = vst.msk [vmem:[#allocation5 + $0x8] sm:$0xff] %vm3188, %v3167
      %3191 = vst.msk [vmem:[#allocation5 + $0x10] sm:$0xff] %vm3188, %v3169
      %3192 = vst.msk [vmem:[#allocation5 + $0x18] sm:$0xff] %vm3188, %v3171
      %3193 = vst.msk [vmem:[#allocation5 + $0x20] sm:$0xff] %vm3188, %v3173
      %3194 = vst.msk [vmem:[#allocation5 + $0x28] sm:$0xff] %vm3188, %v3175
      %3195 = vst.msk [vmem:[#allocation5 + $0x30] sm:$0xff] %vm3188, %v3177
      %3196 = vst.msk [vmem:[#allocation5 + $0x38] sm:$0xff] %vm3188, %v3179
      %v3197 = vld [vmem:[#allocation5] sm:$0xff]
      %v3198 = vld [vmem:[#allocation5 + $0x8] sm:$0xff]
      %v3199 = vld [vmem:[#allocation5 + $0x10] sm:$0xff]
      %v3200 = vld [vmem:[#allocation5 + $0x18] sm:$0xff]
      %v3201 = vld [vmem:[#allocation5 + $0x20] sm:$0xff]
      %v3202 = vld [vmem:[#allocation5 + $0x28] sm:$0xff]
      %v3203 = vld [vmem:[#allocation5 + $0x30] sm:$0xff]
      %v3204 = vld [vmem:[#allocation5 + $0x38] sm:$0xff]
      %v3205 = vld [vmem:[%s3] sm:$0xff]
      %v3206 = vld [vmem:[%s3 + $0x8] sm:$0xff]
      %v3207 = vld [vmem:[%s3 + $0x10] sm:$0xff]
      %v3208 = vld [vmem:[%s3 + $0x18] sm:$0xff]
      %v3209 = vld [vmem:[%s3 + $0x20] sm:$0xff]
      %v3210 = vld [vmem:[%s3 + $0x28] sm:$0xff]
      %v3211 = vld [vmem:[%s3 + $0x30] sm:$0xff]
      %v3212 = vld [vmem:[%s3 + $0x38] sm:$0xff]
      %v3213 = vld [vmem:[%s3 + $0x40] sm:$0xff]
      %v3214 = vld [vmem:[%s4] sm:$0x1]
      %v3216 = vlaneseq
      %v3217 = vshrl.u32 %v3216, 7
      %v3218 = vsub.s32 0, %v3217
      %v3219 = vrot.slane %v3214, %v3218
      %vm3221 = vcmask 588800
      %v3223 = vsel %vm3221, %v3197, 0
      %v3226 = vsel %vm3221, %v3198, 0
      %v3229 = vsel %vm3221, %v3199, 0
      %v3232 = vsel %vm3221, %v3200, 0
      %v3235 = vsel %vm3221, %v3201, 0
      %v3238 = vsel %vm3221, %v3202, 0
      %v3241 = vsel %vm3221, %v3203, 0
      %v3244 = vsel %vm3221, %v3204, 0
      %3246 = vmatprep.subr.mxu0 0.0
      %3247 = vmatpush1.msra.mxu0 0.0
      %3248 = vmatprep.subr.mxu0 0.0
      %3249 = vmatpush1.msra.mxu0 0.0
      %3250 = vmatprep.subr.mxu0 0.0
      %3251 = vmatpush1.msra.mxu0 0.0
      %3252 = vmatprep.subr.mxu0 0.0
      %3253 = vmatpush1.msra.mxu0 0.0
      %3254 = vmatprep.subr.mxu0 0.0
      %3255 = vmatpush1.msra.mxu0 0.0
      %3256 = vmatprep.subr.mxu0 0.0
      %3257 = vmatpush1.msra.mxu0 0.0
      %3258 = vmatprep.subr.mxu0 0.0
      %3259 = vmatpush1.msra.mxu0 0.0
      %3260 = vmatprep.subr.mxu0 0.0
      %3261 = vmatpush1.msra.mxu0 %v3213
      %3262 = vmatprep.subr.mxu0 0.0
      %3263 = vmatpush1.msra.mxu0 %v3212
      %3264 = vmatprep.subr.mxu0 0.0
      %3265 = vmatpush1.msra.mxu0 %v3211
      %3266 = vmatprep.subr.mxu0 0.0
      %3267 = vmatpush1.msra.mxu0 %v3210
      %3268 = vmatprep.subr.mxu0 0.0
      %3269 = vmatpush1.msra.mxu0 %v3209
      %3270 = vmatprep.subr.mxu0 0.0
      %3271 = vmatpush1.msra.mxu0 %v3208
      %3272 = vmatprep.subr.mxu0 0.0
      %3273 = vmatpush1.msra.mxu0 %v3207
      %3274 = vmatprep.subr.mxu0 0.0
      %3275 = vmatpush1.msra.mxu0 %v3206
      %3276 = vmatprep.subr.mxu0 0.0
      %3277 = vmatpush1.msra.mxu0 %v3205
      %3278 = vmatprep.subr.mxu0 0.0
      %3279 = vmatpush2.msra.mxu0 0.0
      %3280 = vmatprep.subr.mxu0 0.0
      %3281 = vmatpush2.msra.mxu0 0.0
      %3282 = vmatprep.subr.mxu0 0.0
      %3283 = vmatpush2.msra.mxu0 0.0
      %3284 = vmatprep.subr.mxu0 0.0
      %3285 = vmatpush2.msra.mxu0 0.0
      %3286 = vmatprep.subr.mxu0 0.0
      %3287 = vmatpush2.msra.mxu0 0.0
      %3288 = vmatprep.subr.mxu0 0.0
      %3289 = vmatpush2.msra.mxu0 0.0
      %3290 = vmatprep.subr.mxu0 0.0
      %3291 = vmatpush2.msra.mxu0 0.0
      %3292 = vmatprep.subr.mxu0 0.0
      %3293 = vmatpush2.msra.mxu0 0.0
      %3294 = vmatprep.subr.mxu0 0.0
      %3295 = vmatpush2.msra.mxu0 0.0
      %3296 = vmatprep.subr.mxu0 0.0
      %3297 = vmatpush2.msra.mxu0 0.0
      %3298 = vmatprep.subr.mxu0 0.0
      %3299 = vmatpush2.msra.mxu0 0.0
      %3300 = vmatprep.subr.mxu0 0.0
      %3301 = vmatpush2.msra.mxu0 0.0
      %3302 = vmatprep.subr.mxu0 0.0
      %3303 = vmatpush2.msra.mxu0 0.0
      %3304 = vmatprep.subr.mxu0 0.0
      %3305 = vmatpush2.msra.mxu0 0.0
      %3306 = vmatprep.subr.mxu0 0.0
      %3307 = vmatpush2.msra.mxu0 0.0
      %3308 = vmatprep.subr.mxu0 0.0
      %3309 = vmatpush2.msra.mxu0 0.0
      %3310 = vmatprep.mubr.f32.mxu0 0.0
      %3311 = vmatmul.mubr.f32.gmra.mxu0 %v3223
      %v3312 = vpop.f32.mrf.mxu0
      %v3313 = vadd.f32 %v3219, %v3312
      %v3314 = vpop.f32.mrf.mxu0
      %3315 = vmatprep.mubr.f32.mxu0 0.0
      %3316 = vmatmul.mubr.f32.gmra.mxu0 %v3226
      %v3317 = vpop.f32.mrf.mxu0
      %v3318 = vadd.f32 %v3219, %v3317
      %v3319 = vpop.f32.mrf.mxu0
      %3320 = vmatprep.mubr.f32.mxu0 0.0
      %3321 = vmatmul.mubr.f32.gmra.mxu0 %v3229
      %v3322 = vpop.f32.mrf.mxu0
      %v3323 = vadd.f32 %v3219, %v3322
      %v3324 = vpop.f32.mrf.mxu0
      %3325 = vmatprep.mubr.f32.mxu0 0.0
      %3326 = vmatmul.mubr.f32.gmra.mxu0 %v3232
      %v3327 = vpop.f32.mrf.mxu0
      %v3328 = vadd.f32 %v3219, %v3327
      %v3329 = vpop.f32.mrf.mxu0
      %3330 = vmatprep.mubr.f32.mxu0 0.0
      %3331 = vmatmul.mubr.f32.gmra.mxu0 %v3235
      %v3332 = vpop.f32.mrf.mxu0
      %v3333 = vadd.f32 %v3219, %v3332
      %v3334 = vpop.f32.mrf.mxu0
      %3335 = vmatprep.mubr.f32.mxu0 0.0
      %3336 = vmatmul.mubr.f32.gmra.mxu0 %v3238
      %v3337 = vpop.f32.mrf.mxu0
      %v3338 = vadd.f32 %v3219, %v3337
      %v3339 = vpop.f32.mrf.mxu0
      %3340 = vmatprep.mubr.f32.mxu0 0.0
      %3341 = vmatmul.mubr.f32.gmra.mxu0 %v3241
      %v3342 = vpop.f32.mrf.mxu0
      %v3343 = vadd.f32 %v3219, %v3342
      %v3344 = vpop.f32.mrf.mxu0
      %3345 = vmatprep.mubr.f32.mxu0 0.0
      %3346 = vmatmul.mubr.f32.gmra.mxu0 %v3244
      %v3347 = vpop.f32.mrf.mxu0
      %v3348 = vadd.f32 %v3219, %v3347
      %v3349 = vpop.f32.mrf.mxu0
      %3350 = vdwg.mxu0
      %v3351 = vmax.f32 %v3313, 0.0
      %v3352 = vmax.f32 %v3318, 0.0
      %v3353 = vmax.f32 %v3323, 0.0
      %v3354 = vmax.f32 %v3328, 0.0
      %v3355 = vmax.f32 %v3333, 0.0
      %v3356 = vmax.f32 %v3338, 0.0
      %v3357 = vmax.f32 %v3343, 0.0
      %v3358 = vmax.f32 %v3348, 0.0
      %v3359 = vxor.u32 %v3351, 2147483648
      %v3360 = vxor.u32 %v3352, 2147483648
      %v3361 = vxor.u32 %v3353, 2147483648
      %v3362 = vxor.u32 %v3354, 2147483648
      %v3363 = vxor.u32 %v3355, 2147483648
      %v3364 = vxor.u32 %v3356, 2147483648
      %v3365 = vxor.u32 %v3357, 2147483648
      %v3366 = vxor.u32 %v3358, 2147483648
      %v3367 = vmul.f32 %v3359, 1.442695
      %v3368 = vpow.pop %v3367
      %v3369 = vmul.f32 %v3360, 1.442695
      %v3370 = vpow.pop %v3369
      %v3371 = vmul.f32 %v3361, 1.442695
      %v3372 = vpow.pop %v3371
      %v3373 = vmul.f32 %v3362, 1.442695
      %v3374 = vpow.pop %v3373
      %v3375 = vmul.f32 %v3363, 1.442695
      %v3376 = vpow.pop %v3375
      %v3377 = vmul.f32 %v3364, 1.442695
      %v3378 = vpow.pop %v3377
      %v3379 = vmul.f32 %v3365, 1.442695
      %v3380 = vpow.pop %v3379
      %v3381 = vmul.f32 %v3366, 1.442695
      %v3382 = vpow.pop %v3381
      %v3383 = vadd.f32 %v3368, 1.0
      %v3384 = vadd.f32 %v3370, 1.0
      %v3385 = vadd.f32 %v3372, 1.0
      %v3386 = vadd.f32 %v3374, 1.0
      %v3387 = vadd.f32 %v3376, 1.0
      %v3388 = vadd.f32 %v3378, 1.0
      %v3389 = vadd.f32 %v3380, 1.0
      %v3390 = vadd.f32 %v3382, 1.0
      %v3391 = vrcp.pop %v3383
      %v3392 = vmul.f32 1.0, %v3391
      %v3393 = vrcp.pop %v3384
      %v3394 = vmul.f32 1.0, %v3393
      %v3395 = vrcp.pop %v3385
      %v3396 = vmul.f32 1.0, %v3395
      %v3397 = vrcp.pop %v3386
      %v3398 = vmul.f32 1.0, %v3397
      %v3399 = vrcp.pop %v3387
      %v3400 = vmul.f32 1.0, %v3399
      %v3401 = vrcp.pop %v3388
      %v3402 = vmul.f32 1.0, %v3401
      %v3403 = vrcp.pop %v3389
      %v3404 = vmul.f32 1.0, %v3403
      %v3405 = vrcp.pop %v3390
      %v3406 = vmul.f32 1.0, %v3405
      %vm3407 = vcmask 130048
      %3408 = vst.msk [vmem:[%s264] sm:$0xff] %vm3407, %v3392
      %3409 = vst.msk [vmem:[%s264 + $0x8] sm:$0xff] %vm3407, %v3394
      %3410 = vst.msk [vmem:[%s264 + $0x10] sm:$0xff] %vm3407, %v3396
      %3411 = vst.msk [vmem:[%s264 + $0x18] sm:$0xff] %vm3407, %v3398
      %3412 = vst.msk [vmem:[%s264 + $0x20] sm:$0xff] %vm3407, %v3400
      %3413 = vst.msk [vmem:[%s264 + $0x28] sm:$0xff] %vm3407, %v3402
      %3414 = vst.msk [vmem:[%s264 + $0x30] sm:$0xff] %vm3407, %v3404
      %3415 = vst.msk [vmem:[%s264 + $0x38] sm:$0xff] %vm3407, %v3406
      %p3416 = scmp.lt.s32.totalorder %s18, 1
      %s3417 = scalar_select %p3416, %s18, 1
      %s3418 = smul.addr %s3417, 32
      %s3419 = smul.addr %s3418, 8
      %s3420 = scalar_lea.vmem %s5, %s3419
      %p3421 = scmp.lt.s32.totalorder %s18, 1
      %s3422 = scalar_select %p3421, %s18, 1
      %s3423 = smul.addr %s3422, 8
      %s3424 = smul.addr %s3423, 8
      %s3425 = scalar_lea.vmem %s6, %s3424
      // Predicated region
      $region41: #{tpu_custom_call.1} parent=39 // pred_check
        %p3426 = pneg %p146
      $region42: #{tpu_custom_call.1} parent=39 // pred_check_branch
        %3428 = sbr.rel (%p3426) target = $region44
      $region43: #{tpu_custom_call.1} parent=39 // pred_region
        _
      $region44: #{tpu_custom_call.1} parent=39 // pred_fallthru
        _
      // Predicated region
      $region45: #{tpu_custom_call.1} parent=39 // pred_check
        %p3429 = pneg %p172
      $region46: #{tpu_custom_call.1} parent=39 // pred_check_branch
        %3431 = sbr.rel (%p3429) target = $region48
      $region47: #{tpu_custom_call.1} parent=39 // pred_region
        _
      $region48: #{tpu_custom_call.1} parent=39 // pred_fallthru
        _
    $region40: #{tpu_custom_call.1} parent=5 // pred_fallthru
      _
    %p3432 = scmp.le.s32.totalorder 2, %s13
    // Predicated region
    $region49: #{tpu_custom_call.1} parent=5 // pred_check
      %p3433 = pneg %p3432
    $region50: #{tpu_custom_call.1} parent=5 // pred_check_branch
      %3435 = sbr.rel (%p3433) target = $region52
    $region51: #{tpu_custom_call.1} parent=5 // pred_region
      %s3436 = ssub.s32 %s13, 2
      // Predicated region
      $region53: #{tpu_custom_call.1} parent=51 // pred_check
        %p3437 = pneg %p152
      $region54: #{tpu_custom_call.1} parent=51 // pred_check_branch
        %3439 = sbr.rel (%p3437) target = $region56
      $region55: #{tpu_custom_call.1} parent=51 // pred_region
        %p3440 = scmp.lt.s32.totalorder %s19, 1
        %s3441 = scalar_select %p3440, %s19, 1
        %s3442 = smul.addr %s3441, 32
        %s3443 = smul.addr %s3442, 8
        %s3444 = scalar_lea.vmem %s5, %s3443
      $region56: #{tpu_custom_call.1} parent=51 // pred_fallthru
        _
      // Predicated region
      $region57: #{tpu_custom_call.1} parent=51 // pred_check
        %p3445 = pneg %p178
      $region58: #{tpu_custom_call.1} parent=51 // pred_check_branch
        %3447 = sbr.rel (%p3445) target = $region60
      $region59: #{tpu_custom_call.1} parent=51 // pred_region
        %p3448 = scmp.lt.s32.totalorder %s19, 1
        %s3449 = scalar_select %p3448, %s19, 1
        %s3450 = smul.addr %s3449, 8
        %s3451 = smul.addr %s3450, 8
        %s3452 = scalar_lea.vmem %s6, %s3451
      $region60: #{tpu_custom_call.1} parent=51 // pred_fallthru
        _
    $region52: #{tpu_custom_call.1} parent=5 // pred_fallthru
      _
  $region6: #{tpu_custom_call.1} parent=0 // loop_footer
    %s17 = sadd.s32 1, %s13
  $region7: #{tpu_custom_call.1} parent=0 // loop_footer_branch
    %12 = sbr.rel target = $region3
  $region8: #{tpu_custom_call.1} parent=0 // loop_exit
    _

</llo_original>
